<compile_context>
chip_gen: v7x
topology: tpu7x:2x2x1
jax: 0.10.0
libtpu: 0.0.40
codegen_flags: <defaults>
</compile_context>

<pallas_src>
import jax
import jax.numpy as jnp
from jax.experimental import pallas as pl
from jax.experimental.pallas import tpu as pltpu

EPS = 1e-5  # nn.BatchNorm2d default eps
_VMEM_LIMIT = 32 * 1024 * 1024  # explicit, safe on v5e/v6e (128 MiB) and v7x (64 MiB)

_CP_CLS = getattr(pltpu, "CompilerParams", None) or getattr(pltpu, "TPUCompilerParams", None)


def _compiler_params(**kwargs):
    if _CP_CLS is None:
        return None
    try:
        return _CP_CLS(**kwargs)
    except TypeError:
        return None


def _largest_divisor(total, ok):
    best = 1
    for d in range(1, total + 1):
        if total % d == 0 and ok(d):
            best = d
    return best


# --------------------------------------------------------------------------- kernels
def _make_conv_stats_kernel(ws, tlen, cp):
    """Pass 1: 3x3 conv of one halo'd row slab (9 shifted MXU dots) + BN partial sums.

    x_ref:    (1, L, Cin) f32   flattened, zero-framed slab (L = (tile_h+2)*ws + 2)
    w_ref:    (9, Cin, cp) bf16 per-tap weight matrices (Cout zero-padded to cp)
    mask_ref: (tlen, 1)   f32   1.0 on valid output columns, 0.0 on the padding columns
    conv_ref: (tlen, cp)  f32   conv output for this slab (valid + padding columns)
    stats_ref:(1, 2, cp)  f32   row0 = sum, row1 = sum of squares (valid columns only)
    """

    def kernel(x_ref, w_ref, mask_ref, conv_ref, stats_ref):
        acc = jnp.zeros((tlen, cp), dtype=jnp.float32)
        for k in range(9):
            dh, dw = divmod(k, 3)
            start = dh * ws + dw  # flat offset of tap (dh, dw) within the framed slab
            tap = x_ref[0, start:start + tlen, :].astype(jnp.bfloat16)
            acc = acc + jnp.dot(tap, w_ref[k], preferred_element_type=jnp.float32)
        conv_ref[...] = acc
        m = acc * mask_ref[...]  # zero out the horizontal-padding columns
        stats_ref[0, 0:1, :] = jnp.sum(m, axis=0, keepdims=True)
        stats_ref[0, 1:2, :] = jnp.sum(m * m, axis=0, keepdims=True)

    return kernel


def _make_bn_relu_pool_kernel(cp):
    """Pass 2 (downsample): fused BN affine + ReLU + 2x2 max-pool.

    x_ref: (rp, 2, wc, 2*cp) f32  -- axis 1 = row parity, last dim = [col-even | col-odd]
    sc/sh: (1, 2*cp) f32          -- per-channel scale / shift, duplicated over lane halves
    o_ref: (rp, wc, cp)  f32
    """

    def kernel(x_ref, sc_ref, sh_ref, o_ref):
        y = x_ref[...] * sc_ref[...] + sh_ref[...]
        y = jnp.maximum(y, 0.0)                       # ReLU (commutes with max-pool)
        v = jnp.maximum(y[:, 0], y[:, 1])             # vertical 2x1 max  (rp, wc, 2cp)
        o_ref[...] = jnp.maximum(v[:, :, :cp], v[:, :, cp:])  # horizontal 1x2 max

    return kernel


def _bn_relu_kernel(x_ref, sc_ref, sh_ref, o_ref):
    """Pass 2 (no downsample): fused BN affine + ReLU on lane-dense 2-D tiles."""
    o_ref[...] = jnp.maximum(x_ref[...] * sc_ref[...] + sh_ref[...], 0.0)


# --------------------------------------------------------------------------- wrapper
def encoder_block_forward(x_nchw, w, b, gamma, beta, downsample=True):
    # Conv bias is mathematically cancelled by the training-mode BatchNorm mean
    # subtraction; it only affects the (un-modelled) running statistics.
    del b
    N, Cin, H, W = x_nchw.shape
    Cout = w.shape[0]
    assert H % 2 == 0 and W % 2 == 0, "even spatial dims expected"

    Cp = ((Cout + 127) // 128) * 128          # lane-dense padded channel count
    Ws = W + 4                                # 2 zero cols each side -> even width,
    Ho, Wo, Wc = H // 2, W // 2, (W + 4) // 2 # 2x2 pool windows stay pair-aligned

    tile_h = _largest_divisor(H, lambda d: (d * Ws) % 8 == 0 and d * Ws <= 2048)
    assert (tile_h * Ws) % 8 == 0, "could not find a sublane-aligned row tile"
    T = H // tile_h                           # row tiles per image
    Hs = tile_h + 2                           # slab height incl. 1-row halo top/bottom
    TLEN = tile_h * Ws                        # output rows (flattened) per slab
    L = Hs * Ws + 2                           # flattened slab rows incl. +-1 frame
    n_slabs = N * T

    # ---- layout glue (plain XLA): NCHW -> NHWC, halo'd row slabs, flatten -------
    xh = jnp.transpose(x_nchw, (0, 2, 3, 1)).astype(jnp.float32)      # (N, H, W, Cin)
    xsp = jnp.pad(xh, ((0, 0), (1, 1), (2, 2), (0, 0)))               # (N, H+2, W+4, Cin)
    slabs = jnp.stack(
        [xsp[:, t * tile_h:t * tile_h + Hs, :, :] for t in range(T)], axis=1)
    slabs = slabs.reshape(n_slabs, Hs * Ws, Cin)
    slabs = jnp.pad(slabs, ((0, 0), (1, 1), (0, 0)))                  # (n_slabs, L, Cin)
    # TODO(synk): for production, store the slabs in bf16 as well to halve the input DMA.

    # PyTorch conv weight (Cout, Cin, 3, 3) -> (9, Cin, Cp) bf16, Cout zero-padded.
    w9 = jnp.transpose(w, (2, 3, 1, 0)).reshape(9, Cin, Cout).astype(jnp.float32)
    w9 = jnp.pad(w9, ((0, 0), (0, 0), (0, Cp - Cout))).astype(jnp.bfloat16)

    col = jnp.arange(TLEN, dtype=jnp.int32) % Ws
    mask = ((col >= 2) & (col < W + 2)).astype(jnp.float32).reshape(TLEN, 1)

    conv_out_shape = (jax.ShapeDtypeStruct((n_slabs * TLEN, Cp), jnp.float32),
                      jax.ShapeDtypeStruct((n_slabs, 2, Cp), jnp.float32))
    extra = {}
    if hasattr(pl, "CostEstimate"):
        extra["cost_estimate"] = pl.CostEstimate(
            flops=2 * n_slabs * TLEN * 9 * Cin * Cp,
            transcendentals=0,
            bytes_accessed=n_slabs * (L * Cin * 4 + TLEN * Cp * 4 + 2 * Cp * 4)
            + 9 * Cin * Cp * 2)

    conv_flat, stats = pl.pallas_call(
        _make_conv_stats_kernel(Ws, TLEN, Cp),
        out_shape=conv_out_shape,
        grid=(n_slabs,),
        in_specs=[
            pl.BlockSpec((1, L, Cin), lambda i: (i, 0, 0)),      # one slab per step
            pl.BlockSpec((9, Cin, Cp), lambda i: (0, 0, 0)),     # weights, fetched once
            pl.BlockSpec((TLEN, 1), lambda i: (0, 0)),           # column-valid mask
        ],
        out_specs=(
            pl.BlockSpec((TLEN, Cp), lambda i: (i, 0)),          # conv output tile
            pl.BlockSpec((1, 2, Cp), lambda i: (i, 0, 0)),       # per-slab BN partials
        ),
        compiler_params=_compiler_params(
            dimension_semantics=("parallel",),
            vmem_limit_bytes=_VMEM_LIMIT),
        **extra,
    )(slabs, w9, mask)

    # ---- BatchNorm batch statistics over the full (N, H, W) extent --------------
    s1 = jnp.sum(stats[:, 0, :], axis=0)
    s2 = jnp.sum(stats[:, 1, :], axis=0)
    cnt = float(N * H * W)
    mean = s1 / cnt
    # TODO(synk): for very large N*H*W the E[x^2]-E[x]^2 form loses precision; a
    # Welford / two-pass variance would be preferable (f32 accumulation used here).
    var = jnp.maximum(s2 / cnt - mean * mean, 0.0)
    gpad = jnp.pad(gamma.astype(jnp.float32), (0, Cp - Cout))
    bpad = jnp.pad(beta.astype(jnp.float32), (0, Cp - Cout))
    scale = gpad * jax.lax.rsqrt(var + EPS)
    shift = bpad - mean * scale

    if downsample:
        # Free row-major view: rows are (n, h, wq) with wq over the padded width Ws.
        x2 = conv_flat.reshape(N * Ho, 2, Wc, 2 * Cp)
        sc2 = jnp.concatenate([scale, scale]).reshape(1, 2 * Cp)
        sh2 = jnp.concatenate([shift, shift]).reshape(1, 2 * Cp)
        total = N * Ho
        rp = _largest_divisor(
            total,
            lambda d: d * 2 * Wc * 2 * Cp * 4 <= 2 * 1024 * 1024 and (d < total or total == 1))
        pooled = pl.pallas_call(
            _make_bn_relu_pool_kernel(Cp),
            out_shape=jax.ShapeDtypeStruct((N * Ho, Wc, Cp), jnp.float32),
            grid=(total // rp,),
            in_specs=[
                pl.BlockSpec((rp, 2, Wc, 2 * Cp), lambda i: (i, 0, 0, 0)),
                pl.BlockSpec((1, 2 * Cp), lambda i: (0, 0)),
                pl.BlockSpec((1, 2 * Cp), lambda i: (0, 0)),
            ],
            out_specs=pl.BlockSpec((rp, Wc, Cp), lambda i: (i, 0, 0)),
            compiler_params=_compiler_params(
                dimension_semantics=("parallel",),
                vmem_limit_bytes=_VMEM_LIMIT),
        )(x2, sc2, sh2)
        # drop the padding pool columns and the padded channels
        out = pooled.reshape(N, Ho, Wc, Cp)[:, :, 1:1 + Wo, :Cout]
    else:
        sc = scale.reshape(1, Cp)
        sh = shift.reshape(1, Cp)
        act = pl.pallas_call(
            _bn_relu_kernel,
            out_shape=jax.ShapeDtypeStruct((n_slabs * TLEN, Cp), jnp.float32),
            grid=(n_slabs,),
            in_specs=[
                pl.BlockSpec((TLEN, Cp), lambda i: (i, 0)),
                pl.BlockSpec((1, Cp), lambda i: (0, 0)),
                pl.BlockSpec((1, Cp), lambda i: (0, 0)),
            ],
            out_specs=pl.BlockSpec((TLEN, Cp), lambda i: (i, 0)),
            compiler_params=_compiler_params(
                dimension_semantics=("parallel",),
                vmem_limit_bytes=_VMEM_LIMIT),
        )(conv_flat, sc, sh)
        out = act.reshape(N, H, Ws, Cp)[:, :, 2:W + 2, :Cout]

    return jnp.transpose(out, (0, 3, 1, 2))  # back to NCHW


# --------------------------------------------------------------------------- reference
def reference_forward(x, w, b, gamma, beta, downsample=True):
    """Pure-JAX reference mirroring the PyTorch module forward in training mode."""
    y = jax.lax.conv_general_dilated(
        x, w, window_strides=(1, 1), padding=((1, 1), (1, 1)),
        dimension_numbers=("NCHW", "OIHW", "NCHW"),
        precision=jax.lax.Precision.HIGHEST,
    )
    y = y + b.reshape(1, -1, 1, 1)
    mean = jnp.mean(y, axis=(0, 2, 3), keepdims=True)
    var = jnp.mean((y - mean) ** 2, axis=(0, 2, 3), keepdims=True)
    y = (y - mean) * jax.lax.rsqrt(var + EPS) * gamma.reshape(1, -1, 1, 1) \
        + beta.reshape(1, -1, 1, 1)
    y = jnp.maximum(y, 0.0)
    if downsample:
        n, c, h, ww = y.shape
        y = y.reshape(n, c, h // 2, 2, ww // 2, 2).max(axis=(3, 5))
    return y


if __name__ == "__main__":
    # small shapes consistent with the module: batch=2, in_channels=4, out_channels=8, 16x16
    N, Cin, Cout, H, W = 2, 4, 8, 16, 16
    key = jax.random.PRNGKey(0)
    k1, k2, k3, k4, k5 = jax.random.split(key, 5)

    x = jax.random.normal(k1, (N, Cin, H, W), dtype=jnp.float32)
    conv_w = 0.1 * jax.random.normal(k2, (Cout, Cin, 3, 3), dtype=jnp.float32)
    conv_b = 0.1 * jax.random.normal(k3, (Cout,), dtype=jnp.float32)
    bn_gamma = 1.0 + 0.1 * jax.random.normal(k4, (Cout,), dtype=jnp.float32)
    bn_beta = 0.1 * jax.random.normal(k5, (Cout,), dtype=jnp.float32)
    # TODO(synk): BatchNorm running_mean/running_var update is a stateful side effect
    # with no effect on the returned tensor; it is not modelled here.

    out = encoder_block_forward(x, conv_w, conv_b, bn_gamma, bn_beta, downsample=True)
    out = jax.block_until_ready(out)
    assert out.shape == (N, Cout, H // 2, W // 2), out.shape
    ref = reference_forward(x, conv_w, conv_b, bn_gamma, bn_beta, downsample=True)
    # bf16 MXU inputs (f32 accumulate) bound the per-element error well below 2.5e-2.
    if not jnp.allclose(out, ref, atol=2.5e-2, rtol=2.5e-2):
        err = float(jnp.max(jnp.abs(out - ref)))
        raise AssertionError(f"pooled output does not match reference (max abs err {err})")

    out_full = encoder_block_forward(x, conv_w, conv_b, bn_gamma, bn_beta, downsample=False)
    out_full = jax.block_until_ready(out_full)
    assert out_full.shape == (N, Cout, H, W), out_full.shape
    ref_full = reference_forward(x, conv_w, conv_b, bn_gamma, bn_beta, downsample=False)
    if not jnp.allclose(out_full, ref_full, atol=2.5e-2, rtol=2.5e-2):
        err = float(jnp.max(jnp.abs(out_full - ref_full)))
        raise AssertionError(f"full-res output does not match reference (max abs err {err})")

    print("KERNEL_OK")
</pallas_src>

<mosaic_0001>
module attributes {stable_mosaic.version = 11 : i64} {
  func.func @kernel(%arg0: i32, %arg1: memref<1x362x4xf32, #tpu.memory_space<vmem>>, %arg2: memref<9x4x128xbf16, #tpu.memory_space<vmem>>, %arg3: memref<320x1xf32, #tpu.memory_space<vmem>>, %arg4: memref<320x128xf32, #tpu.memory_space<vmem>>, %arg5: memref<1x2x128xf32, #tpu.memory_space<vmem>>) attributes {dimension_semantics = [#tpu.dimension_semantics<parallel>], iteration_bounds = array<i64: 2>, scalar_prefetch = 0 : i64, scratch_operands = 0 : i64, tpu.core_type = #tpu.core_type<tc>, window_params = [{transform_indices = @transform_0, window_bounds = array<i64: 1, 362, 4>}, {pipeline_mode = #tpu.pipeline_mode<synchronous>, transform_indices = @transform_1, window_bounds = array<i64: 9, 4, 128>}, {pipeline_mode = #tpu.pipeline_mode<synchronous>, transform_indices = @transform_2, window_bounds = array<i64: 320, 1>}, {transform_indices = @transform_3, window_bounds = array<i64: 320, 128>}, {transform_indices = @transform_4, window_bounds = array<i64: 1, 2, 128>}]} {
    %cst = arith.constant 0.000000e+00 : f32
    %0 = vector.broadcast %cst : f32 to vector<320x128xf32>
    %c0 = arith.constant 0 : index
    %c0_0 = arith.constant 0 : index
    %c0_1 = arith.constant 0 : index
    %1 = vector.load %arg1[%c0, %c0_0, %c0_1] : memref<1x362x4xf32, #tpu.memory_space<vmem>>, vector<1x320x4xf32>
    %2 = vector.shape_cast %1 : vector<1x320x4xf32> to vector<320x4xf32>
    %3 = arith.truncf %2 : vector<320x4xf32> to vector<320x4xbf16>
    %c0_2 = arith.constant 0 : index
    %c0_3 = arith.constant 0 : index
    %c0_4 = arith.constant 0 : index
    %4 = vector.load %arg2[%c0_2, %c0_3, %c0_4] : memref<9x4x128xbf16, #tpu.memory_space<vmem>>, vector<1x4x128xbf16>
    %5 = vector.shape_cast %4 : vector<1x4x128xbf16> to vector<4x128xbf16>
    %cst_5 = arith.constant dense<0.000000e+00> : vector<320x128xf32>
    %6 = tpu.matmul %3, %5, %cst_5 {dimension_numbers = #tpu.dot_dimension_numbers<[1], [0], [0], [1], [0, 0, 1, 1], [], []>} : vector<320x4xbf16>, vector<4x128xbf16>, vector<320x128xf32> -> vector<320x128xf32>
    %7 = arith.addf %0, %6 : vector<320x128xf32>
    %c0_6 = arith.constant 0 : index
    %c1 = arith.constant 1 : index
    %c0_7 = arith.constant 0 : index
    %8 = vector.load %arg1[%c0_6, %c1, %c0_7] : memref<1x362x4xf32, #tpu.memory_space<vmem>>, vector<1x320x4xf32>
    %9 = vector.shape_cast %8 : vector<1x320x4xf32> to vector<320x4xf32>
    %10 = arith.truncf %9 : vector<320x4xf32> to vector<320x4xbf16>
    %c1_8 = arith.constant 1 : index
    %c0_9 = arith.constant 0 : index
    %c0_10 = arith.constant 0 : index
    %11 = vector.load %arg2[%c1_8, %c0_9, %c0_10] : memref<9x4x128xbf16, #tpu.memory_space<vmem>>, vector<1x4x128xbf16>
    %12 = vector.shape_cast %11 : vector<1x4x128xbf16> to vector<4x128xbf16>
    %cst_11 = arith.constant dense<0.000000e+00> : vector<320x128xf32>
    %13 = tpu.matmul %10, %12, %cst_11 {dimension_numbers = #tpu.dot_dimension_numbers<[1], [0], [0], [1], [0, 0, 1, 1], [], []>} : vector<320x4xbf16>, vector<4x128xbf16>, vector<320x128xf32> -> vector<320x128xf32>
    %14 = arith.addf %7, %13 : vector<320x128xf32>
    %c0_12 = arith.constant 0 : index
    %c2 = arith.constant 2 : index
    %c0_13 = arith.constant 0 : index
    %15 = vector.load %arg1[%c0_12, %c2, %c0_13] : memref<1x362x4xf32, #tpu.memory_space<vmem>>, vector<1x320x4xf32>
    %16 = vector.shape_cast %15 : vector<1x320x4xf32> to vector<320x4xf32>
    %17 = arith.truncf %16 : vector<320x4xf32> to vector<320x4xbf16>
    %c2_14 = arith.constant 2 : index
    %c0_15 = arith.constant 0 : index
    %c0_16 = arith.constant 0 : index
    %18 = vector.load %arg2[%c2_14, %c0_15, %c0_16] : memref<9x4x128xbf16, #tpu.memory_space<vmem>>, vector<1x4x128xbf16>
    %19 = vector.shape_cast %18 : vector<1x4x128xbf16> to vector<4x128xbf16>
    %cst_17 = arith.constant dense<0.000000e+00> : vector<320x128xf32>
    %20 = tpu.matmul %17, %19, %cst_17 {dimension_numbers = #tpu.dot_dimension_numbers<[1], [0], [0], [1], [0, 0, 1, 1], [], []>} : vector<320x4xbf16>, vector<4x128xbf16>, vector<320x128xf32> -> vector<320x128xf32>
    %21 = arith.addf %14, %20 : vector<320x128xf32>
    %c0_18 = arith.constant 0 : index
    %c20 = arith.constant 20 : index
    %c0_19 = arith.constant 0 : index
    %22 = vector.load %arg1[%c0_18, %c20, %c0_19] : memref<1x362x4xf32, #tpu.memory_space<vmem>>, vector<1x320x4xf32>
    %23 = vector.shape_cast %22 : vector<1x320x4xf32> to vector<320x4xf32>
    %24 = arith.truncf %23 : vector<320x4xf32> to vector<320x4xbf16>
    %c3 = arith.constant 3 : index
    %c0_20 = arith.constant 0 : index
    %c0_21 = arith.constant 0 : index
    %25 = vector.load %arg2[%c3, %c0_20, %c0_21] : memref<9x4x128xbf16, #tpu.memory_space<vmem>>, vector<1x4x128xbf16>
    %26 = vector.shape_cast %25 : vector<1x4x128xbf16> to vector<4x128xbf16>
    %cst_22 = arith.constant dense<0.000000e+00> : vector<320x128xf32>
    %27 = tpu.matmul %24, %26, %cst_22 {dimension_numbers = #tpu.dot_dimension_numbers<[1], [0], [0], [1], [0, 0, 1, 1], [], []>} : vector<320x4xbf16>, vector<4x128xbf16>, vector<320x128xf32> -> vector<320x128xf32>
    %28 = arith.addf %21, %27 : vector<320x128xf32>
    %c0_23 = arith.constant 0 : index
    %c21 = arith.constant 21 : index
    %c0_24 = arith.constant 0 : index
    %29 = vector.load %arg1[%c0_23, %c21, %c0_24] : memref<1x362x4xf32, #tpu.memory_space<vmem>>, vector<1x320x4xf32>
    %30 = vector.shape_cast %29 : vector<1x320x4xf32> to vector<320x4xf32>
    %31 = arith.truncf %30 : vector<320x4xf32> to vector<320x4xbf16>
    %c4 = arith.constant 4 : index
    %c0_25 = arith.constant 0 : index
    %c0_26 = arith.constant 0 : index
    %32 = vector.load %arg2[%c4, %c0_25, %c0_26] : memref<9x4x128xbf16, #tpu.memory_space<vmem>>, vector<1x4x128xbf16>
    %33 = vector.shape_cast %32 : vector<1x4x128xbf16> to vector<4x128xbf16>
    %cst_27 = arith.constant dense<0.000000e+00> : vector<320x128xf32>
    %34 = tpu.matmul %31, %33, %cst_27 {dimension_numbers = #tpu.dot_dimension_numbers<[1], [0], [0], [1], [0, 0, 1, 1], [], []>} : vector<320x4xbf16>, vector<4x128xbf16>, vector<320x128xf32> -> vector<320x128xf32>
    %35 = arith.addf %28, %34 : vector<320x128xf32>
    %c0_28 = arith.constant 0 : index
    %c22 = arith.constant 22 : index
    %c0_29 = arith.constant 0 : index
    %36 = vector.load %arg1[%c0_28, %c22, %c0_29] : memref<1x362x4xf32, #tpu.memory_space<vmem>>, vector<1x320x4xf32>
    %37 = vector.shape_cast %36 : vector<1x320x4xf32> to vector<320x4xf32>
    %38 = arith.truncf %37 : vector<320x4xf32> to vector<320x4xbf16>
    %c5 = arith.constant 5 : index
    %c0_30 = arith.constant 0 : index
    %c0_31 = arith.constant 0 : index
    %39 = vector.load %arg2[%c5, %c0_30, %c0_31] : memref<9x4x128xbf16, #tpu.memory_space<vmem>>, vector<1x4x128xbf16>
    %40 = vector.shape_cast %39 : vector<1x4x128xbf16> to vector<4x128xbf16>
    %cst_32 = arith.constant dense<0.000000e+00> : vector<320x128xf32>
    %41 = tpu.matmul %38, %40, %cst_32 {dimension_numbers = #tpu.dot_dimension_numbers<[1], [0], [0], [1], [0, 0, 1, 1], [], []>} : vector<320x4xbf16>, vector<4x128xbf16>, vector<320x128xf32> -> vector<320x128xf32>
    %42 = arith.addf %35, %41 : vector<320x128xf32>
    %c0_33 = arith.constant 0 : index
    %c40 = arith.constant 40 : index
    %c0_34 = arith.constant 0 : index
    %43 = vector.load %arg1[%c0_33, %c40, %c0_34] : memref<1x362x4xf32, #tpu.memory_space<vmem>>, vector<1x320x4xf32>
    %44 = vector.shape_cast %43 : vector<1x320x4xf32> to vector<320x4xf32>
    %45 = arith.truncf %44 : vector<320x4xf32> to vector<320x4xbf16>
    %c6 = arith.constant 6 : index
    %c0_35 = arith.constant 0 : index
    %c0_36 = arith.constant 0 : index
    %46 = vector.load %arg2[%c6, %c0_35, %c0_36] : memref<9x4x128xbf16, #tpu.memory_space<vmem>>, vector<1x4x128xbf16>
    %47 = vector.shape_cast %46 : vector<1x4x128xbf16> to vector<4x128xbf16>
    %cst_37 = arith.constant dense<0.000000e+00> : vector<320x128xf32>
    %48 = tpu.matmul %45, %47, %cst_37 {dimension_numbers = #tpu.dot_dimension_numbers<[1], [0], [0], [1], [0, 0, 1, 1], [], []>} : vector<320x4xbf16>, vector<4x128xbf16>, vector<320x128xf32> -> vector<320x128xf32>
    %49 = arith.addf %42, %48 : vector<320x128xf32>
    %c0_38 = arith.constant 0 : index
    %c41 = arith.constant 41 : index
    %c0_39 = arith.constant 0 : index
    %50 = vector.load %arg1[%c0_38, %c41, %c0_39] : memref<1x362x4xf32, #tpu.memory_space<vmem>>, vector<1x320x4xf32>
    %51 = vector.shape_cast %50 : vector<1x320x4xf32> to vector<320x4xf32>
    %52 = arith.truncf %51 : vector<320x4xf32> to vector<320x4xbf16>
    %c7 = arith.constant 7 : index
    %c0_40 = arith.constant 0 : index
    %c0_41 = arith.constant 0 : index
    %53 = vector.load %arg2[%c7, %c0_40, %c0_41] : memref<9x4x128xbf16, #tpu.memory_space<vmem>>, vector<1x4x128xbf16>
    %54 = vector.shape_cast %53 : vector<1x4x128xbf16> to vector<4x128xbf16>
    %cst_42 = arith.constant dense<0.000000e+00> : vector<320x128xf32>
    %55 = tpu.matmul %52, %54, %cst_42 {dimension_numbers = #tpu.dot_dimension_numbers<[1], [0], [0], [1], [0, 0, 1, 1], [], []>} : vector<320x4xbf16>, vector<4x128xbf16>, vector<320x128xf32> -> vector<320x128xf32>
    %56 = arith.addf %49, %55 : vector<320x128xf32>
    %c0_43 = arith.constant 0 : index
    %c42 = arith.constant 42 : index
    %c0_44 = arith.constant 0 : index
    %57 = vector.load %arg1[%c0_43, %c42, %c0_44] : memref<1x362x4xf32, #tpu.memory_space<vmem>>, vector<1x320x4xf32>
    %58 = vector.shape_cast %57 : vector<1x320x4xf32> to vector<320x4xf32>
    %59 = arith.truncf %58 : vector<320x4xf32> to vector<320x4xbf16>
    %c8 = arith.constant 8 : index
    %c0_45 = arith.constant 0 : index
    %c0_46 = arith.constant 0 : index
    %60 = vector.load %arg2[%c8, %c0_45, %c0_46] : memref<9x4x128xbf16, #tpu.memory_space<vmem>>, vector<1x4x128xbf16>
    %61 = vector.shape_cast %60 : vector<1x4x128xbf16> to vector<4x128xbf16>
    %cst_47 = arith.constant dense<0.000000e+00> : vector<320x128xf32>
    %62 = tpu.matmul %59, %61, %cst_47 {dimension_numbers = #tpu.dot_dimension_numbers<[1], [0], [0], [1], [0, 0, 1, 1], [], []>} : vector<320x4xbf16>, vector<4x128xbf16>, vector<320x128xf32> -> vector<320x128xf32>
    %63 = arith.addf %56, %62 : vector<320x128xf32>
    %c0_48 = arith.constant 0 : index
    %c0_49 = arith.constant 0 : index
    %64 = vector.load %arg4[%c0_48, %c0_49] : memref<320x128xf32, #tpu.memory_space<vmem>>, vector<320x128xf32>
    tpu.vector_store %arg4[%c0_48, %c0_49], %63 {strides = array<i32>} : memref<320x128xf32, #tpu.memory_space<vmem>>, vector<320x128xf32>,
    %c0_50 = arith.constant 0 : index
    %c0_51 = arith.constant 0 : index
    %65 = vector.load %arg3[%c0_50, %c0_51] : memref<320x1xf32, #tpu.memory_space<vmem>>, vector<320x1xf32>
    %66 = vector.broadcast %65 : vector<320x1xf32> to vector<320x128xf32>
    %67 = arith.mulf %63, %66 : vector<320x128xf32>
    %cst_52 = arith.constant dense<0.000000e+00> : vector<128xf32>
    %68 = vector.multi_reduction <add>, %67, %cst_52 [0] : vector<320x128xf32> to vector<128xf32>
    %69 = vector.shape_cast %68 : vector<128xf32> to vector<1x128xf32>
    %c0_53 = arith.constant 0 : index
    %c0_54 = arith.constant 0 : index
    %c0_55 = arith.constant 0 : index
    %70 = vector.load %arg5[%c0_53, %c0_54, %c0_55] : memref<1x2x128xf32, #tpu.memory_space<vmem>>, vector<1x1x128xf32>
    %71 = vector.shape_cast %70 : vector<1x1x128xf32> to vector<1x128xf32>
    %72 = vector.shape_cast %69 : vector<1x128xf32> to vector<1x1x128xf32>
    tpu.vector_store %arg5[%c0_53, %c0_54, %c0_55], %72 {strides = array<i32>} : memref<1x2x128xf32, #tpu.memory_space<vmem>>, vector<1x1x128xf32>,
    %73 = arith.mulf %67, %67 : vector<320x128xf32>
    %cst_56 = arith.constant dense<0.000000e+00> : vector<128xf32>
    %74 = vector.multi_reduction <add>, %73, %cst_56 [0] : vector<320x128xf32> to vector<128xf32>
    %75 = vector.shape_cast %74 : vector<128xf32> to vector<1x128xf32>
    %c0_57 = arith.constant 0 : index
    %c1_58 = arith.constant 1 : index
    %c0_59 = arith.constant 0 : index
    %76 = vector.load %arg5[%c0_57, %c1_58, %c0_59] : memref<1x2x128xf32, #tpu.memory_space<vmem>>, vector<1x1x128xf32>
    %77 = vector.shape_cast %76 : vector<1x1x128xf32> to vector<1x128xf32>
    %78 = vector.shape_cast %75 : vector<1x128xf32> to vector<1x1x128xf32>
    tpu.vector_store %arg5[%c0_57, %c1_58, %c0_59], %78 {strides = array<i32>} : memref<1x2x128xf32, #tpu.memory_space<vmem>>, vector<1x1x128xf32>,
    return
  }
  func.func @transform_0(%arg0: i32) -> (i32, i32, i32) {
    %c0_i32 = arith.constant 0 : i32
    %c0_i32_0 = arith.constant 0 : i32
    %c0_i32_1 = arith.constant 0 : i32
    return %arg0, %c0_i32, %c0_i32_0 : i32, i32, i32
  }
  func.func @transform_1(%arg0: i32) -> (i32, i32, i32) {
    %c0_i32 = arith.constant 0 : i32
    %c0_i32_0 = arith.constant 0 : i32
    %c0_i32_1 = arith.constant 0 : i32
    %c0_i32_2 = arith.constant 0 : i32
    return %c0_i32, %c0_i32_0, %c0_i32_1 : i32, i32, i32
  }
  func.func @transform_2(%arg0: i32) -> (i32, i32) {
    %c0_i32 = arith.constant 0 : i32
    %c0_i32_0 = arith.constant 0 : i32
    %c0_i32_1 = arith.constant 0 : i32
    return %c0_i32, %c0_i32_0 : i32, i32
  }
  func.func @transform_3(%arg0: i32) -> (i32, i32) {
    %c0_i32 = arith.constant 0 : i32
    %c0_i32_0 = arith.constant 0 : i32
    return %arg0, %c0_i32 : i32, i32
  }
  func.func @transform_4(%arg0: i32) -> (i32, i32, i32) {
    %c0_i32 = arith.constant 0 : i32
    %c0_i32_0 = arith.constant 0 : i32
    %c0_i32_1 = arith.constant 0 : i32
    return %arg0, %c0_i32, %c0_i32_0 : i32, i32, i32
  }
}

</mosaic_0001>

<llo_original>
// kernel: tpu_custom_call.1
$region0: #{tpu_custom_call.1}
  #allocation0 [shape = 'u32[]', space=smem, size = 0x4, offset = 0x4, fixed_abs, tag = 'smem constant byte address 0x4 - core index']
  #allocation1 [shape = 'u32[144,128]{1,0:T(1,128)}', space=vmem, size = 0x12000, scoped, tag = 'internal scratch']
  %s0 = inlined_call_operand.vmem [shape: f32[2,362,4], index: 0, kind: input, shape index: {}]
  %s1 = inlined_call_operand.vmem [shape: bf16[9,4,128], index: 1, kind: input, shape index: {}]
  %s2 = inlined_call_operand.vmem [shape: f32[320,1], index: 2, kind: input, shape index: {}]
  %s3 = inlined_call_operand.hbm [shape: f32[640,128], index: 3, kind: output, shape index: {0}]
  %s4 = inlined_call_operand.hbm [shape: f32[2,2,128], index: 4, kind: output, shape index: {1}]
  %5 = xla_tuple %s3, %s4
  %s6 = sld [smem:[#allocation0]]
  $region53: #{tpu_custom_call.1} parent=0
    _
  %s8 = ssub.s32 1, %s6
  %s9 = scalar_select 0, %s8, %s6
  $region1: #{tpu_custom_call.1} parent=0
    #allocation2 [shape = 'u8[327680]{0}', space=vmem, size = 0x50000, scoped, tag = 'output window, operand 0']
    #allocation3 [shape = 's32[2]{0}', space=sflag, size = 0x8, scoped, tag = 'scoped memory for tpu_custom_call.1']
    #allocation4 [shape = 'u8[2048]{0}', space=vmem, size = 0x800, scoped, tag = 'output window, operand 1']
    #allocation5 [shape = 's32[2]{0}', space=sflag, size = 0x8, scoped, tag = 'scoped memory for tpu_custom_call.1']
    %10 = vsyncpa [#allocation3], 0
    %s11 = scalar_lea.sflag [#allocation3], 1
    %12 = vsyncpa %s11, 0
    %13 = vsyncpa [#allocation5], 0
    %s14 = scalar_lea.sflag [#allocation5], 1
    %15 = vsyncpa %s14, 0
    loop: start=0, step=1, limit=4
    $region2: #{tpu_custom_call.1} parent=1 // loop_pre_header
      _
    $region3: #{tpu_custom_call.1} parent=1 // loop_header
      %s17 = sphi 0, %s21
      %p18 = scmp.ge.s32.totalorder %s17, 4
      %s27 = sphi 0, %s29
      %s30 = sphi 0, %s27
      %s31 = sphi 0, %s30
      %s47 = sphi 0, %s31
      %s51 = sphi 0, %s51
      %s53 = sphi 0, %s51
      %s54 = sphi 0, %s53
      %s68 = sphi 0, %s54
      %s72 = sphi 0, %s72
      %s74 = sphi 0, %s72
      %s75 = sphi 0, %s74
      %s89 = sphi 0, %s75
      %s95 = sphi 0, %s97
      %s98 = sphi 0, %s95
      %s99 = sphi 0, %s98
      %s115 = sphi 0, %s99
      %s121 = sphi 0, %s123
      %s124 = sphi 0, %s121
      %s125 = sphi 0, %s124
      %s141 = sphi 0, %s125
    $region4: #{tpu_custom_call.1} parent=1 // loop_header_branch
      %20 = sbr.rel (%p18) target = $region8
    $region5: #{tpu_custom_call.1} parent=1 // loop_body
      %s22 = ssub.s32 %s17, 1
      %s23 = ssub.s32 %s17, 2
      %s24 = sadd.s32 %s17, 1
      %s25 = ssub.s32 %s17, %s24
      %p26 = scmp.eq.s32.totalorder %s25, 0
      %s28 = sadd.s32 %s27, 1
      %s29 = scalar_select %p26, %s27, %s28
      %p32 = pneg %p26
      %p33 = scmp.eq.s32.totalorder %s17, 1
      %p34 = por %p32, %p33
      %p35 = scmp.ne.s32.totalorder %s27, %s30
      %p36 = scmp.eq.s32.totalorder %s17, 0
      %p37 = por %p35, %p36
      %p38 = scmp.ne.s32.totalorder %s27, %s30
      %p39 = scmp.eq.s32.totalorder %s22, 1
      %p40 = por %p38, %p39
      %p41 = scmp.ne.s32.totalorder %s30, %s31
      %p42 = scmp.eq.s32.totalorder %s22, 0
      %p43 = por %p41, %p42
      %p44 = scmp.ne.s32.totalorder %s30, %s31
      %p45 = scmp.eq.s32.totalorder %s23, 1
      %p46 = por %p44, %p45
      %p48 = scmp.ne.s32.totalorder %s31, %s47
      %p49 = scmp.eq.s32.totalorder %s23, 0
      %p50 = por %p48, %p49
      %s52 = sadd.s32 %s51, 1
      %p55 = scmp.eq.s32.totalorder %s17, 1
      %p56 = scmp.ne.s32.totalorder %s51, %s53
      %p57 = scmp.eq.s32.totalorder %s17, 0
      %p58 = por %p56, %p57
      %p59 = scmp.ne.s32.totalorder %s51, %s53
      %p60 = scmp.eq.s32.totalorder %s22, 1
      %p61 = por %p59, %p60
      %p62 = scmp.ne.s32.totalorder %s53, %s54
      %p63 = scmp.eq.s32.totalorder %s22, 0
      %p64 = por %p62, %p63
      %p65 = scmp.ne.s32.totalorder %s53, %s54
      %p66 = scmp.eq.s32.totalorder %s23, 1
      %p67 = por %p65, %p66
      %p69 = scmp.ne.s32.totalorder %s54, %s68
      %p70 = scmp.eq.s32.totalorder %s23, 0
      %p71 = por %p69, %p70
      %s73 = sadd.s32 %s72, 1
      %p76 = scmp.eq.s32.totalorder %s17, 1
      %p77 = scmp.ne.s32.totalorder %s72, %s74
      %p78 = scmp.eq.s32.totalorder %s17, 0
      %p79 = por %p77, %p78
      %p80 = scmp.ne.s32.totalorder %s72, %s74
      %p81 = scmp.eq.s32.totalorder %s22, 1
      %p82 = por %p80, %p81
      %p83 = scmp.ne.s32.totalorder %s74, %s75
      %p84 = scmp.eq.s32.totalorder %s22, 0
      %p85 = por %p83, %p84
      %p86 = scmp.ne.s32.totalorder %s74, %s75
      %p87 = scmp.eq.s32.totalorder %s23, 1
      %p88 = por %p86, %p87
      %p90 = scmp.ne.s32.totalorder %s75, %s89
      %p91 = scmp.eq.s32.totalorder %s23, 0
      %p92 = por %p90, %p91
      %s93 = ssub.s32 %s17, %s24
      %p94 = scmp.eq.s32.totalorder %s93, 0
      %s96 = sadd.s32 %s95, 1
      %s97 = scalar_select %p94, %s95, %s96
      %p100 = pneg %p94
      %p101 = scmp.eq.s32.totalorder %s17, 1
      %p102 = por %p100, %p101
      %p103 = scmp.ne.s32.totalorder %s95, %s98
      %p104 = scmp.eq.s32.totalorder %s17, 0
      %p105 = por %p103, %p104
      %p106 = scmp.ne.s32.totalorder %s95, %s98
      %p107 = scmp.eq.s32.totalorder %s22, 1
      %p108 = por %p106, %p107
      %p109 = scmp.ne.s32.totalorder %s98, %s99
      %p110 = scmp.eq.s32.totalorder %s22, 0
      %p111 = por %p109, %p110
      %p112 = scmp.ne.s32.totalorder %s98, %s99
      %p113 = scmp.eq.s32.totalorder %s23, 1
      %p114 = por %p112, %p113
      %p116 = scmp.ne.s32.totalorder %s99, %s115
      %p117 = scmp.eq.s32.totalorder %s23, 0
      %p118 = por %p116, %p117
      %s119 = ssub.s32 %s17, %s24
      %p120 = scmp.eq.s32.totalorder %s119, 0
      %s122 = sadd.s32 %s121, 1
      %s123 = scalar_select %p120, %s121, %s122
      %p126 = pneg %p120
      %p127 = scmp.eq.s32.totalorder %s17, 1
      %p128 = por %p126, %p127
      %p129 = scmp.ne.s32.totalorder %s121, %s124
      %p130 = scmp.eq.s32.totalorder %s17, 0
      %p131 = por %p129, %p130
      %p132 = scmp.ne.s32.totalorder %s121, %s124
      %p133 = scmp.eq.s32.totalorder %s22, 1
      %p134 = por %p132, %p133
      %p135 = scmp.ne.s32.totalorder %s124, %s125
      %p136 = scmp.eq.s32.totalorder %s22, 0
      %p137 = por %p135, %p136
      %p138 = scmp.ne.s32.totalorder %s124, %s125
      %p139 = scmp.eq.s32.totalorder %s23, 1
      %p140 = por %p138, %p139
      %p142 = scmp.ne.s32.totalorder %s125, %s141
      %p143 = scmp.eq.s32.totalorder %s23, 0
      %p144 = por %p142, %p143
      %p145 = scmp.le.s32.totalorder 1, %s17
      %p146 = scmp.lt.s32.totalorder %s17, 3
      %p147 = pnand %p145, %p146
      %p148 = pneg %p147
      // Predicated region
      $region9: #{tpu_custom_call.1} parent=5 // pred_check
        _
      $region10: #{tpu_custom_call.1} parent=5 // pred_check_branch
        %150 = sbr.rel (%p147) target = $region12
      $region11: #{tpu_custom_call.1} parent=5 // pred_region
        %s151 = ssub.s32 %s17, 1
        // Predicated region
        $region13: #{tpu_custom_call.1} parent=11 // pred_check
          %p152 = pneg %p64
        $region14: #{tpu_custom_call.1} parent=11 // pred_check_branch
          %154 = sbr.rel (%p152) target = $region16
        $region15: #{tpu_custom_call.1} parent=11 // pred_region
          _
        $region16: #{tpu_custom_call.1} parent=11 // pred_fallthru
          _
        // Predicated region
        $region17: #{tpu_custom_call.1} parent=11 // pred_check
          %p155 = pneg %p85
        $region18: #{tpu_custom_call.1} parent=11 // pred_check_branch
          %157 = sbr.rel (%p155) target = $region20
        $region19: #{tpu_custom_call.1} parent=11 // pred_region
          _
        $region20: #{tpu_custom_call.1} parent=11 // pred_fallthru
          _
      $region12: #{tpu_custom_call.1} parent=5 // pred_fallthru
        _
      %p158 = scmp.lt.s32.totalorder %s17, 2
      // Predicated region
      $region21: #{tpu_custom_call.1} parent=5 // pred_check
        %p159 = pneg %p158
      $region22: #{tpu_custom_call.1} parent=5 // pred_check_branch
        %161 = sbr.rel (%p159) target = $region24
      $region23: #{tpu_custom_call.1} parent=5 // pred_region
        // Predicated region
        $region25: #{tpu_custom_call.1} parent=23 // pred_check
          %p162 = pneg %p37
        $region26: #{tpu_custom_call.1} parent=23 // pred_check_branch
          %164 = sbr.rel (%p162) target = $region28
        $region27: #{tpu_custom_call.1} parent=23 // pred_region
          %p165 = scmp.lt.s32.totalorder %s17, 1
          %s166 = scalar_select %p165, %s17, 1
          %s167 = smul.addr %s166, 46
          %s168 = smul.addr %s167, 8
          %s169 = scalar_lea.vmem %s0, %s168
        $region28: #{tpu_custom_call.1} parent=23 // pred_fallthru
          _
      $region24: #{tpu_custom_call.1} parent=5 // pred_fallthru
        _
      %p170 = scmp.le.s32.totalorder 1, %s17
      %p171 = scmp.lt.s32.totalorder %s17, 3
      %p172 = pnand %p170, %p171
      %p173 = pneg %p172
      // Predicated region
      $region29: #{tpu_custom_call.1} parent=5 // pred_check
        _
      $region30: #{tpu_custom_call.1} parent=5 // pred_check_branch
        %175 = sbr.rel (%p172) target = $region32
      $region31: #{tpu_custom_call.1} parent=5 // pred_region
        %s176 = ssub.s32 %s17, 1
        %p177 = scmp.lt.s32.totalorder %s22, 1
        %s178 = scalar_select %p177, %s22, 1
        %s179 = smul.addr %s178, 46
        %s180 = smul.addr %s179, 8
        %s181 = scalar_lea.vmem %s0, %s180
        %p182 = pneg %p43
        %p183 = pneg %p40
        %p184 = pneg %p64
        %p185 = pneg %p61
        %p186 = pneg %p85
        %p187 = pneg %p82
        %p188 = pneg %p111
        %p189 = pneg %p108
        %s190 = sand.u32 %s98, 1
        %s191 = scalar_lea.sflag [#allocation3], %s190
        %s192 = sand.u32 %s98, 1
        %s193 = smul.addr %s192, 320
        %s194 = scalar_lea.vmem [#allocation2], %s193
        %p195 = pneg %p137
        %p196 = pneg %p134
        %s197 = sand.u32 %s124, 1
        %s198 = scalar_lea.sflag [#allocation5], %s197
        %s199 = sand.u32 %s124, 1
        %s200 = smul.addr %s199, 2
        %s201 = scalar_lea.vmem [#allocation4], %s200
        %p202 = scmp.lt.s32.totalorder %s22, 1
        %s203 = scalar_select %p202, %s22, 1
        %s204 = smul.addr %s203, 46
        %s205 = smul.addr %s204, 8
        %s206 = scalar_lea.vmem %s0, %s205
        %s207 = smul.u32 40, %s22
        %v209 = vld [vmem:[%s206] sm:$0xff]
        %v210 = vld [vmem:[%s206 + $0x8] sm:$0xff]
        %v211 = vld [vmem:[%s206 + $0x10] sm:$0xff]
        %v212 = vld [vmem:[%s206 + $0x18] sm:$0xff]
        %v213 = vld [vmem:[%s206 + $0x20] sm:$0xff]
        %v214 = vld [vmem:[%s206 + $0x28] sm:$0xff]
        %v215 = vld [vmem:[%s206 + $0x30] sm:$0xff]
        %v216 = vld [vmem:[%s206 + $0x38] sm:$0xff]
        %v217 = vld [vmem:[%s206 + $0x40] sm:$0xff]
        %v218 = vld [vmem:[%s206 + $0x48] sm:$0xff]
        %v219 = vld [vmem:[%s206 + $0x50] sm:$0xff]
        %v220 = vld [vmem:[%s206 + $0x58] sm:$0xff]
        %v221 = vld [vmem:[%s206 + $0x60] sm:$0xff]
        %v222 = vld [vmem:[%s206 + $0x68] sm:$0xff]
        %v223 = vld [vmem:[%s206 + $0x70] sm:$0xff]
        %v224 = vld [vmem:[%s206 + $0x78] sm:$0xff]
        %v225 = vld [vmem:[%s206 + $0x80] sm:$0xff]
        %v226 = vld [vmem:[%s206 + $0x88] sm:$0xff]
        %v227 = vld [vmem:[%s206 + $0x90] sm:$0xff]
        %v228 = vld [vmem:[%s206 + $0x98] sm:$0xff]
        %v229 = vld [vmem:[%s206 + $0xa0] sm:$0xff]
        %v230 = vld [vmem:[%s206 + $0xa8] sm:$0xff]
        %v231 = vld [vmem:[%s206 + $0xb0] sm:$0xff]
        %v232 = vld [vmem:[%s206 + $0xb8] sm:$0xff]
        %v233 = vld [vmem:[%s206 + $0xc0] sm:$0xff]
        %v234 = vld [vmem:[%s206 + $0xc8] sm:$0xff]
        %v235 = vld [vmem:[%s206 + $0xd0] sm:$0xff]
        %v236 = vld [vmem:[%s206 + $0xd8] sm:$0xff]
        %v237 = vld [vmem:[%s206 + $0xe0] sm:$0xff]
        %v238 = vld [vmem:[%s206 + $0xe8] sm:$0xff]
        %v239 = vld [vmem:[%s206 + $0xf0] sm:$0xff]
        %v240 = vld [vmem:[%s206 + $0xf8] sm:$0xff]
        %v241 = vld [vmem:[%s206 + $0x100] sm:$0xff]
        %v242 = vld [vmem:[%s206 + $0x108] sm:$0xff]
        %v243 = vld [vmem:[%s206 + $0x110] sm:$0xff]
        %v244 = vld [vmem:[%s206 + $0x118] sm:$0xff]
        %v245 = vld [vmem:[%s206 + $0x120] sm:$0xff]
        %v246 = vld [vmem:[%s206 + $0x128] sm:$0xff]
        %v247 = vld [vmem:[%s206 + $0x130] sm:$0xff]
        %v248 = vld [vmem:[%s206 + $0x138] sm:$0xff]
        %v249 = vpack.c.bf16 %v210, %v209
        %v250 = vpack.c.bf16 %v212, %v211
        %v251 = vpack.c.bf16 %v214, %v213
        %v252 = vpack.c.bf16 %v216, %v215
        %v253 = vpack.c.bf16 %v218, %v217
        %v254 = vpack.c.bf16 %v220, %v219
        %v255 = vpack.c.bf16 %v222, %v221
        %v256 = vpack.c.bf16 %v224, %v223
        %v257 = vpack.c.bf16 %v226, %v225
        %v258 = vpack.c.bf16 %v228, %v227
        %v259 = vpack.c.bf16 %v230, %v229
        %v260 = vpack.c.bf16 %v232, %v231
        %v261 = vpack.c.bf16 %v234, %v233
        %v262 = vpack.c.bf16 %v236, %v235
        %v263 = vpack.c.bf16 %v238, %v237
        %v264 = vpack.c.bf16 %v240, %v239
        %v265 = vpack.c.bf16 %v242, %v241
        %v266 = vpack.c.bf16 %v244, %v243
        %v267 = vpack.c.bf16 %v246, %v245
        %v268 = vpack.c.bf16 %v248, %v247
        %v269 = vld [vmem:[%s1] sm:$0x3]
        %v270 = vld [vmem:[%s206 + $0x1] sm:$0xff]
        %v271 = vld [vmem:[%s206 + $0x9] sm:$0xff]
        %v272 = vld [vmem:[%s206 + $0x11] sm:$0xff]
        %v273 = vld [vmem:[%s206 + $0x19] sm:$0xff]
        %v274 = vld [vmem:[%s206 + $0x21] sm:$0xff]
        %v275 = vld [vmem:[%s206 + $0x29] sm:$0xff]
        %v276 = vld [vmem:[%s206 + $0x31] sm:$0xff]
        %v277 = vld [vmem:[%s206 + $0x39] sm:$0xff]
        %v278 = vld [vmem:[%s206 + $0x41] sm:$0xff]
        %v279 = vld [vmem:[%s206 + $0x49] sm:$0xff]
        %v280 = vld [vmem:[%s206 + $0x51] sm:$0xff]
        %v281 = vld [vmem:[%s206 + $0x59] sm:$0xff]
        %v282 = vld [vmem:[%s206 + $0x61] sm:$0xff]
        %v283 = vld [vmem:[%s206 + $0x69] sm:$0xff]
        %v284 = vld [vmem:[%s206 + $0x71] sm:$0xff]
        %v285 = vld [vmem:[%s206 + $0x79] sm:$0xff]
        %v286 = vld [vmem:[%s206 + $0x81] sm:$0xff]
        %v287 = vld [vmem:[%s206 + $0x89] sm:$0xff]
        %v288 = vld [vmem:[%s206 + $0x91] sm:$0xff]
        %v289 = vld [vmem:[%s206 + $0x99] sm:$0xff]
        %v290 = vld [vmem:[%s206 + $0xa1] sm:$0xff]
        %v291 = vld [vmem:[%s206 + $0xa9] sm:$0xff]
        %v292 = vld [vmem:[%s206 + $0xb1] sm:$0xff]
        %v293 = vld [vmem:[%s206 + $0xb9] sm:$0xff]
        %v294 = vld [vmem:[%s206 + $0xc1] sm:$0xff]
        %v295 = vld [vmem:[%s206 + $0xc9] sm:$0xff]
        %v296 = vld [vmem:[%s206 + $0xd1] sm:$0xff]
        %v297 = vld [vmem:[%s206 + $0xd9] sm:$0xff]
        %v298 = vld [vmem:[%s206 + $0xe1] sm:$0xff]
        %v299 = vld [vmem:[%s206 + $0xe9] sm:$0xff]
        %v300 = vld [vmem:[%s206 + $0xf1] sm:$0xff]
        %v301 = vld [vmem:[%s206 + $0xf9] sm:$0xff]
        %v302 = vld [vmem:[%s206 + $0x101] sm:$0xff]
        %v303 = vld [vmem:[%s206 + $0x109] sm:$0xff]
        %v304 = vld [vmem:[%s206 + $0x111] sm:$0xff]
        %v305 = vld [vmem:[%s206 + $0x119] sm:$0xff]
        %v306 = vld [vmem:[%s206 + $0x121] sm:$0xff]
        %v307 = vld [vmem:[%s206 + $0x129] sm:$0xff]
        %v308 = vld [vmem:[%s206 + $0x131] sm:$0xff]
        %v309 = vld [vmem:[%s206 + $0x139] sm:$0xff]
        %v310 = vpack.c.bf16 %v271, %v270
        %v311 = vpack.c.bf16 %v273, %v272
        %v312 = vpack.c.bf16 %v275, %v274
        %v313 = vpack.c.bf16 %v277, %v276
        %v314 = vpack.c.bf16 %v279, %v278
        %v315 = vpack.c.bf16 %v281, %v280
        %v316 = vpack.c.bf16 %v283, %v282
        %v317 = vpack.c.bf16 %v285, %v284
        %v318 = vpack.c.bf16 %v287, %v286
        %v319 = vpack.c.bf16 %v289, %v288
        %v320 = vpack.c.bf16 %v291, %v290
        %v321 = vpack.c.bf16 %v293, %v292
        %v322 = vpack.c.bf16 %v295, %v294
        %v323 = vpack.c.bf16 %v297, %v296
        %v324 = vpack.c.bf16 %v299, %v298
        %v325 = vpack.c.bf16 %v301, %v300
        %v326 = vpack.c.bf16 %v303, %v302
        %v327 = vpack.c.bf16 %v305, %v304
        %v328 = vpack.c.bf16 %v307, %v306
        %v329 = vpack.c.bf16 %v309, %v308
        %s330 = scalar_lea.vmem %s1, 2
        %v331 = vld [vmem:[%s330] sm:$0x3]
        %vm332 = vcmask 31744
        %v334 = vsel %vm332, %v310, 0
        %v337 = vsel %vm332, %v311, 0
        %v340 = vsel %vm332, %v312, 0
        %v343 = vsel %vm332, %v313, 0
        %v346 = vsel %vm332, %v314, 0
        %v349 = vsel %vm332, %v315, 0
        %v352 = vsel %vm332, %v316, 0
        %v355 = vsel %vm332, %v317, 0
        %v358 = vsel %vm332, %v318, 0
        %v361 = vsel %vm332, %v319, 0
        %v364 = vsel %vm332, %v320, 0
        %v367 = vsel %vm332, %v321, 0
        %v370 = vsel %vm332, %v322, 0
        %v373 = vsel %vm332, %v323, 0
        %v376 = vsel %vm332, %v324, 0
        %v379 = vsel %vm332, %v325, 0
        %v382 = vsel %vm332, %v326, 0
        %v385 = vsel %vm332, %v327, 0
        %v388 = vsel %vm332, %v328, 0
        %v391 = vsel %vm332, %v329, 0
        %vm393 = vcmask 1041408
        %v395 = vsel %vm393, %v331, 0
        %397 = vmatprep.subr.bf16.mxu0 0
        %398 = vmatpush1.bf16.msra.mxu0 %v395
        %399 = vmatprep.subr.bf16.mxu0 0
        %400 = vmatpush1.bf16.msra.mxu0 0
        %401 = vmatprep.subr.bf16.mxu0 0
        %402 = vmatpush1.bf16.msra.mxu0 0
        %403 = vmatprep.subr.bf16.mxu0 0
        %404 = vmatpush1.bf16.msra.mxu0 0
        %405 = vmatprep.subr.bf16.mxu0 0
        %406 = vmatpush1.bf16.msra.mxu0 0
        %407 = vmatprep.subr.bf16.mxu0 0
        %408 = vmatpush1.bf16.msra.mxu0 0
        %409 = vmatprep.subr.bf16.mxu0 0
        %410 = vmatpush1.bf16.msra.mxu0 0
        %411 = vmatprep.subr.bf16.mxu0 0
        %412 = vmatpush1.bf16.msra.mxu0 0
        %413 = vmatprep.subr.bf16.mxu0 0
        %414 = vmatpush1.bf16.msra.mxu0 0
        %415 = vmatprep.subr.bf16.mxu0 0
        %416 = vmatpush1.bf16.msra.mxu0 0
        %417 = vmatprep.subr.bf16.mxu0 0
        %418 = vmatpush1.bf16.msra.mxu0 0
        %419 = vmatprep.subr.bf16.mxu0 0
        %420 = vmatpush1.bf16.msra.mxu0 0
        %421 = vmatprep.subr.bf16.mxu0 0
        %422 = vmatpush1.bf16.msra.mxu0 0
        %423 = vmatprep.subr.bf16.mxu0 0
        %424 = vmatpush1.bf16.msra.mxu0 0
        %425 = vmatprep.subr.bf16.mxu0 0
        %426 = vmatpush1.bf16.msra.mxu0 0
        %427 = vmatprep.subr.bf16.mxu0 0
        %428 = vmatpush1.bf16.msra.mxu0 0
        %429 = vmatprep.mubr.bf16.mxu0 0
        %430 = vmatmul.mubr.bf16.gmra.mrb[0].mxu0 %v334
        %v431 = vpop.f32.mrb[0].mxu0
        %v432 = vadd.f32 0.0, %v431
        %v433 = vpop.f32.mrb[0].mxu0
        %v434 = vpop.f32.mrb[0].mxu0
        %v435 = vadd.f32 0.0, %v434
        %v436 = vpop.f32.mrb[0].mxu0
        %437 = vmatprep.mubr.bf16.mxu0 0
        %438 = vmatmul.mubr.bf16.gmra.mrb[0].mxu0 %v337
        %v439 = vpop.f32.mrb[0].mxu0
        %v440 = vadd.f32 0.0, %v439
        %v441 = vpop.f32.mrb[0].mxu0
        %v442 = vpop.f32.mrb[0].mxu0
        %v443 = vadd.f32 0.0, %v442
        %v444 = vpop.f32.mrb[0].mxu0
        %445 = vmatprep.mubr.bf16.mxu0 0
        %446 = vmatmul.mubr.bf16.gmra.mrb[0].mxu0 %v340
        %v447 = vpop.f32.mrb[0].mxu0
        %v448 = vadd.f32 0.0, %v447
        %v449 = vpop.f32.mrb[0].mxu0
        %v450 = vpop.f32.mrb[0].mxu0
        %v451 = vadd.f32 0.0, %v450
        %v452 = vpop.f32.mrb[0].mxu0
        %453 = vmatprep.mubr.bf16.mxu0 0
        %454 = vmatmul.mubr.bf16.gmra.mrb[0].mxu0 %v343
        %v455 = vpop.f32.mrb[0].mxu0
        %v456 = vadd.f32 0.0, %v455
        %v457 = vpop.f32.mrb[0].mxu0
        %v458 = vpop.f32.mrb[0].mxu0
        %v459 = vadd.f32 0.0, %v458
        %v460 = vpop.f32.mrb[0].mxu0
        %461 = vmatprep.mubr.bf16.mxu0 0
        %462 = vmatmul.mubr.bf16.gmra.mrb[0].mxu0 %v346
        %v463 = vpop.f32.mrb[0].mxu0
        %v464 = vadd.f32 0.0, %v463
        %v465 = vpop.f32.mrb[0].mxu0
        %v466 = vpop.f32.mrb[0].mxu0
        %v467 = vadd.f32 0.0, %v466
        %v468 = vpop.f32.mrb[0].mxu0
        %469 = vmatprep.mubr.bf16.mxu0 0
        %470 = vmatmul.mubr.bf16.gmra.mrb[0].mxu0 %v349
        %v471 = vpop.f32.mrb[0].mxu0
        %v472 = vadd.f32 0.0, %v471
        %v473 = vpop.f32.mrb[0].mxu0
        %v474 = vpop.f32.mrb[0].mxu0
        %v475 = vadd.f32 0.0, %v474
        %v476 = vpop.f32.mrb[0].mxu0
        %477 = vmatprep.mubr.bf16.mxu0 0
        %478 = vmatmul.mubr.bf16.gmra.mrb[0].mxu0 %v352
        %v479 = vpop.f32.mrb[0].mxu0
        %v480 = vadd.f32 0.0, %v479
        %v481 = vpop.f32.mrb[0].mxu0
        %v482 = vpop.f32.mrb[0].mxu0
        %v483 = vadd.f32 0.0, %v482
        %v484 = vpop.f32.mrb[0].mxu0
        %485 = vmatprep.mubr.bf16.mxu0 0
        %486 = vmatmul.mubr.bf16.gmra.mrb[0].mxu0 %v355
        %v487 = vpop.f32.mrb[0].mxu0
        %v488 = vadd.f32 0.0, %v487
        %v489 = vpop.f32.mrb[0].mxu0
        %v490 = vpop.f32.mrb[0].mxu0
        %v491 = vadd.f32 0.0, %v490
        %v492 = vpop.f32.mrb[0].mxu0
        %493 = vmatprep.mubr.bf16.mxu0 0
        %494 = vmatmul.mubr.bf16.gmra.mrb[0].mxu0 %v358
        %v495 = vpop.f32.mrb[0].mxu0
        %v496 = vadd.f32 0.0, %v495
        %v497 = vpop.f32.mrb[0].mxu0
        %v498 = vpop.f32.mrb[0].mxu0
        %v499 = vadd.f32 0.0, %v498
        %v500 = vpop.f32.mrb[0].mxu0
        %501 = vmatprep.mubr.bf16.mxu0 0
        %502 = vmatmul.mubr.bf16.gmra.mrb[0].mxu0 %v361
        %v503 = vpop.f32.mrb[0].mxu0
        %v504 = vadd.f32 0.0, %v503
        %v505 = vpop.f32.mrb[0].mxu0
        %v506 = vpop.f32.mrb[0].mxu0
        %v507 = vadd.f32 0.0, %v506
        %v508 = vpop.f32.mrb[0].mxu0
        %509 = vmatprep.mubr.bf16.mxu0 0
        %510 = vmatmul.mubr.bf16.gmra.mrb[0].mxu0 %v364
        %v511 = vpop.f32.mrb[0].mxu0
        %v512 = vadd.f32 0.0, %v511
        %v513 = vpop.f32.mrb[0].mxu0
        %v514 = vpop.f32.mrb[0].mxu0
        %v515 = vadd.f32 0.0, %v514
        %v516 = vpop.f32.mrb[0].mxu0
        %517 = vmatprep.mubr.bf16.mxu0 0
        %518 = vmatmul.mubr.bf16.gmra.mrb[0].mxu0 %v367
        %v519 = vpop.f32.mrb[0].mxu0
        %v520 = vadd.f32 0.0, %v519
        %v521 = vpop.f32.mrb[0].mxu0
        %v522 = vpop.f32.mrb[0].mxu0
        %v523 = vadd.f32 0.0, %v522
        %v524 = vpop.f32.mrb[0].mxu0
        %525 = vmatprep.mubr.bf16.mxu0 0
        %526 = vmatmul.mubr.bf16.gmra.mrb[0].mxu0 %v370
        %v527 = vpop.f32.mrb[0].mxu0
        %v528 = vadd.f32 0.0, %v527
        %v529 = vpop.f32.mrb[0].mxu0
        %v530 = vpop.f32.mrb[0].mxu0
        %v531 = vadd.f32 0.0, %v530
        %v532 = vpop.f32.mrb[0].mxu0
        %533 = vmatprep.mubr.bf16.mxu0 0
        %534 = vmatmul.mubr.bf16.gmra.mrb[0].mxu0 %v373
        %v535 = vpop.f32.mrb[0].mxu0
        %v536 = vadd.f32 0.0, %v535
        %v537 = vpop.f32.mrb[0].mxu0
        %v538 = vpop.f32.mrb[0].mxu0
        %v539 = vadd.f32 0.0, %v538
        %v540 = vpop.f32.mrb[0].mxu0
        %541 = vmatprep.mubr.bf16.mxu0 0
        %542 = vmatmul.mubr.bf16.gmra.mrb[0].mxu0 %v376
        %v543 = vpop.f32.mrb[0].mxu0
        %v544 = vadd.f32 0.0, %v543
        %v545 = vpop.f32.mrb[0].mxu0
        %v546 = vpop.f32.mrb[0].mxu0
        %v547 = vadd.f32 0.0, %v546
        %v548 = vpop.f32.mrb[0].mxu0
        %549 = vmatprep.mubr.bf16.mxu0 0
        %550 = vmatmul.mubr.bf16.gmra.mrb[0].mxu0 %v379
        %v551 = vpop.f32.mrb[0].mxu0
        %v552 = vadd.f32 0.0, %v551
        %v553 = vpop.f32.mrb[0].mxu0
        %v554 = vpop.f32.mrb[0].mxu0
        %v555 = vadd.f32 0.0, %v554
        %v556 = vpop.f32.mrb[0].mxu0
        %557 = vmatprep.mubr.bf16.mxu0 0
        %558 = vmatmul.mubr.bf16.gmra.mrb[0].mxu0 %v382
        %v559 = vpop.f32.mrb[0].mxu0
        %v560 = vadd.f32 0.0, %v559
        %v561 = vpop.f32.mrb[0].mxu0
        %v562 = vpop.f32.mrb[0].mxu0
        %v563 = vadd.f32 0.0, %v562
        %v564 = vpop.f32.mrb[0].mxu0
        %565 = vmatprep.mubr.bf16.mxu0 0
        %566 = vmatmul.mubr.bf16.gmra.mrb[0].mxu0 %v385
        %v567 = vpop.f32.mrb[0].mxu0
        %v568 = vadd.f32 0.0, %v567
        %v569 = vpop.f32.mrb[0].mxu0
        %v570 = vpop.f32.mrb[0].mxu0
        %v571 = vadd.f32 0.0, %v570
        %v572 = vpop.f32.mrb[0].mxu0
        %573 = vmatprep.mubr.bf16.mxu0 0
        %574 = vmatmul.mubr.bf16.gmra.mrb[0].mxu0 %v388
        %v575 = vpop.f32.mrb[0].mxu0
        %v576 = vadd.f32 0.0, %v575
        %v577 = vpop.f32.mrb[0].mxu0
        %v578 = vpop.f32.mrb[0].mxu0
        %v579 = vadd.f32 0.0, %v578
        %v580 = vpop.f32.mrb[0].mxu0
        %581 = vmatprep.mubr.bf16.mxu0 0
        %582 = vmatmul.mubr.bf16.gmra.mrb[0].mxu0 %v391
        %v583 = vpop.f32.mrb[0].mxu0
        %v584 = vadd.f32 0.0, %v583
        %v585 = vpop.f32.mrb[0].mxu0
        %v586 = vpop.f32.mrb[0].mxu0
        %v587 = vadd.f32 0.0, %v586
        %v588 = vpop.f32.mrb[0].mxu0
        %589 = vdwg.mxu0
        %v591 = vsel %vm332, %v249, 0
        %v594 = vsel %vm332, %v250, 0
        %v597 = vsel %vm332, %v251, 0
        %v600 = vsel %vm332, %v252, 0
        %v603 = vsel %vm332, %v253, 0
        %v606 = vsel %vm332, %v254, 0
        %v609 = vsel %vm332, %v255, 0
        %v612 = vsel %vm332, %v256, 0
        %v615 = vsel %vm332, %v257, 0
        %v618 = vsel %vm332, %v258, 0
        %v621 = vsel %vm332, %v259, 0
        %v624 = vsel %vm332, %v260, 0
        %v627 = vsel %vm332, %v261, 0
        %v630 = vsel %vm332, %v262, 0
        %v633 = vsel %vm332, %v263, 0
        %v636 = vsel %vm332, %v264, 0
        %v639 = vsel %vm332, %v265, 0
        %v642 = vsel %vm332, %v266, 0
        %v645 = vsel %vm332, %v267, 0
        %v648 = vsel %vm332, %v268, 0
        %v651 = vsel %vm393, %v269, 0
        %653 = vmatprep.subr.bf16.mxu0 0
        %654 = vmatpush1.bf16.msra.mxu0 %v651
        %655 = vmatprep.subr.bf16.mxu0 0
        %656 = vmatpush1.bf16.msra.mxu0 0
        %657 = vmatprep.subr.bf16.mxu0 0
        %658 = vmatpush1.bf16.msra.mxu0 0
        %659 = vmatprep.subr.bf16.mxu0 0
        %660 = vmatpush1.bf16.msra.mxu0 0
        %661 = vmatprep.subr.bf16.mxu0 0
        %662 = vmatpush1.bf16.msra.mxu0 0
        %663 = vmatprep.subr.bf16.mxu0 0
        %664 = vmatpush1.bf16.msra.mxu0 0
        %665 = vmatprep.subr.bf16.mxu0 0
        %666 = vmatpush1.bf16.msra.mxu0 0
        %667 = vmatprep.subr.bf16.mxu0 0
        %668 = vmatpush1.bf16.msra.mxu0 0
        %669 = vmatprep.subr.bf16.mxu0 0
        %670 = vmatpush1.bf16.msra.mxu0 0
        %671 = vmatprep.subr.bf16.mxu0 0
        %672 = vmatpush1.bf16.msra.mxu0 0
        %673 = vmatprep.subr.bf16.mxu0 0
        %674 = vmatpush1.bf16.msra.mxu0 0
        %675 = vmatprep.subr.bf16.mxu0 0
        %676 = vmatpush1.bf16.msra.mxu0 0
        %677 = vmatprep.subr.bf16.mxu0 0
        %678 = vmatpush1.bf16.msra.mxu0 0
        %679 = vmatprep.subr.bf16.mxu0 0
        %680 = vmatpush1.bf16.msra.mxu0 0
        %681 = vmatprep.subr.bf16.mxu0 0
        %682 = vmatpush1.bf16.msra.mxu0 0
        %683 = vmatprep.subr.bf16.mxu0 0
        %684 = vmatpush1.bf16.msra.mxu0 0
        %685 = vmatprep.mubr.bf16.mxu0 0
        %686 = vmatmul.mubr.bf16.gmra.mrb[0].mxu0 %v591
        %v687 = vpop.f32.mrb[0].mxu0
        %v688 = vadd.f32 %v432, %v687
        %v689 = vpop.f32.mrb[0].mxu0
        %v690 = vpop.f32.mrb[0].mxu0
        %v691 = vadd.f32 %v435, %v690
        %v692 = vpop.f32.mrb[0].mxu0
        %693 = vmatprep.mubr.bf16.mxu0 0
        %694 = vmatmul.mubr.bf16.gmra.mrb[0].mxu0 %v594
        %v695 = vpop.f32.mrb[0].mxu0
        %v696 = vadd.f32 %v440, %v695
        %v697 = vpop.f32.mrb[0].mxu0
        %v698 = vpop.f32.mrb[0].mxu0
        %v699 = vadd.f32 %v443, %v698
        %v700 = vpop.f32.mrb[0].mxu0
        %701 = vmatprep.mubr.bf16.mxu0 0
        %702 = vmatmul.mubr.bf16.gmra.mrb[0].mxu0 %v597
        %v703 = vpop.f32.mrb[0].mxu0
        %v704 = vadd.f32 %v448, %v703
        %v705 = vpop.f32.mrb[0].mxu0
        %v706 = vpop.f32.mrb[0].mxu0
        %v707 = vadd.f32 %v451, %v706
        %v708 = vpop.f32.mrb[0].mxu0
        %709 = vmatprep.mubr.bf16.mxu0 0
        %710 = vmatmul.mubr.bf16.gmra.mrb[0].mxu0 %v600
        %v711 = vpop.f32.mrb[0].mxu0
        %v712 = vadd.f32 %v456, %v711
        %v713 = vpop.f32.mrb[0].mxu0
        %v714 = vpop.f32.mrb[0].mxu0
        %v715 = vadd.f32 %v459, %v714
        %v716 = vpop.f32.mrb[0].mxu0
        %717 = vmatprep.mubr.bf16.mxu0 0
        %718 = vmatmul.mubr.bf16.gmra.mrb[0].mxu0 %v603
        %v719 = vpop.f32.mrb[0].mxu0
        %v720 = vadd.f32 %v464, %v719
        %v721 = vpop.f32.mrb[0].mxu0
        %v722 = vpop.f32.mrb[0].mxu0
        %v723 = vadd.f32 %v467, %v722
        %v724 = vpop.f32.mrb[0].mxu0
        %725 = vmatprep.mubr.bf16.mxu0 0
        %726 = vmatmul.mubr.bf16.gmra.mrb[0].mxu0 %v606
        %v727 = vpop.f32.mrb[0].mxu0
        %v728 = vadd.f32 %v472, %v727
        %v729 = vpop.f32.mrb[0].mxu0
        %v730 = vpop.f32.mrb[0].mxu0
        %v731 = vadd.f32 %v475, %v730
        %v732 = vpop.f32.mrb[0].mxu0
        %733 = vmatprep.mubr.bf16.mxu0 0
        %734 = vmatmul.mubr.bf16.gmra.mrb[0].mxu0 %v609
        %v735 = vpop.f32.mrb[0].mxu0
        %v736 = vadd.f32 %v480, %v735
        %v737 = vpop.f32.mrb[0].mxu0
        %v738 = vpop.f32.mrb[0].mxu0
        %v739 = vadd.f32 %v483, %v738
        %v740 = vpop.f32.mrb[0].mxu0
        %741 = vmatprep.mubr.bf16.mxu0 0
        %742 = vmatmul.mubr.bf16.gmra.mrb[0].mxu0 %v612
        %v743 = vpop.f32.mrb[0].mxu0
        %v744 = vadd.f32 %v488, %v743
        %v745 = vpop.f32.mrb[0].mxu0
        %v746 = vpop.f32.mrb[0].mxu0
        %v747 = vadd.f32 %v491, %v746
        %v748 = vpop.f32.mrb[0].mxu0
        %749 = vmatprep.mubr.bf16.mxu0 0
        %750 = vmatmul.mubr.bf16.gmra.mrb[0].mxu0 %v615
        %v751 = vpop.f32.mrb[0].mxu0
        %v752 = vadd.f32 %v496, %v751
        %v753 = vpop.f32.mrb[0].mxu0
        %v754 = vpop.f32.mrb[0].mxu0
        %v755 = vadd.f32 %v499, %v754
        %v756 = vpop.f32.mrb[0].mxu0
        %757 = vmatprep.mubr.bf16.mxu0 0
        %758 = vmatmul.mubr.bf16.gmra.mrb[0].mxu0 %v618
        %v759 = vpop.f32.mrb[0].mxu0
        %v760 = vadd.f32 %v504, %v759
        %v761 = vpop.f32.mrb[0].mxu0
        %v762 = vpop.f32.mrb[0].mxu0
        %v763 = vadd.f32 %v507, %v762
        %v764 = vpop.f32.mrb[0].mxu0
        %765 = vmatprep.mubr.bf16.mxu0 0
        %766 = vmatmul.mubr.bf16.gmra.mrb[0].mxu0 %v621
        %v767 = vpop.f32.mrb[0].mxu0
        %v768 = vadd.f32 %v512, %v767
        %v769 = vpop.f32.mrb[0].mxu0
        %v770 = vpop.f32.mrb[0].mxu0
        %v771 = vadd.f32 %v515, %v770
        %v772 = vpop.f32.mrb[0].mxu0
        %773 = vmatprep.mubr.bf16.mxu0 0
        %774 = vmatmul.mubr.bf16.gmra.mrb[0].mxu0 %v624
        %v775 = vpop.f32.mrb[0].mxu0
        %v776 = vadd.f32 %v520, %v775
        %v777 = vpop.f32.mrb[0].mxu0
        %v778 = vpop.f32.mrb[0].mxu0
        %v779 = vadd.f32 %v523, %v778
        %v780 = vpop.f32.mrb[0].mxu0
        %781 = vmatprep.mubr.bf16.mxu0 0
        %782 = vmatmul.mubr.bf16.gmra.mrb[0].mxu0 %v627
        %v783 = vpop.f32.mrb[0].mxu0
        %v784 = vadd.f32 %v528, %v783
        %v785 = vpop.f32.mrb[0].mxu0
        %v786 = vpop.f32.mrb[0].mxu0
        %v787 = vadd.f32 %v531, %v786
        %v788 = vpop.f32.mrb[0].mxu0
        %789 = vmatprep.mubr.bf16.mxu0 0
        %790 = vmatmul.mubr.bf16.gmra.mrb[0].mxu0 %v630
        %v791 = vpop.f32.mrb[0].mxu0
        %v792 = vadd.f32 %v536, %v791
        %v793 = vpop.f32.mrb[0].mxu0
        %v794 = vpop.f32.mrb[0].mxu0
        %v795 = vadd.f32 %v539, %v794
        %v796 = vpop.f32.mrb[0].mxu0
        %797 = vmatprep.mubr.bf16.mxu0 0
        %798 = vmatmul.mubr.bf16.gmra.mrb[0].mxu0 %v633
        %v799 = vpop.f32.mrb[0].mxu0
        %v800 = vadd.f32 %v544, %v799
        %v801 = vpop.f32.mrb[0].mxu0
        %v802 = vpop.f32.mrb[0].mxu0
        %v803 = vadd.f32 %v547, %v802
        %v804 = vpop.f32.mrb[0].mxu0
        %805 = vmatprep.mubr.bf16.mxu0 0
        %806 = vmatmul.mubr.bf16.gmra.mrb[0].mxu0 %v636
        %v807 = vpop.f32.mrb[0].mxu0
        %v808 = vadd.f32 %v552, %v807
        %v809 = vpop.f32.mrb[0].mxu0
        %v810 = vpop.f32.mrb[0].mxu0
        %v811 = vadd.f32 %v555, %v810
        %v812 = vpop.f32.mrb[0].mxu0
        %813 = vmatprep.mubr.bf16.mxu0 0
        %814 = vmatmul.mubr.bf16.gmra.mrb[0].mxu0 %v639
        %v815 = vpop.f32.mrb[0].mxu0
        %v816 = vadd.f32 %v560, %v815
        %v817 = vpop.f32.mrb[0].mxu0
        %v818 = vpop.f32.mrb[0].mxu0
        %v819 = vadd.f32 %v563, %v818
        %v820 = vpop.f32.mrb[0].mxu0
        %821 = vmatprep.mubr.bf16.mxu0 0
        %822 = vmatmul.mubr.bf16.gmra.mrb[0].mxu0 %v642
        %v823 = vpop.f32.mrb[0].mxu0
        %v824 = vadd.f32 %v568, %v823
        %v825 = vpop.f32.mrb[0].mxu0
        %v826 = vpop.f32.mrb[0].mxu0
        %v827 = vadd.f32 %v571, %v826
        %v828 = vpop.f32.mrb[0].mxu0
        %829 = vmatprep.mubr.bf16.mxu0 0
        %830 = vmatmul.mubr.bf16.gmra.mrb[0].mxu0 %v645
        %v831 = vpop.f32.mrb[0].mxu0
        %v832 = vadd.f32 %v576, %v831
        %v833 = vpop.f32.mrb[0].mxu0
        %v834 = vpop.f32.mrb[0].mxu0
        %v835 = vadd.f32 %v579, %v834
        %v836 = vpop.f32.mrb[0].mxu0
        %837 = vmatprep.mubr.bf16.mxu0 0
        %838 = vmatmul.mubr.bf16.gmra.mrb[0].mxu0 %v648
        %v839 = vpop.f32.mrb[0].mxu0
        %v840 = vadd.f32 %v584, %v839
        %v841 = vpop.f32.mrb[0].mxu0
        %v842 = vpop.f32.mrb[0].mxu0
        %v843 = vadd.f32 %v587, %v842
        %v844 = vpop.f32.mrb[0].mxu0
        %845 = vdwg.mxu0
        %v846 = vld [vmem:[%s206 + $0x2] sm:$0xff]
        %v847 = vld [vmem:[%s206 + $0xa] sm:$0xff]
        %v848 = vld [vmem:[%s206 + $0x12] sm:$0xff]
        %v849 = vld [vmem:[%s206 + $0x1a] sm:$0xff]
        %v850 = vld [vmem:[%s206 + $0x22] sm:$0xff]
        %v851 = vld [vmem:[%s206 + $0x2a] sm:$0xff]
        %v852 = vld [vmem:[%s206 + $0x32] sm:$0xff]
        %v853 = vld [vmem:[%s206 + $0x3a] sm:$0xff]
        %v854 = vld [vmem:[%s206 + $0x42] sm:$0xff]
        %v855 = vld [vmem:[%s206 + $0x4a] sm:$0xff]
        %v856 = vld [vmem:[%s206 + $0x52] sm:$0xff]
        %v857 = vld [vmem:[%s206 + $0x5a] sm:$0xff]
        %v858 = vld [vmem:[%s206 + $0x62] sm:$0xff]
        %v859 = vld [vmem:[%s206 + $0x6a] sm:$0xff]
        %v860 = vld [vmem:[%s206 + $0x72] sm:$0xff]
        %v861 = vld [vmem:[%s206 + $0x7a] sm:$0xff]
        %v862 = vld [vmem:[%s206 + $0x82] sm:$0xff]
        %v863 = vld [vmem:[%s206 + $0x8a] sm:$0xff]
        %v864 = vld [vmem:[%s206 + $0x92] sm:$0xff]
        %v865 = vld [vmem:[%s206 + $0x9a] sm:$0xff]
        %v866 = vld [vmem:[%s206 + $0xa2] sm:$0xff]
        %v867 = vld [vmem:[%s206 + $0xaa] sm:$0xff]
        %v868 = vld [vmem:[%s206 + $0xb2] sm:$0xff]
        %v869 = vld [vmem:[%s206 + $0xba] sm:$0xff]
        %v870 = vld [vmem:[%s206 + $0xc2] sm:$0xff]
        %v871 = vld [vmem:[%s206 + $0xca] sm:$0xff]
        %v872 = vld [vmem:[%s206 + $0xd2] sm:$0xff]
        %v873 = vld [vmem:[%s206 + $0xda] sm:$0xff]
        %v874 = vld [vmem:[%s206 + $0xe2] sm:$0xff]
        %v875 = vld [vmem:[%s206 + $0xea] sm:$0xff]
        %v876 = vld [vmem:[%s206 + $0xf2] sm:$0xff]
        %v877 = vld [vmem:[%s206 + $0xfa] sm:$0xff]
        %v878 = vld [vmem:[%s206 + $0x102] sm:$0xff]
        %v879 = vld [vmem:[%s206 + $0x10a] sm:$0xff]
        %v880 = vld [vmem:[%s206 + $0x112] sm:$0xff]
        %v881 = vld [vmem:[%s206 + $0x11a] sm:$0xff]
        %v882 = vld [vmem:[%s206 + $0x122] sm:$0xff]
        %v883 = vld [vmem:[%s206 + $0x12a] sm:$0xff]
        %v884 = vld [vmem:[%s206 + $0x132] sm:$0xff]
        %v885 = vld [vmem:[%s206 + $0x13a] sm:$0xff]
        %v886 = vpack.c.bf16 %v847, %v846
        %v887 = vpack.c.bf16 %v849, %v848
        %v888 = vpack.c.bf16 %v851, %v850
        %v889 = vpack.c.bf16 %v853, %v852
        %v890 = vpack.c.bf16 %v855, %v854
        %v891 = vpack.c.bf16 %v857, %v856
        %v892 = vpack.c.bf16 %v859, %v858
        %v893 = vpack.c.bf16 %v861, %v860
        %v894 = vpack.c.bf16 %v863, %v862
        %v895 = vpack.c.bf16 %v865, %v864
        %v896 = vpack.c.bf16 %v867, %v866
        %v897 = vpack.c.bf16 %v869, %v868
        %v898 = vpack.c.bf16 %v871, %v870
        %v899 = vpack.c.bf16 %v873, %v872
        %v900 = vpack.c.bf16 %v875, %v874
        %v901 = vpack.c.bf16 %v877, %v876
        %v902 = vpack.c.bf16 %v879, %v878
        %v903 = vpack.c.bf16 %v881, %v880
        %v904 = vpack.c.bf16 %v883, %v882
        %v905 = vpack.c.bf16 %v885, %v884
        %s906 = scalar_lea.vmem %s1, 4
        %v907 = vld [vmem:[%s906] sm:$0x3]
        %v909 = vsel %vm332, %v886, 0
        %v912 = vsel %vm332, %v887, 0
        %v915 = vsel %vm332, %v888, 0
        %v918 = vsel %vm332, %v889, 0
        %v921 = vsel %vm332, %v890, 0
        %v924 = vsel %vm332, %v891, 0
        %v927 = vsel %vm332, %v892, 0
        %v930 = vsel %vm332, %v893, 0
        %v933 = vsel %vm332, %v894, 0
        %v936 = vsel %vm332, %v895, 0
        %v939 = vsel %vm332, %v896, 0
        %v942 = vsel %vm332, %v897, 0
        %v945 = vsel %vm332, %v898, 0
        %v948 = vsel %vm332, %v899, 0
        %v951 = vsel %vm332, %v900, 0
        %v954 = vsel %vm332, %v901, 0
        %v957 = vsel %vm332, %v902, 0
        %v960 = vsel %vm332, %v903, 0
        %v963 = vsel %vm332, %v904, 0
        %v966 = vsel %vm332, %v905, 0
        %v969 = vsel %vm393, %v907, 0
        %971 = vmatprep.subr.bf16.mxu0 0
        %972 = vmatpush1.bf16.msra.mxu0 %v969
        %973 = vmatprep.subr.bf16.mxu0 0
        %974 = vmatpush1.bf16.msra.mxu0 0
        %975 = vmatprep.subr.bf16.mxu0 0
        %976 = vmatpush1.bf16.msra.mxu0 0
        %977 = vmatprep.subr.bf16.mxu0 0
        %978 = vmatpush1.bf16.msra.mxu0 0
        %979 = vmatprep.subr.bf16.mxu0 0
        %980 = vmatpush1.bf16.msra.mxu0 0
        %981 = vmatprep.subr.bf16.mxu0 0
        %982 = vmatpush1.bf16.msra.mxu0 0
        %983 = vmatprep.subr.bf16.mxu0 0
        %984 = vmatpush1.bf16.msra.mxu0 0
        %985 = vmatprep.subr.bf16.mxu0 0
        %986 = vmatpush1.bf16.msra.mxu0 0
        %987 = vmatprep.subr.bf16.mxu0 0
        %988 = vmatpush1.bf16.msra.mxu0 0
        %989 = vmatprep.subr.bf16.mxu0 0
        %990 = vmatpush1.bf16.msra.mxu0 0
        %991 = vmatprep.subr.bf16.mxu0 0
        %992 = vmatpush1.bf16.msra.mxu0 0
        %993 = vmatprep.subr.bf16.mxu0 0
        %994 = vmatpush1.bf16.msra.mxu0 0
        %995 = vmatprep.subr.bf16.mxu0 0
        %996 = vmatpush1.bf16.msra.mxu0 0
        %997 = vmatprep.subr.bf16.mxu0 0
        %998 = vmatpush1.bf16.msra.mxu0 0
        %999 = vmatprep.subr.bf16.mxu0 0
        %1000 = vmatpush1.bf16.msra.mxu0 0
        %1001 = vmatprep.subr.bf16.mxu0 0
        %1002 = vmatpush1.bf16.msra.mxu0 0
        %1003 = vmatprep.mubr.bf16.mxu0 0
        %1004 = vmatmul.mubr.bf16.gmra.mrb[0].mxu0 %v909
        %v1005 = vpop.f32.mrb[0].mxu0
        %v1006 = vadd.f32 0.0, %v1005
        %v1007 = vpop.f32.mrb[0].mxu0
        %v1008 = vpop.f32.mrb[0].mxu0
        %v1009 = vadd.f32 0.0, %v1008
        %v1010 = vpop.f32.mrb[0].mxu0
        %1011 = vmatprep.mubr.bf16.mxu0 0
        %1012 = vmatmul.mubr.bf16.gmra.mrb[0].mxu0 %v912
        %v1013 = vpop.f32.mrb[0].mxu0
        %v1014 = vadd.f32 0.0, %v1013
        %v1015 = vpop.f32.mrb[0].mxu0
        %v1016 = vpop.f32.mrb[0].mxu0
        %v1017 = vadd.f32 0.0, %v1016
        %v1018 = vpop.f32.mrb[0].mxu0
        %1019 = vmatprep.mubr.bf16.mxu0 0
        %1020 = vmatmul.mubr.bf16.gmra.mrb[0].mxu0 %v915
        %v1021 = vpop.f32.mrb[0].mxu0
        %v1022 = vadd.f32 0.0, %v1021
        %v1023 = vpop.f32.mrb[0].mxu0
        %v1024 = vpop.f32.mrb[0].mxu0
        %v1025 = vadd.f32 0.0, %v1024
        %v1026 = vpop.f32.mrb[0].mxu0
        %1027 = vmatprep.mubr.bf16.mxu0 0
        %1028 = vmatmul.mubr.bf16.gmra.mrb[0].mxu0 %v918
        %v1029 = vpop.f32.mrb[0].mxu0
        %v1030 = vadd.f32 0.0, %v1029
        %v1031 = vpop.f32.mrb[0].mxu0
        %v1032 = vpop.f32.mrb[0].mxu0
        %v1033 = vadd.f32 0.0, %v1032
        %v1034 = vpop.f32.mrb[0].mxu0
        %1035 = vmatprep.mubr.bf16.mxu0 0
        %1036 = vmatmul.mubr.bf16.gmra.mrb[0].mxu0 %v921
        %v1037 = vpop.f32.mrb[0].mxu0
        %v1038 = vadd.f32 0.0, %v1037
        %v1039 = vpop.f32.mrb[0].mxu0
        %v1040 = vpop.f32.mrb[0].mxu0
        %v1041 = vadd.f32 0.0, %v1040
        %v1042 = vpop.f32.mrb[0].mxu0
        %1043 = vmatprep.mubr.bf16.mxu0 0
        %1044 = vmatmul.mubr.bf16.gmra.mrb[0].mxu0 %v924
        %v1045 = vpop.f32.mrb[0].mxu0
        %v1046 = vadd.f32 0.0, %v1045
        %v1047 = vpop.f32.mrb[0].mxu0
        %v1048 = vpop.f32.mrb[0].mxu0
        %v1049 = vadd.f32 0.0, %v1048
        %v1050 = vpop.f32.mrb[0].mxu0
        %1051 = vmatprep.mubr.bf16.mxu0 0
        %1052 = vmatmul.mubr.bf16.gmra.mrb[0].mxu0 %v927
        %v1053 = vpop.f32.mrb[0].mxu0
        %v1054 = vadd.f32 0.0, %v1053
        %v1055 = vpop.f32.mrb[0].mxu0
        %v1056 = vpop.f32.mrb[0].mxu0
        %v1057 = vadd.f32 0.0, %v1056
        %v1058 = vpop.f32.mrb[0].mxu0
        %1059 = vmatprep.mubr.bf16.mxu0 0
        %1060 = vmatmul.mubr.bf16.gmra.mrb[0].mxu0 %v930
        %v1061 = vpop.f32.mrb[0].mxu0
        %v1062 = vadd.f32 0.0, %v1061
        %v1063 = vpop.f32.mrb[0].mxu0
        %v1064 = vpop.f32.mrb[0].mxu0
        %v1065 = vadd.f32 0.0, %v1064
        %v1066 = vpop.f32.mrb[0].mxu0
        %1067 = vmatprep.mubr.bf16.mxu0 0
        %1068 = vmatmul.mubr.bf16.gmra.mrb[0].mxu0 %v933
        %v1069 = vpop.f32.mrb[0].mxu0
        %v1070 = vadd.f32 0.0, %v1069
        %v1071 = vpop.f32.mrb[0].mxu0
        %v1072 = vpop.f32.mrb[0].mxu0
        %v1073 = vadd.f32 0.0, %v1072
        %v1074 = vpop.f32.mrb[0].mxu0
        %1075 = vmatprep.mubr.bf16.mxu0 0
        %1076 = vmatmul.mubr.bf16.gmra.mrb[0].mxu0 %v936
        %v1077 = vpop.f32.mrb[0].mxu0
        %v1078 = vadd.f32 0.0, %v1077
        %v1079 = vpop.f32.mrb[0].mxu0
        %v1080 = vpop.f32.mrb[0].mxu0
        %v1081 = vadd.f32 0.0, %v1080
        %v1082 = vpop.f32.mrb[0].mxu0
        %1083 = vmatprep.mubr.bf16.mxu0 0
        %1084 = vmatmul.mubr.bf16.gmra.mrb[0].mxu0 %v939
        %v1085 = vpop.f32.mrb[0].mxu0
        %v1086 = vadd.f32 0.0, %v1085
        %v1087 = vpop.f32.mrb[0].mxu0
        %v1088 = vpop.f32.mrb[0].mxu0
        %v1089 = vadd.f32 0.0, %v1088
        %v1090 = vpop.f32.mrb[0].mxu0
        %1091 = vmatprep.mubr.bf16.mxu0 0
        %1092 = vmatmul.mubr.bf16.gmra.mrb[0].mxu0 %v942
        %v1093 = vpop.f32.mrb[0].mxu0
        %v1094 = vadd.f32 0.0, %v1093
        %v1095 = vpop.f32.mrb[0].mxu0
        %v1096 = vpop.f32.mrb[0].mxu0
        %v1097 = vadd.f32 0.0, %v1096
        %v1098 = vpop.f32.mrb[0].mxu0
        %1099 = vmatprep.mubr.bf16.mxu0 0
        %1100 = vmatmul.mubr.bf16.gmra.mrb[0].mxu0 %v945
        %v1101 = vpop.f32.mrb[0].mxu0
        %v1102 = vadd.f32 0.0, %v1101
        %v1103 = vpop.f32.mrb[0].mxu0
        %v1104 = vpop.f32.mrb[0].mxu0
        %v1105 = vadd.f32 0.0, %v1104
        %v1106 = vpop.f32.mrb[0].mxu0
        %1107 = vmatprep.mubr.bf16.mxu0 0
        %1108 = vmatmul.mubr.bf16.gmra.mrb[0].mxu0 %v948
        %v1109 = vpop.f32.mrb[0].mxu0
        %v1110 = vadd.f32 0.0, %v1109
        %v1111 = vpop.f32.mrb[0].mxu0
        %v1112 = vpop.f32.mrb[0].mxu0
        %v1113 = vadd.f32 0.0, %v1112
        %v1114 = vpop.f32.mrb[0].mxu0
        %1115 = vmatprep.mubr.bf16.mxu0 0
        %1116 = vmatmul.mubr.bf16.gmra.mrb[0].mxu0 %v951
        %v1117 = vpop.f32.mrb[0].mxu0
        %v1118 = vadd.f32 0.0, %v1117
        %v1119 = vpop.f32.mrb[0].mxu0
        %v1120 = vpop.f32.mrb[0].mxu0
        %v1121 = vadd.f32 0.0, %v1120
        %v1122 = vpop.f32.mrb[0].mxu0
        %1123 = vmatprep.mubr.bf16.mxu0 0
        %1124 = vmatmul.mubr.bf16.gmra.mrb[0].mxu0 %v954
        %v1125 = vpop.f32.mrb[0].mxu0
        %v1126 = vadd.f32 0.0, %v1125
        %v1127 = vpop.f32.mrb[0].mxu0
        %v1128 = vpop.f32.mrb[0].mxu0
        %v1129 = vadd.f32 0.0, %v1128
        %v1130 = vpop.f32.mrb[0].mxu0
        %1131 = vmatprep.mubr.bf16.mxu0 0
        %1132 = vmatmul.mubr.bf16.gmra.mrb[0].mxu0 %v957
        %v1133 = vpop.f32.mrb[0].mxu0
        %v1134 = vadd.f32 0.0, %v1133
        %v1135 = vpop.f32.mrb[0].mxu0
        %v1136 = vpop.f32.mrb[0].mxu0
        %v1137 = vadd.f32 0.0, %v1136
        %v1138 = vpop.f32.mrb[0].mxu0
        %1139 = vmatprep.mubr.bf16.mxu0 0
        %1140 = vmatmul.mubr.bf16.gmra.mrb[0].mxu0 %v960
        %v1141 = vpop.f32.mrb[0].mxu0
        %v1142 = vadd.f32 0.0, %v1141
        %v1143 = vpop.f32.mrb[0].mxu0
        %v1144 = vpop.f32.mrb[0].mxu0
        %v1145 = vadd.f32 0.0, %v1144
        %v1146 = vpop.f32.mrb[0].mxu0
        %1147 = vmatprep.mubr.bf16.mxu0 0
        %1148 = vmatmul.mubr.bf16.gmra.mrb[0].mxu0 %v963
        %v1149 = vpop.f32.mrb[0].mxu0
        %v1150 = vadd.f32 0.0, %v1149
        %v1151 = vpop.f32.mrb[0].mxu0
        %v1152 = vpop.f32.mrb[0].mxu0
        %v1153 = vadd.f32 0.0, %v1152
        %v1154 = vpop.f32.mrb[0].mxu0
        %1155 = vmatprep.mubr.bf16.mxu0 0
        %1156 = vmatmul.mubr.bf16.gmra.mrb[0].mxu0 %v966
        %v1157 = vpop.f32.mrb[0].mxu0
        %v1158 = vadd.f32 0.0, %v1157
        %v1159 = vpop.f32.mrb[0].mxu0
        %v1160 = vpop.f32.mrb[0].mxu0
        %v1161 = vadd.f32 0.0, %v1160
        %v1162 = vpop.f32.mrb[0].mxu0
        %1163 = vdwg.mxu0
        %v1164 = vadd.f32 %v688, %v1006
        %v1165 = vadd.f32 %v691, %v1009
        %v1166 = vadd.f32 %v696, %v1014
        %v1167 = vadd.f32 %v699, %v1017
        %v1168 = vadd.f32 %v704, %v1022
        %v1169 = vadd.f32 %v707, %v1025
        %v1170 = vadd.f32 %v712, %v1030
        %v1171 = vadd.f32 %v715, %v1033
        %v1172 = vadd.f32 %v720, %v1038
        %v1173 = vadd.f32 %v723, %v1041
        %v1174 = vadd.f32 %v728, %v1046
        %v1175 = vadd.f32 %v731, %v1049
        %v1176 = vadd.f32 %v736, %v1054
        %v1177 = vadd.f32 %v739, %v1057
        %v1178 = vadd.f32 %v744, %v1062
        %v1179 = vadd.f32 %v747, %v1065
        %v1180 = vadd.f32 %v752, %v1070
        %v1181 = vadd.f32 %v755, %v1073
        %v1182 = vadd.f32 %v760, %v1078
        %v1183 = vadd.f32 %v763, %v1081
        %v1184 = vadd.f32 %v768, %v1086
        %v1185 = vadd.f32 %v771, %v1089
        %v1186 = vadd.f32 %v776, %v1094
        %v1187 = vadd.f32 %v779, %v1097
        %v1188 = vadd.f32 %v784, %v1102
        %v1189 = vadd.f32 %v787, %v1105
        %v1190 = vadd.f32 %v792, %v1110
        %v1191 = vadd.f32 %v795, %v1113
        %v1192 = vadd.f32 %v800, %v1118
        %v1193 = vadd.f32 %v803, %v1121
        %v1194 = vadd.f32 %v808, %v1126
        %v1195 = vadd.f32 %v811, %v1129
        %v1196 = vadd.f32 %v816, %v1134
        %v1197 = vadd.f32 %v819, %v1137
        %v1198 = vadd.f32 %v824, %v1142
        %v1199 = vadd.f32 %v827, %v1145
        %v1200 = vadd.f32 %v832, %v1150
        %v1201 = vadd.f32 %v835, %v1153
        %v1202 = vadd.f32 %v840, %v1158
        %v1203 = vadd.f32 %v843, %v1161
        %v1204 = vld [vmem:[%s206 + $0x14] sm:$0xff]
        %v1205 = vld [vmem:[%s206 + $0x1c] sm:$0xff]
        %v1206 = vld [vmem:[%s206 + $0x24] sm:$0xff]
        %v1207 = vld [vmem:[%s206 + $0x2c] sm:$0xff]
        %v1208 = vld [vmem:[%s206 + $0x34] sm:$0xff]
        %v1209 = vld [vmem:[%s206 + $0x3c] sm:$0xff]
        %v1210 = vld [vmem:[%s206 + $0x44] sm:$0xff]
        %v1211 = vld [vmem:[%s206 + $0x4c] sm:$0xff]
        %v1212 = vld [vmem:[%s206 + $0x54] sm:$0xff]
        %v1213 = vld [vmem:[%s206 + $0x5c] sm:$0xff]
        %v1214 = vld [vmem:[%s206 + $0x64] sm:$0xff]
        %v1215 = vld [vmem:[%s206 + $0x6c] sm:$0xff]
        %v1216 = vld [vmem:[%s206 + $0x74] sm:$0xff]
        %v1217 = vld [vmem:[%s206 + $0x7c] sm:$0xff]
        %v1218 = vld [vmem:[%s206 + $0x84] sm:$0xff]
        %v1219 = vld [vmem:[%s206 + $0x8c] sm:$0xff]
        %v1220 = vld [vmem:[%s206 + $0x94] sm:$0xff]
        %v1221 = vld [vmem:[%s206 + $0x9c] sm:$0xff]
        %v1222 = vld [vmem:[%s206 + $0xa4] sm:$0xff]
        %v1223 = vld [vmem:[%s206 + $0xac] sm:$0xff]
        %v1224 = vld [vmem:[%s206 + $0xb4] sm:$0xff]
        %v1225 = vld [vmem:[%s206 + $0xbc] sm:$0xff]
        %v1226 = vld [vmem:[%s206 + $0xc4] sm:$0xff]
        %v1227 = vld [vmem:[%s206 + $0xcc] sm:$0xff]
        %v1228 = vld [vmem:[%s206 + $0xd4] sm:$0xff]
        %v1229 = vld [vmem:[%s206 + $0xdc] sm:$0xff]
        %v1230 = vld [vmem:[%s206 + $0xe4] sm:$0xff]
        %v1231 = vld [vmem:[%s206 + $0xec] sm:$0xff]
        %v1232 = vld [vmem:[%s206 + $0xf4] sm:$0xff]
        %v1233 = vld [vmem:[%s206 + $0xfc] sm:$0xff]
        %v1234 = vld [vmem:[%s206 + $0x104] sm:$0xff]
        %v1235 = vld [vmem:[%s206 + $0x10c] sm:$0xff]
        %v1236 = vld [vmem:[%s206 + $0x114] sm:$0xff]
        %v1237 = vld [vmem:[%s206 + $0x11c] sm:$0xff]
        %v1238 = vld [vmem:[%s206 + $0x124] sm:$0xff]
        %v1239 = vld [vmem:[%s206 + $0x12c] sm:$0xff]
        %v1240 = vld [vmem:[%s206 + $0x134] sm:$0xff]
        %v1241 = vld [vmem:[%s206 + $0x13c] sm:$0xff]
        %v1242 = vld [vmem:[%s206 + $0x144] sm:$0xff]
        %v1243 = vld [vmem:[%s206 + $0x14c] sm:$0xff]
        %v1244 = vpack.c.bf16 %v1205, %v1204
        %v1245 = vpack.c.bf16 %v1207, %v1206
        %v1246 = vpack.c.bf16 %v1209, %v1208
        %v1247 = vpack.c.bf16 %v1211, %v1210
        %v1248 = vpack.c.bf16 %v1213, %v1212
        %v1249 = vpack.c.bf16 %v1215, %v1214
        %v1250 = vpack.c.bf16 %v1217, %v1216
        %v1251 = vpack.c.bf16 %v1219, %v1218
        %v1252 = vpack.c.bf16 %v1221, %v1220
        %v1253 = vpack.c.bf16 %v1223, %v1222
        %v1254 = vpack.c.bf16 %v1225, %v1224
        %v1255 = vpack.c.bf16 %v1227, %v1226
        %v1256 = vpack.c.bf16 %v1229, %v1228
        %v1257 = vpack.c.bf16 %v1231, %v1230
        %v1258 = vpack.c.bf16 %v1233, %v1232
        %v1259 = vpack.c.bf16 %v1235, %v1234
        %v1260 = vpack.c.bf16 %v1237, %v1236
        %v1261 = vpack.c.bf16 %v1239, %v1238
        %v1262 = vpack.c.bf16 %v1241, %v1240
        %v1263 = vpack.c.bf16 %v1243, %v1242
        %s1264 = scalar_lea.vmem %s1, 6
        %v1265 = vld [vmem:[%s1264] sm:$0x3]
        %v1267 = vsel %vm332, %v1244, 0
        %v1270 = vsel %vm332, %v1245, 0
        %v1273 = vsel %vm332, %v1246, 0
        %v1276 = vsel %vm332, %v1247, 0
        %v1279 = vsel %vm332, %v1248, 0
        %v1282 = vsel %vm332, %v1249, 0
        %v1285 = vsel %vm332, %v1250, 0
        %v1288 = vsel %vm332, %v1251, 0
        %v1291 = vsel %vm332, %v1252, 0
        %v1294 = vsel %vm332, %v1253, 0
        %v1297 = vsel %vm332, %v1254, 0
        %v1300 = vsel %vm332, %v1255, 0
        %v1303 = vsel %vm332, %v1256, 0
        %v1306 = vsel %vm332, %v1257, 0
        %v1309 = vsel %vm332, %v1258, 0
        %v1312 = vsel %vm332, %v1259, 0
        %v1315 = vsel %vm332, %v1260, 0
        %v1318 = vsel %vm332, %v1261, 0
        %v1321 = vsel %vm332, %v1262, 0
        %v1324 = vsel %vm332, %v1263, 0
        %v1327 = vsel %vm393, %v1265, 0
        %1329 = vmatprep.subr.bf16.mxu0 0
        %1330 = vmatpush1.bf16.msra.mxu0 %v1327
        %1331 = vmatprep.subr.bf16.mxu0 0
        %1332 = vmatpush1.bf16.msra.mxu0 0
        %1333 = vmatprep.subr.bf16.mxu0 0
        %1334 = vmatpush1.bf16.msra.mxu0 0
        %1335 = vmatprep.subr.bf16.mxu0 0
        %1336 = vmatpush1.bf16.msra.mxu0 0
        %1337 = vmatprep.subr.bf16.mxu0 0
        %1338 = vmatpush1.bf16.msra.mxu0 0
        %1339 = vmatprep.subr.bf16.mxu0 0
        %1340 = vmatpush1.bf16.msra.mxu0 0
        %1341 = vmatprep.subr.bf16.mxu0 0
        %1342 = vmatpush1.bf16.msra.mxu0 0
        %1343 = vmatprep.subr.bf16.mxu0 0
        %1344 = vmatpush1.bf16.msra.mxu0 0
        %1345 = vmatprep.subr.bf16.mxu0 0
        %1346 = vmatpush1.bf16.msra.mxu0 0
        %1347 = vmatprep.subr.bf16.mxu0 0
        %1348 = vmatpush1.bf16.msra.mxu0 0
        %1349 = vmatprep.subr.bf16.mxu0 0
        %1350 = vmatpush1.bf16.msra.mxu0 0
        %1351 = vmatprep.subr.bf16.mxu0 0
        %1352 = vmatpush1.bf16.msra.mxu0 0
        %1353 = vmatprep.subr.bf16.mxu0 0
        %1354 = vmatpush1.bf16.msra.mxu0 0
        %1355 = vmatprep.subr.bf16.mxu0 0
        %1356 = vmatpush1.bf16.msra.mxu0 0
        %1357 = vmatprep.subr.bf16.mxu0 0
        %1358 = vmatpush1.bf16.msra.mxu0 0
        %1359 = vmatprep.subr.bf16.mxu0 0
        %1360 = vmatpush1.bf16.msra.mxu0 0
        %1361 = vmatprep.mubr.bf16.mxu0 0
        %1362 = vmatmul.mubr.bf16.gmra.mrb[0].mxu0 %v1267
        %v1363 = vpop.f32.mrb[0].mxu0
        %v1364 = vadd.f32 0.0, %v1363
        %v1365 = vpop.f32.mrb[0].mxu0
        %v1366 = vpop.f32.mrb[0].mxu0
        %v1367 = vadd.f32 0.0, %v1366
        %v1368 = vpop.f32.mrb[0].mxu0
        %1369 = vmatprep.mubr.bf16.mxu0 0
        %1370 = vmatmul.mubr.bf16.gmra.mrb[0].mxu0 %v1270
        %v1371 = vpop.f32.mrb[0].mxu0
        %v1372 = vadd.f32 0.0, %v1371
        %v1373 = vpop.f32.mrb[0].mxu0
        %v1374 = vpop.f32.mrb[0].mxu0
        %v1375 = vadd.f32 0.0, %v1374
        %v1376 = vpop.f32.mrb[0].mxu0
        %1377 = vmatprep.mubr.bf16.mxu0 0
        %1378 = vmatmul.mubr.bf16.gmra.mrb[0].mxu0 %v1273
        %v1379 = vpop.f32.mrb[0].mxu0
        %v1380 = vadd.f32 0.0, %v1379
        %v1381 = vpop.f32.mrb[0].mxu0
        %v1382 = vpop.f32.mrb[0].mxu0
        %v1383 = vadd.f32 0.0, %v1382
        %v1384 = vpop.f32.mrb[0].mxu0
        %1385 = vmatprep.mubr.bf16.mxu0 0
        %1386 = vmatmul.mubr.bf16.gmra.mrb[0].mxu0 %v1276
        %v1387 = vpop.f32.mrb[0].mxu0
        %v1388 = vadd.f32 0.0, %v1387
        %v1389 = vpop.f32.mrb[0].mxu0
        %v1390 = vpop.f32.mrb[0].mxu0
        %v1391 = vadd.f32 0.0, %v1390
        %v1392 = vpop.f32.mrb[0].mxu0
        %1393 = vmatprep.mubr.bf16.mxu0 0
        %1394 = vmatmul.mubr.bf16.gmra.mrb[0].mxu0 %v1279
        %v1395 = vpop.f32.mrb[0].mxu0
        %v1396 = vadd.f32 0.0, %v1395
        %v1397 = vpop.f32.mrb[0].mxu0
        %v1398 = vpop.f32.mrb[0].mxu0
        %v1399 = vadd.f32 0.0, %v1398
        %v1400 = vpop.f32.mrb[0].mxu0
        %1401 = vmatprep.mubr.bf16.mxu0 0
        %1402 = vmatmul.mubr.bf16.gmra.mrb[0].mxu0 %v1282
        %v1403 = vpop.f32.mrb[0].mxu0
        %v1404 = vadd.f32 0.0, %v1403
        %v1405 = vpop.f32.mrb[0].mxu0
        %v1406 = vpop.f32.mrb[0].mxu0
        %v1407 = vadd.f32 0.0, %v1406
        %v1408 = vpop.f32.mrb[0].mxu0
        %1409 = vmatprep.mubr.bf16.mxu0 0
        %1410 = vmatmul.mubr.bf16.gmra.mrb[0].mxu0 %v1285
        %v1411 = vpop.f32.mrb[0].mxu0
        %v1412 = vadd.f32 0.0, %v1411
        %v1413 = vpop.f32.mrb[0].mxu0
        %v1414 = vpop.f32.mrb[0].mxu0
        %v1415 = vadd.f32 0.0, %v1414
        %v1416 = vpop.f32.mrb[0].mxu0
        %1417 = vmatprep.mubr.bf16.mxu0 0
        %1418 = vmatmul.mubr.bf16.gmra.mrb[0].mxu0 %v1288
        %v1419 = vpop.f32.mrb[0].mxu0
        %v1420 = vadd.f32 0.0, %v1419
        %v1421 = vpop.f32.mrb[0].mxu0
        %v1422 = vpop.f32.mrb[0].mxu0
        %v1423 = vadd.f32 0.0, %v1422
        %v1424 = vpop.f32.mrb[0].mxu0
        %1425 = vmatprep.mubr.bf16.mxu0 0
        %1426 = vmatmul.mubr.bf16.gmra.mrb[0].mxu0 %v1291
        %v1427 = vpop.f32.mrb[0].mxu0
        %v1428 = vadd.f32 0.0, %v1427
        %v1429 = vpop.f32.mrb[0].mxu0
        %v1430 = vpop.f32.mrb[0].mxu0
        %v1431 = vadd.f32 0.0, %v1430
        %v1432 = vpop.f32.mrb[0].mxu0
        %1433 = vmatprep.mubr.bf16.mxu0 0
        %1434 = vmatmul.mubr.bf16.gmra.mrb[0].mxu0 %v1294
        %v1435 = vpop.f32.mrb[0].mxu0
        %v1436 = vadd.f32 0.0, %v1435
        %v1437 = vpop.f32.mrb[0].mxu0
        %v1438 = vpop.f32.mrb[0].mxu0
        %v1439 = vadd.f32 0.0, %v1438
        %v1440 = vpop.f32.mrb[0].mxu0
        %1441 = vmatprep.mubr.bf16.mxu0 0
        %1442 = vmatmul.mubr.bf16.gmra.mrb[0].mxu0 %v1297
        %v1443 = vpop.f32.mrb[0].mxu0
        %v1444 = vadd.f32 0.0, %v1443
        %v1445 = vpop.f32.mrb[0].mxu0
        %v1446 = vpop.f32.mrb[0].mxu0
        %v1447 = vadd.f32 0.0, %v1446
        %v1448 = vpop.f32.mrb[0].mxu0
        %1449 = vmatprep.mubr.bf16.mxu0 0
        %1450 = vmatmul.mubr.bf16.gmra.mrb[0].mxu0 %v1300
        %v1451 = vpop.f32.mrb[0].mxu0
        %v1452 = vadd.f32 0.0, %v1451
        %v1453 = vpop.f32.mrb[0].mxu0
        %v1454 = vpop.f32.mrb[0].mxu0
        %v1455 = vadd.f32 0.0, %v1454
        %v1456 = vpop.f32.mrb[0].mxu0
        %1457 = vmatprep.mubr.bf16.mxu0 0
        %1458 = vmatmul.mubr.bf16.gmra.mrb[0].mxu0 %v1303
        %v1459 = vpop.f32.mrb[0].mxu0
        %v1460 = vadd.f32 0.0, %v1459
        %v1461 = vpop.f32.mrb[0].mxu0
        %v1462 = vpop.f32.mrb[0].mxu0
        %v1463 = vadd.f32 0.0, %v1462
        %v1464 = vpop.f32.mrb[0].mxu0
        %1465 = vmatprep.mubr.bf16.mxu0 0
        %1466 = vmatmul.mubr.bf16.gmra.mrb[0].mxu0 %v1306
        %v1467 = vpop.f32.mrb[0].mxu0
        %v1468 = vadd.f32 0.0, %v1467
        %v1469 = vpop.f32.mrb[0].mxu0
        %v1470 = vpop.f32.mrb[0].mxu0
        %v1471 = vadd.f32 0.0, %v1470
        %v1472 = vpop.f32.mrb[0].mxu0
        %1473 = vmatprep.mubr.bf16.mxu0 0
        %1474 = vmatmul.mubr.bf16.gmra.mrb[0].mxu0 %v1309
        %v1475 = vpop.f32.mrb[0].mxu0
        %v1476 = vadd.f32 0.0, %v1475
        %v1477 = vpop.f32.mrb[0].mxu0
        %v1478 = vpop.f32.mrb[0].mxu0
        %v1479 = vadd.f32 0.0, %v1478
        %v1480 = vpop.f32.mrb[0].mxu0
        %1481 = vmatprep.mubr.bf16.mxu0 0
        %1482 = vmatmul.mubr.bf16.gmra.mrb[0].mxu0 %v1312
        %v1483 = vpop.f32.mrb[0].mxu0
        %v1484 = vadd.f32 0.0, %v1483
        %v1485 = vpop.f32.mrb[0].mxu0
        %v1486 = vpop.f32.mrb[0].mxu0
        %v1487 = vadd.f32 0.0, %v1486
        %v1488 = vpop.f32.mrb[0].mxu0
        %1489 = vmatprep.mubr.bf16.mxu0 0
        %1490 = vmatmul.mubr.bf16.gmra.mrb[0].mxu0 %v1315
        %v1491 = vpop.f32.mrb[0].mxu0
        %v1492 = vadd.f32 0.0, %v1491
        %v1493 = vpop.f32.mrb[0].mxu0
        %v1494 = vpop.f32.mrb[0].mxu0
        %v1495 = vadd.f32 0.0, %v1494
        %v1496 = vpop.f32.mrb[0].mxu0
        %1497 = vmatprep.mubr.bf16.mxu0 0
        %1498 = vmatmul.mubr.bf16.gmra.mrb[0].mxu0 %v1318
        %v1499 = vpop.f32.mrb[0].mxu0
        %v1500 = vadd.f32 0.0, %v1499
        %v1501 = vpop.f32.mrb[0].mxu0
        %v1502 = vpop.f32.mrb[0].mxu0
        %v1503 = vadd.f32 0.0, %v1502
        %v1504 = vpop.f32.mrb[0].mxu0
        %1505 = vmatprep.mubr.bf16.mxu0 0
        %1506 = vmatmul.mubr.bf16.gmra.mrb[0].mxu0 %v1321
        %v1507 = vpop.f32.mrb[0].mxu0
        %v1508 = vadd.f32 0.0, %v1507
        %v1509 = vpop.f32.mrb[0].mxu0
        %v1510 = vpop.f32.mrb[0].mxu0
        %v1511 = vadd.f32 0.0, %v1510
        %v1512 = vpop.f32.mrb[0].mxu0
        %1513 = vmatprep.mubr.bf16.mxu0 0
        %1514 = vmatmul.mubr.bf16.gmra.mrb[0].mxu0 %v1324
        %v1515 = vpop.f32.mrb[0].mxu0
        %v1516 = vadd.f32 0.0, %v1515
        %v1517 = vpop.f32.mrb[0].mxu0
        %v1518 = vpop.f32.mrb[0].mxu0
        %v1519 = vadd.f32 0.0, %v1518
        %v1520 = vpop.f32.mrb[0].mxu0
        %1521 = vdwg.mxu0
        %v1522 = vadd.f32 %v1164, %v1364
        %v1523 = vadd.f32 %v1165, %v1367
        %v1524 = vadd.f32 %v1166, %v1372
        %v1525 = vadd.f32 %v1167, %v1375
        %v1526 = vadd.f32 %v1168, %v1380
        %v1527 = vadd.f32 %v1169, %v1383
        %v1528 = vadd.f32 %v1170, %v1388
        %v1529 = vadd.f32 %v1171, %v1391
        %v1530 = vadd.f32 %v1172, %v1396
        %v1531 = vadd.f32 %v1173, %v1399
        %v1532 = vadd.f32 %v1174, %v1404
        %v1533 = vadd.f32 %v1175, %v1407
        %v1534 = vadd.f32 %v1176, %v1412
        %v1535 = vadd.f32 %v1177, %v1415
        %v1536 = vadd.f32 %v1178, %v1420
        %v1537 = vadd.f32 %v1179, %v1423
        %v1538 = vadd.f32 %v1180, %v1428
        %v1539 = vadd.f32 %v1181, %v1431
        %v1540 = vadd.f32 %v1182, %v1436
        %v1541 = vadd.f32 %v1183, %v1439
        %v1542 = vadd.f32 %v1184, %v1444
        %v1543 = vadd.f32 %v1185, %v1447
        %v1544 = vadd.f32 %v1186, %v1452
        %v1545 = vadd.f32 %v1187, %v1455
        %v1546 = vadd.f32 %v1188, %v1460
        %v1547 = vadd.f32 %v1189, %v1463
        %v1548 = vadd.f32 %v1190, %v1468
        %v1549 = vadd.f32 %v1191, %v1471
        %v1550 = vadd.f32 %v1192, %v1476
        %v1551 = vadd.f32 %v1193, %v1479
        %v1552 = vadd.f32 %v1194, %v1484
        %v1553 = vadd.f32 %v1195, %v1487
        %v1554 = vadd.f32 %v1196, %v1492
        %v1555 = vadd.f32 %v1197, %v1495
        %v1556 = vadd.f32 %v1198, %v1500
        %v1557 = vadd.f32 %v1199, %v1503
        %v1558 = vadd.f32 %v1200, %v1508
        %v1559 = vadd.f32 %v1201, %v1511
        %v1560 = vadd.f32 %v1202, %v1516
        %v1561 = vadd.f32 %v1203, %v1519
        %v1562 = vld [vmem:[%s206 + $0x15] sm:$0xff]
        %v1563 = vld [vmem:[%s206 + $0x1d] sm:$0xff]
        %v1564 = vld [vmem:[%s206 + $0x25] sm:$0xff]
        %v1565 = vld [vmem:[%s206 + $0x2d] sm:$0xff]
        %v1566 = vld [vmem:[%s206 + $0x35] sm:$0xff]
        %v1567 = vld [vmem:[%s206 + $0x3d] sm:$0xff]
        %v1568 = vld [vmem:[%s206 + $0x45] sm:$0xff]
        %v1569 = vld [vmem:[%s206 + $0x4d] sm:$0xff]
        %v1570 = vld [vmem:[%s206 + $0x55] sm:$0xff]
        %v1571 = vld [vmem:[%s206 + $0x5d] sm:$0xff]
        %v1572 = vld [vmem:[%s206 + $0x65] sm:$0xff]
        %v1573 = vld [vmem:[%s206 + $0x6d] sm:$0xff]
        %v1574 = vld [vmem:[%s206 + $0x75] sm:$0xff]
        %v1575 = vld [vmem:[%s206 + $0x7d] sm:$0xff]
        %v1576 = vld [vmem:[%s206 + $0x85] sm:$0xff]
        %v1577 = vld [vmem:[%s206 + $0x8d] sm:$0xff]
        %v1578 = vld [vmem:[%s206 + $0x95] sm:$0xff]
        %v1579 = vld [vmem:[%s206 + $0x9d] sm:$0xff]
        %v1580 = vld [vmem:[%s206 + $0xa5] sm:$0xff]
        %v1581 = vld [vmem:[%s206 + $0xad] sm:$0xff]
        %v1582 = vld [vmem:[%s206 + $0xb5] sm:$0xff]
        %v1583 = vld [vmem:[%s206 + $0xbd] sm:$0xff]
        %v1584 = vld [vmem:[%s206 + $0xc5] sm:$0xff]
        %v1585 = vld [vmem:[%s206 + $0xcd] sm:$0xff]
        %v1586 = vld [vmem:[%s206 + $0xd5] sm:$0xff]
        %v1587 = vld [vmem:[%s206 + $0xdd] sm:$0xff]
        %v1588 = vld [vmem:[%s206 + $0xe5] sm:$0xff]
        %v1589 = vld [vmem:[%s206 + $0xed] sm:$0xff]
        %v1590 = vld [vmem:[%s206 + $0xf5] sm:$0xff]
        %v1591 = vld [vmem:[%s206 + $0xfd] sm:$0xff]
        %v1592 = vld [vmem:[%s206 + $0x105] sm:$0xff]
        %v1593 = vld [vmem:[%s206 + $0x10d] sm:$0xff]
        %v1594 = vld [vmem:[%s206 + $0x115] sm:$0xff]
        %v1595 = vld [vmem:[%s206 + $0x11d] sm:$0xff]
        %v1596 = vld [vmem:[%s206 + $0x125] sm:$0xff]
        %v1597 = vld [vmem:[%s206 + $0x12d] sm:$0xff]
        %v1598 = vld [vmem:[%s206 + $0x135] sm:$0xff]
        %v1599 = vld [vmem:[%s206 + $0x13d] sm:$0xff]
        %v1600 = vld [vmem:[%s206 + $0x145] sm:$0xff]
        %v1601 = vld [vmem:[%s206 + $0x14d] sm:$0xff]
        %v1602 = vpack.c.bf16 %v1563, %v1562
        %v1603 = vpack.c.bf16 %v1565, %v1564
        %v1604 = vpack.c.bf16 %v1567, %v1566
        %v1605 = vpack.c.bf16 %v1569, %v1568
        %v1606 = vpack.c.bf16 %v1571, %v1570
        %v1607 = vpack.c.bf16 %v1573, %v1572
        %v1608 = vpack.c.bf16 %v1575, %v1574
        %v1609 = vpack.c.bf16 %v1577, %v1576
        %v1610 = vpack.c.bf16 %v1579, %v1578
        %v1611 = vpack.c.bf16 %v1581, %v1580
        %v1612 = vpack.c.bf16 %v1583, %v1582
        %v1613 = vpack.c.bf16 %v1585, %v1584
        %v1614 = vpack.c.bf16 %v1587, %v1586
        %v1615 = vpack.c.bf16 %v1589, %v1588
        %v1616 = vpack.c.bf16 %v1591, %v1590
        %v1617 = vpack.c.bf16 %v1593, %v1592
        %v1618 = vpack.c.bf16 %v1595, %v1594
        %v1619 = vpack.c.bf16 %v1597, %v1596
        %v1620 = vpack.c.bf16 %v1599, %v1598
        %v1621 = vpack.c.bf16 %v1601, %v1600
        %s1622 = scalar_lea.vmem %s1, 8
        %v1623 = vld [vmem:[%s1622] sm:$0x3]
        %v1625 = vsel %vm332, %v1602, 0
        %v1628 = vsel %vm332, %v1603, 0
        %v1631 = vsel %vm332, %v1604, 0
        %v1634 = vsel %vm332, %v1605, 0
        %v1637 = vsel %vm332, %v1606, 0
        %v1640 = vsel %vm332, %v1607, 0
        %v1643 = vsel %vm332, %v1608, 0
        %v1646 = vsel %vm332, %v1609, 0
        %v1649 = vsel %vm332, %v1610, 0
        %v1652 = vsel %vm332, %v1611, 0
        %v1655 = vsel %vm332, %v1612, 0
        %v1658 = vsel %vm332, %v1613, 0
        %v1661 = vsel %vm332, %v1614, 0
        %v1664 = vsel %vm332, %v1615, 0
        %v1667 = vsel %vm332, %v1616, 0
        %v1670 = vsel %vm332, %v1617, 0
        %v1673 = vsel %vm332, %v1618, 0
        %v1676 = vsel %vm332, %v1619, 0
        %v1679 = vsel %vm332, %v1620, 0
        %v1682 = vsel %vm332, %v1621, 0
        %v1685 = vsel %vm393, %v1623, 0
        %1687 = vmatprep.subr.bf16.mxu0 0
        %1688 = vmatpush1.bf16.msra.mxu0 %v1685
        %1689 = vmatprep.subr.bf16.mxu0 0
        %1690 = vmatpush1.bf16.msra.mxu0 0
        %1691 = vmatprep.subr.bf16.mxu0 0
        %1692 = vmatpush1.bf16.msra.mxu0 0
        %1693 = vmatprep.subr.bf16.mxu0 0
        %1694 = vmatpush1.bf16.msra.mxu0 0
        %1695 = vmatprep.subr.bf16.mxu0 0
        %1696 = vmatpush1.bf16.msra.mxu0 0
        %1697 = vmatprep.subr.bf16.mxu0 0
        %1698 = vmatpush1.bf16.msra.mxu0 0
        %1699 = vmatprep.subr.bf16.mxu0 0
        %1700 = vmatpush1.bf16.msra.mxu0 0
        %1701 = vmatprep.subr.bf16.mxu0 0
        %1702 = vmatpush1.bf16.msra.mxu0 0
        %1703 = vmatprep.subr.bf16.mxu0 0
        %1704 = vmatpush1.bf16.msra.mxu0 0
        %1705 = vmatprep.subr.bf16.mxu0 0
        %1706 = vmatpush1.bf16.msra.mxu0 0
        %1707 = vmatprep.subr.bf16.mxu0 0
        %1708 = vmatpush1.bf16.msra.mxu0 0
        %1709 = vmatprep.subr.bf16.mxu0 0
        %1710 = vmatpush1.bf16.msra.mxu0 0
        %1711 = vmatprep.subr.bf16.mxu0 0
        %1712 = vmatpush1.bf16.msra.mxu0 0
        %1713 = vmatprep.subr.bf16.mxu0 0
        %1714 = vmatpush1.bf16.msra.mxu0 0
        %1715 = vmatprep.subr.bf16.mxu0 0
        %1716 = vmatpush1.bf16.msra.mxu0 0
        %1717 = vmatprep.subr.bf16.mxu0 0
        %1718 = vmatpush1.bf16.msra.mxu0 0
        %1719 = vmatprep.mubr.bf16.mxu0 0
        %1720 = vmatmul.mubr.bf16.gmra.mrb[0].mxu0 %v1625
        %v1721 = vpop.f32.mrb[0].mxu0
        %v1722 = vadd.f32 0.0, %v1721
        %v1723 = vpop.f32.mrb[0].mxu0
        %v1724 = vpop.f32.mrb[0].mxu0
        %v1725 = vadd.f32 0.0, %v1724
        %v1726 = vpop.f32.mrb[0].mxu0
        %1727 = vmatprep.mubr.bf16.mxu0 0
        %1728 = vmatmul.mubr.bf16.gmra.mrb[0].mxu0 %v1628
        %v1729 = vpop.f32.mrb[0].mxu0
        %v1730 = vadd.f32 0.0, %v1729
        %v1731 = vpop.f32.mrb[0].mxu0
        %v1732 = vpop.f32.mrb[0].mxu0
        %v1733 = vadd.f32 0.0, %v1732
        %v1734 = vpop.f32.mrb[0].mxu0
        %1735 = vmatprep.mubr.bf16.mxu0 0
        %1736 = vmatmul.mubr.bf16.gmra.mrb[0].mxu0 %v1631
        %v1737 = vpop.f32.mrb[0].mxu0
        %v1738 = vadd.f32 0.0, %v1737
        %v1739 = vpop.f32.mrb[0].mxu0
        %v1740 = vpop.f32.mrb[0].mxu0
        %v1741 = vadd.f32 0.0, %v1740
        %v1742 = vpop.f32.mrb[0].mxu0
        %1743 = vmatprep.mubr.bf16.mxu0 0
        %1744 = vmatmul.mubr.bf16.gmra.mrb[0].mxu0 %v1634
        %v1745 = vpop.f32.mrb[0].mxu0
        %v1746 = vadd.f32 0.0, %v1745
        %v1747 = vpop.f32.mrb[0].mxu0
        %v1748 = vpop.f32.mrb[0].mxu0
        %v1749 = vadd.f32 0.0, %v1748
        %v1750 = vpop.f32.mrb[0].mxu0
        %1751 = vmatprep.mubr.bf16.mxu0 0
        %1752 = vmatmul.mubr.bf16.gmra.mrb[0].mxu0 %v1637
        %v1753 = vpop.f32.mrb[0].mxu0
        %v1754 = vadd.f32 0.0, %v1753
        %v1755 = vpop.f32.mrb[0].mxu0
        %v1756 = vpop.f32.mrb[0].mxu0
        %v1757 = vadd.f32 0.0, %v1756
        %v1758 = vpop.f32.mrb[0].mxu0
        %1759 = vmatprep.mubr.bf16.mxu0 0
        %1760 = vmatmul.mubr.bf16.gmra.mrb[0].mxu0 %v1640
        %v1761 = vpop.f32.mrb[0].mxu0
        %v1762 = vadd.f32 0.0, %v1761
        %v1763 = vpop.f32.mrb[0].mxu0
        %v1764 = vpop.f32.mrb[0].mxu0
        %v1765 = vadd.f32 0.0, %v1764
        %v1766 = vpop.f32.mrb[0].mxu0
        %1767 = vmatprep.mubr.bf16.mxu0 0
        %1768 = vmatmul.mubr.bf16.gmra.mrb[0].mxu0 %v1643
        %v1769 = vpop.f32.mrb[0].mxu0
        %v1770 = vadd.f32 0.0, %v1769
        %v1771 = vpop.f32.mrb[0].mxu0
        %v1772 = vpop.f32.mrb[0].mxu0
        %v1773 = vadd.f32 0.0, %v1772
        %v1774 = vpop.f32.mrb[0].mxu0
        %1775 = vmatprep.mubr.bf16.mxu0 0
        %1776 = vmatmul.mubr.bf16.gmra.mrb[0].mxu0 %v1646
        %v1777 = vpop.f32.mrb[0].mxu0
        %v1778 = vadd.f32 0.0, %v1777
        %v1779 = vpop.f32.mrb[0].mxu0
        %v1780 = vpop.f32.mrb[0].mxu0
        %v1781 = vadd.f32 0.0, %v1780
        %v1782 = vpop.f32.mrb[0].mxu0
        %1783 = vmatprep.mubr.bf16.mxu0 0
        %1784 = vmatmul.mubr.bf16.gmra.mrb[0].mxu0 %v1649
        %v1785 = vpop.f32.mrb[0].mxu0
        %v1786 = vadd.f32 0.0, %v1785
        %v1787 = vpop.f32.mrb[0].mxu0
        %v1788 = vpop.f32.mrb[0].mxu0
        %v1789 = vadd.f32 0.0, %v1788
        %v1790 = vpop.f32.mrb[0].mxu0
        %1791 = vmatprep.mubr.bf16.mxu0 0
        %1792 = vmatmul.mubr.bf16.gmra.mrb[0].mxu0 %v1652
        %v1793 = vpop.f32.mrb[0].mxu0
        %v1794 = vadd.f32 0.0, %v1793
        %v1795 = vpop.f32.mrb[0].mxu0
        %v1796 = vpop.f32.mrb[0].mxu0
        %v1797 = vadd.f32 0.0, %v1796
        %v1798 = vpop.f32.mrb[0].mxu0
        %1799 = vmatprep.mubr.bf16.mxu0 0
        %1800 = vmatmul.mubr.bf16.gmra.mrb[0].mxu0 %v1655
        %v1801 = vpop.f32.mrb[0].mxu0
        %v1802 = vadd.f32 0.0, %v1801
        %v1803 = vpop.f32.mrb[0].mxu0
        %v1804 = vpop.f32.mrb[0].mxu0
        %v1805 = vadd.f32 0.0, %v1804
        %v1806 = vpop.f32.mrb[0].mxu0
        %1807 = vmatprep.mubr.bf16.mxu0 0
        %1808 = vmatmul.mubr.bf16.gmra.mrb[0].mxu0 %v1658
        %v1809 = vpop.f32.mrb[0].mxu0
        %v1810 = vadd.f32 0.0, %v1809
        %v1811 = vpop.f32.mrb[0].mxu0
        %v1812 = vpop.f32.mrb[0].mxu0
        %v1813 = vadd.f32 0.0, %v1812
        %v1814 = vpop.f32.mrb[0].mxu0
        %1815 = vmatprep.mubr.bf16.mxu0 0
        %1816 = vmatmul.mubr.bf16.gmra.mrb[0].mxu0 %v1661
        %v1817 = vpop.f32.mrb[0].mxu0
        %v1818 = vadd.f32 0.0, %v1817
        %v1819 = vpop.f32.mrb[0].mxu0
        %v1820 = vpop.f32.mrb[0].mxu0
        %v1821 = vadd.f32 0.0, %v1820
        %v1822 = vpop.f32.mrb[0].mxu0
        %1823 = vmatprep.mubr.bf16.mxu0 0
        %1824 = vmatmul.mubr.bf16.gmra.mrb[0].mxu0 %v1664
        %v1825 = vpop.f32.mrb[0].mxu0
        %v1826 = vadd.f32 0.0, %v1825
        %v1827 = vpop.f32.mrb[0].mxu0
        %v1828 = vpop.f32.mrb[0].mxu0
        %v1829 = vadd.f32 0.0, %v1828
        %v1830 = vpop.f32.mrb[0].mxu0
        %1831 = vmatprep.mubr.bf16.mxu0 0
        %1832 = vmatmul.mubr.bf16.gmra.mrb[0].mxu0 %v1667
        %v1833 = vpop.f32.mrb[0].mxu0
        %v1834 = vadd.f32 0.0, %v1833
        %v1835 = vpop.f32.mrb[0].mxu0
        %v1836 = vpop.f32.mrb[0].mxu0
        %v1837 = vadd.f32 0.0, %v1836
        %v1838 = vpop.f32.mrb[0].mxu0
        %1839 = vmatprep.mubr.bf16.mxu0 0
        %1840 = vmatmul.mubr.bf16.gmra.mrb[0].mxu0 %v1670
        %v1841 = vpop.f32.mrb[0].mxu0
        %v1842 = vadd.f32 0.0, %v1841
        %v1843 = vpop.f32.mrb[0].mxu0
        %v1844 = vpop.f32.mrb[0].mxu0
        %v1845 = vadd.f32 0.0, %v1844
        %v1846 = vpop.f32.mrb[0].mxu0
        %1847 = vmatprep.mubr.bf16.mxu0 0
        %1848 = vmatmul.mubr.bf16.gmra.mrb[0].mxu0 %v1673
        %v1849 = vpop.f32.mrb[0].mxu0
        %v1850 = vadd.f32 0.0, %v1849
        %v1851 = vpop.f32.mrb[0].mxu0
        %v1852 = vpop.f32.mrb[0].mxu0
        %v1853 = vadd.f32 0.0, %v1852
        %v1854 = vpop.f32.mrb[0].mxu0
        %1855 = vmatprep.mubr.bf16.mxu0 0
        %1856 = vmatmul.mubr.bf16.gmra.mrb[0].mxu0 %v1676
        %v1857 = vpop.f32.mrb[0].mxu0
        %v1858 = vadd.f32 0.0, %v1857
        %v1859 = vpop.f32.mrb[0].mxu0
        %v1860 = vpop.f32.mrb[0].mxu0
        %v1861 = vadd.f32 0.0, %v1860
        %v1862 = vpop.f32.mrb[0].mxu0
        %1863 = vmatprep.mubr.bf16.mxu0 0
        %1864 = vmatmul.mubr.bf16.gmra.mrb[0].mxu0 %v1679
        %v1865 = vpop.f32.mrb[0].mxu0
        %v1866 = vadd.f32 0.0, %v1865
        %v1867 = vpop.f32.mrb[0].mxu0
        %v1868 = vpop.f32.mrb[0].mxu0
        %v1869 = vadd.f32 0.0, %v1868
        %v1870 = vpop.f32.mrb[0].mxu0
        %1871 = vmatprep.mubr.bf16.mxu0 0
        %1872 = vmatmul.mubr.bf16.gmra.mrb[0].mxu0 %v1682
        %v1873 = vpop.f32.mrb[0].mxu0
        %v1874 = vadd.f32 0.0, %v1873
        %v1875 = vpop.f32.mrb[0].mxu0
        %v1876 = vpop.f32.mrb[0].mxu0
        %v1877 = vadd.f32 0.0, %v1876
        %v1878 = vpop.f32.mrb[0].mxu0
        %1879 = vdwg.mxu0
        %v1880 = vadd.f32 %v1522, %v1722
        %v1881 = vadd.f32 %v1523, %v1725
        %v1882 = vadd.f32 %v1524, %v1730
        %v1883 = vadd.f32 %v1525, %v1733
        %v1884 = vadd.f32 %v1526, %v1738
        %v1885 = vadd.f32 %v1527, %v1741
        %v1886 = vadd.f32 %v1528, %v1746
        %v1887 = vadd.f32 %v1529, %v1749
        %v1888 = vadd.f32 %v1530, %v1754
        %v1889 = vadd.f32 %v1531, %v1757
        %v1890 = vadd.f32 %v1532, %v1762
        %v1891 = vadd.f32 %v1533, %v1765
        %v1892 = vadd.f32 %v1534, %v1770
        %v1893 = vadd.f32 %v1535, %v1773
        %v1894 = vadd.f32 %v1536, %v1778
        %v1895 = vadd.f32 %v1537, %v1781
        %v1896 = vadd.f32 %v1538, %v1786
        %v1897 = vadd.f32 %v1539, %v1789
        %v1898 = vadd.f32 %v1540, %v1794
        %v1899 = vadd.f32 %v1541, %v1797
        %v1900 = vadd.f32 %v1542, %v1802
        %v1901 = vadd.f32 %v1543, %v1805
        %v1902 = vadd.f32 %v1544, %v1810
        %v1903 = vadd.f32 %v1545, %v1813
        %v1904 = vadd.f32 %v1546, %v1818
        %v1905 = vadd.f32 %v1547, %v1821
        %v1906 = vadd.f32 %v1548, %v1826
        %v1907 = vadd.f32 %v1549, %v1829
        %v1908 = vadd.f32 %v1550, %v1834
        %v1909 = vadd.f32 %v1551, %v1837
        %v1910 = vadd.f32 %v1552, %v1842
        %v1911 = vadd.f32 %v1553, %v1845
        %v1912 = vadd.f32 %v1554, %v1850
        %v1913 = vadd.f32 %v1555, %v1853
        %v1914 = vadd.f32 %v1556, %v1858
        %v1915 = vadd.f32 %v1557, %v1861
        %v1916 = vadd.f32 %v1558, %v1866
        %v1917 = vadd.f32 %v1559, %v1869
        %v1918 = vadd.f32 %v1560, %v1874
        %v1919 = vadd.f32 %v1561, %v1877
        %v1920 = vld [vmem:[%s206 + $0x16] sm:$0xff]
        %v1921 = vld [vmem:[%s206 + $0x1e] sm:$0xff]
        %v1922 = vld [vmem:[%s206 + $0x26] sm:$0xff]
        %v1923 = vld [vmem:[%s206 + $0x2e] sm:$0xff]
        %v1924 = vld [vmem:[%s206 + $0x36] sm:$0xff]
        %v1925 = vld [vmem:[%s206 + $0x3e] sm:$0xff]
        %v1926 = vld [vmem:[%s206 + $0x46] sm:$0xff]
        %v1927 = vld [vmem:[%s206 + $0x4e] sm:$0xff]
        %v1928 = vld [vmem:[%s206 + $0x56] sm:$0xff]
        %v1929 = vld [vmem:[%s206 + $0x5e] sm:$0xff]
        %v1930 = vld [vmem:[%s206 + $0x66] sm:$0xff]
        %v1931 = vld [vmem:[%s206 + $0x6e] sm:$0xff]
        %v1932 = vld [vmem:[%s206 + $0x76] sm:$0xff]
        %v1933 = vld [vmem:[%s206 + $0x7e] sm:$0xff]
        %v1934 = vld [vmem:[%s206 + $0x86] sm:$0xff]
        %v1935 = vld [vmem:[%s206 + $0x8e] sm:$0xff]
        %v1936 = vld [vmem:[%s206 + $0x96] sm:$0xff]
        %v1937 = vld [vmem:[%s206 + $0x9e] sm:$0xff]
        %v1938 = vld [vmem:[%s206 + $0xa6] sm:$0xff]
        %v1939 = vld [vmem:[%s206 + $0xae] sm:$0xff]
        %v1940 = vld [vmem:[%s206 + $0xb6] sm:$0xff]
        %v1941 = vld [vmem:[%s206 + $0xbe] sm:$0xff]
        %v1942 = vld [vmem:[%s206 + $0xc6] sm:$0xff]
        %v1943 = vld [vmem:[%s206 + $0xce] sm:$0xff]
        %v1944 = vld [vmem:[%s206 + $0xd6] sm:$0xff]
        %v1945 = vld [vmem:[%s206 + $0xde] sm:$0xff]
        %v1946 = vld [vmem:[%s206 + $0xe6] sm:$0xff]
        %v1947 = vld [vmem:[%s206 + $0xee] sm:$0xff]
        %v1948 = vld [vmem:[%s206 + $0xf6] sm:$0xff]
        %v1949 = vld [vmem:[%s206 + $0xfe] sm:$0xff]
        %v1950 = vld [vmem:[%s206 + $0x106] sm:$0xff]
        %v1951 = vld [vmem:[%s206 + $0x10e] sm:$0xff]
        %v1952 = vld [vmem:[%s206 + $0x116] sm:$0xff]
        %v1953 = vld [vmem:[%s206 + $0x11e] sm:$0xff]
        %v1954 = vld [vmem:[%s206 + $0x126] sm:$0xff]
        %v1955 = vld [vmem:[%s206 + $0x12e] sm:$0xff]
        %v1956 = vld [vmem:[%s206 + $0x136] sm:$0xff]
        %v1957 = vld [vmem:[%s206 + $0x13e] sm:$0xff]
        %v1958 = vld [vmem:[%s206 + $0x146] sm:$0xff]
        %v1959 = vld [vmem:[%s206 + $0x14e] sm:$0xff]
        %v1960 = vpack.c.bf16 %v1921, %v1920
        %v1961 = vpack.c.bf16 %v1923, %v1922
        %v1962 = vpack.c.bf16 %v1925, %v1924
        %v1963 = vpack.c.bf16 %v1927, %v1926
        %v1964 = vpack.c.bf16 %v1929, %v1928
        %v1965 = vpack.c.bf16 %v1931, %v1930
        %v1966 = vpack.c.bf16 %v1933, %v1932
        %v1967 = vpack.c.bf16 %v1935, %v1934
        %v1968 = vpack.c.bf16 %v1937, %v1936
        %v1969 = vpack.c.bf16 %v1939, %v1938
        %v1970 = vpack.c.bf16 %v1941, %v1940
        %v1971 = vpack.c.bf16 %v1943, %v1942
        %v1972 = vpack.c.bf16 %v1945, %v1944
        %v1973 = vpack.c.bf16 %v1947, %v1946
        %v1974 = vpack.c.bf16 %v1949, %v1948
        %v1975 = vpack.c.bf16 %v1951, %v1950
        %v1976 = vpack.c.bf16 %v1953, %v1952
        %v1977 = vpack.c.bf16 %v1955, %v1954
        %v1978 = vpack.c.bf16 %v1957, %v1956
        %v1979 = vpack.c.bf16 %v1959, %v1958
        %s1980 = scalar_lea.vmem %s1, 10
        %v1981 = vld [vmem:[%s1980] sm:$0x3]
        %v1983 = vsel %vm332, %v1960, 0
        %v1986 = vsel %vm332, %v1961, 0
        %v1989 = vsel %vm332, %v1962, 0
        %v1992 = vsel %vm332, %v1963, 0
        %v1995 = vsel %vm332, %v1964, 0
        %v1998 = vsel %vm332, %v1965, 0
        %v2001 = vsel %vm332, %v1966, 0
        %v2004 = vsel %vm332, %v1967, 0
        %v2007 = vsel %vm332, %v1968, 0
        %v2010 = vsel %vm332, %v1969, 0
        %v2013 = vsel %vm332, %v1970, 0
        %v2016 = vsel %vm332, %v1971, 0
        %v2019 = vsel %vm332, %v1972, 0
        %v2022 = vsel %vm332, %v1973, 0
        %v2025 = vsel %vm332, %v1974, 0
        %v2028 = vsel %vm332, %v1975, 0
        %v2031 = vsel %vm332, %v1976, 0
        %v2034 = vsel %vm332, %v1977, 0
        %v2037 = vsel %vm332, %v1978, 0
        %v2040 = vsel %vm332, %v1979, 0
        %v2043 = vsel %vm393, %v1981, 0
        %2045 = vmatprep.subr.bf16.mxu0 0
        %2046 = vmatpush1.bf16.msra.mxu0 %v2043
        %2047 = vmatprep.subr.bf16.mxu0 0
        %2048 = vmatpush1.bf16.msra.mxu0 0
        %2049 = vmatprep.subr.bf16.mxu0 0
        %2050 = vmatpush1.bf16.msra.mxu0 0
        %2051 = vmatprep.subr.bf16.mxu0 0
        %2052 = vmatpush1.bf16.msra.mxu0 0
        %2053 = vmatprep.subr.bf16.mxu0 0
        %2054 = vmatpush1.bf16.msra.mxu0 0
        %2055 = vmatprep.subr.bf16.mxu0 0
        %2056 = vmatpush1.bf16.msra.mxu0 0
        %2057 = vmatprep.subr.bf16.mxu0 0
        %2058 = vmatpush1.bf16.msra.mxu0 0
        %2059 = vmatprep.subr.bf16.mxu0 0
        %2060 = vmatpush1.bf16.msra.mxu0 0
        %2061 = vmatprep.subr.bf16.mxu0 0
        %2062 = vmatpush1.bf16.msra.mxu0 0
        %2063 = vmatprep.subr.bf16.mxu0 0
        %2064 = vmatpush1.bf16.msra.mxu0 0
        %2065 = vmatprep.subr.bf16.mxu0 0
        %2066 = vmatpush1.bf16.msra.mxu0 0
        %2067 = vmatprep.subr.bf16.mxu0 0
        %2068 = vmatpush1.bf16.msra.mxu0 0
        %2069 = vmatprep.subr.bf16.mxu0 0
        %2070 = vmatpush1.bf16.msra.mxu0 0
        %2071 = vmatprep.subr.bf16.mxu0 0
        %2072 = vmatpush1.bf16.msra.mxu0 0
        %2073 = vmatprep.subr.bf16.mxu0 0
        %2074 = vmatpush1.bf16.msra.mxu0 0
        %2075 = vmatprep.subr.bf16.mxu0 0
        %2076 = vmatpush1.bf16.msra.mxu0 0
        %2077 = vmatprep.mubr.bf16.mxu0 0
        %2078 = vmatmul.mubr.bf16.gmra.mrb[0].mxu0 %v1983
        %v2079 = vpop.f32.mrb[0].mxu0
        %v2080 = vadd.f32 0.0, %v2079
        %v2081 = vpop.f32.mrb[0].mxu0
        %v2082 = vpop.f32.mrb[0].mxu0
        %v2083 = vadd.f32 0.0, %v2082
        %v2084 = vpop.f32.mrb[0].mxu0
        %2085 = vmatprep.mubr.bf16.mxu0 0
        %2086 = vmatmul.mubr.bf16.gmra.mrb[0].mxu0 %v1986
        %v2087 = vpop.f32.mrb[0].mxu0
        %v2088 = vadd.f32 0.0, %v2087
        %v2089 = vpop.f32.mrb[0].mxu0
        %v2090 = vpop.f32.mrb[0].mxu0
        %v2091 = vadd.f32 0.0, %v2090
        %v2092 = vpop.f32.mrb[0].mxu0
        %2093 = vmatprep.mubr.bf16.mxu0 0
        %2094 = vmatmul.mubr.bf16.gmra.mrb[0].mxu0 %v1989
        %v2095 = vpop.f32.mrb[0].mxu0
        %v2096 = vadd.f32 0.0, %v2095
        %v2097 = vpop.f32.mrb[0].mxu0
        %v2098 = vpop.f32.mrb[0].mxu0
        %v2099 = vadd.f32 0.0, %v2098
        %v2100 = vpop.f32.mrb[0].mxu0
        %2101 = vmatprep.mubr.bf16.mxu0 0
        %2102 = vmatmul.mubr.bf16.gmra.mrb[0].mxu0 %v1992
        %v2103 = vpop.f32.mrb[0].mxu0
        %v2104 = vadd.f32 0.0, %v2103
        %v2105 = vpop.f32.mrb[0].mxu0
        %v2106 = vpop.f32.mrb[0].mxu0
        %v2107 = vadd.f32 0.0, %v2106
        %v2108 = vpop.f32.mrb[0].mxu0
        %2109 = vmatprep.mubr.bf16.mxu0 0
        %2110 = vmatmul.mubr.bf16.gmra.mrb[0].mxu0 %v1995
        %v2111 = vpop.f32.mrb[0].mxu0
        %v2112 = vadd.f32 0.0, %v2111
        %v2113 = vpop.f32.mrb[0].mxu0
        %v2114 = vpop.f32.mrb[0].mxu0
        %v2115 = vadd.f32 0.0, %v2114
        %v2116 = vpop.f32.mrb[0].mxu0
        %2117 = vmatprep.mubr.bf16.mxu0 0
        %2118 = vmatmul.mubr.bf16.gmra.mrb[0].mxu0 %v1998
        %v2119 = vpop.f32.mrb[0].mxu0
        %v2120 = vadd.f32 0.0, %v2119
        %v2121 = vpop.f32.mrb[0].mxu0
        %v2122 = vpop.f32.mrb[0].mxu0
        %v2123 = vadd.f32 0.0, %v2122
        %v2124 = vpop.f32.mrb[0].mxu0
        %2125 = vmatprep.mubr.bf16.mxu0 0
        %2126 = vmatmul.mubr.bf16.gmra.mrb[0].mxu0 %v2001
        %v2127 = vpop.f32.mrb[0].mxu0
        %v2128 = vadd.f32 0.0, %v2127
        %v2129 = vpop.f32.mrb[0].mxu0
        %v2130 = vpop.f32.mrb[0].mxu0
        %v2131 = vadd.f32 0.0, %v2130
        %v2132 = vpop.f32.mrb[0].mxu0
        %2133 = vmatprep.mubr.bf16.mxu0 0
        %2134 = vmatmul.mubr.bf16.gmra.mrb[0].mxu0 %v2004
        %v2135 = vpop.f32.mrb[0].mxu0
        %v2136 = vadd.f32 0.0, %v2135
        %v2137 = vpop.f32.mrb[0].mxu0
        %v2138 = vpop.f32.mrb[0].mxu0
        %v2139 = vadd.f32 0.0, %v2138
        %v2140 = vpop.f32.mrb[0].mxu0
        %2141 = vmatprep.mubr.bf16.mxu0 0
        %2142 = vmatmul.mubr.bf16.gmra.mrb[0].mxu0 %v2007
        %v2143 = vpop.f32.mrb[0].mxu0
        %v2144 = vadd.f32 0.0, %v2143
        %v2145 = vpop.f32.mrb[0].mxu0
        %v2146 = vpop.f32.mrb[0].mxu0
        %v2147 = vadd.f32 0.0, %v2146
        %v2148 = vpop.f32.mrb[0].mxu0
        %2149 = vmatprep.mubr.bf16.mxu0 0
        %2150 = vmatmul.mubr.bf16.gmra.mrb[0].mxu0 %v2010
        %v2151 = vpop.f32.mrb[0].mxu0
        %v2152 = vadd.f32 0.0, %v2151
        %v2153 = vpop.f32.mrb[0].mxu0
        %v2154 = vpop.f32.mrb[0].mxu0
        %v2155 = vadd.f32 0.0, %v2154
        %v2156 = vpop.f32.mrb[0].mxu0
        %2157 = vmatprep.mubr.bf16.mxu0 0
        %2158 = vmatmul.mubr.bf16.gmra.mrb[0].mxu0 %v2013
        %v2159 = vpop.f32.mrb[0].mxu0
        %v2160 = vadd.f32 0.0, %v2159
        %v2161 = vpop.f32.mrb[0].mxu0
        %v2162 = vpop.f32.mrb[0].mxu0
        %v2163 = vadd.f32 0.0, %v2162
        %v2164 = vpop.f32.mrb[0].mxu0
        %2165 = vmatprep.mubr.bf16.mxu0 0
        %2166 = vmatmul.mubr.bf16.gmra.mrb[0].mxu0 %v2016
        %v2167 = vpop.f32.mrb[0].mxu0
        %v2168 = vadd.f32 0.0, %v2167
        %v2169 = vpop.f32.mrb[0].mxu0
        %v2170 = vpop.f32.mrb[0].mxu0
        %v2171 = vadd.f32 0.0, %v2170
        %v2172 = vpop.f32.mrb[0].mxu0
        %2173 = vmatprep.mubr.bf16.mxu0 0
        %2174 = vmatmul.mubr.bf16.gmra.mrb[0].mxu0 %v2019
        %v2175 = vpop.f32.mrb[0].mxu0
        %v2176 = vadd.f32 0.0, %v2175
        %v2177 = vpop.f32.mrb[0].mxu0
        %v2178 = vpop.f32.mrb[0].mxu0
        %v2179 = vadd.f32 0.0, %v2178
        %v2180 = vpop.f32.mrb[0].mxu0
        %2181 = vmatprep.mubr.bf16.mxu0 0
        %2182 = vmatmul.mubr.bf16.gmra.mrb[0].mxu0 %v2022
        %v2183 = vpop.f32.mrb[0].mxu0
        %v2184 = vadd.f32 0.0, %v2183
        %v2185 = vpop.f32.mrb[0].mxu0
        %v2186 = vpop.f32.mrb[0].mxu0
        %v2187 = vadd.f32 0.0, %v2186
        %v2188 = vpop.f32.mrb[0].mxu0
        %2189 = vmatprep.mubr.bf16.mxu0 0
        %2190 = vmatmul.mubr.bf16.gmra.mrb[0].mxu0 %v2025
        %v2191 = vpop.f32.mrb[0].mxu0
        %v2192 = vadd.f32 0.0, %v2191
        %v2193 = vpop.f32.mrb[0].mxu0
        %v2194 = vpop.f32.mrb[0].mxu0
        %v2195 = vadd.f32 0.0, %v2194
        %v2196 = vpop.f32.mrb[0].mxu0
        %2197 = vmatprep.mubr.bf16.mxu0 0
        %2198 = vmatmul.mubr.bf16.gmra.mrb[0].mxu0 %v2028
        %v2199 = vpop.f32.mrb[0].mxu0
        %v2200 = vadd.f32 0.0, %v2199
        %v2201 = vpop.f32.mrb[0].mxu0
        %v2202 = vpop.f32.mrb[0].mxu0
        %v2203 = vadd.f32 0.0, %v2202
        %v2204 = vpop.f32.mrb[0].mxu0
        %2205 = vmatprep.mubr.bf16.mxu0 0
        %2206 = vmatmul.mubr.bf16.gmra.mrb[0].mxu0 %v2031
        %v2207 = vpop.f32.mrb[0].mxu0
        %v2208 = vadd.f32 0.0, %v2207
        %v2209 = vpop.f32.mrb[0].mxu0
        %v2210 = vpop.f32.mrb[0].mxu0
        %v2211 = vadd.f32 0.0, %v2210
        %v2212 = vpop.f32.mrb[0].mxu0
        %2213 = vmatprep.mubr.bf16.mxu0 0
        %2214 = vmatmul.mubr.bf16.gmra.mrb[0].mxu0 %v2034
        %v2215 = vpop.f32.mrb[0].mxu0
        %v2216 = vadd.f32 0.0, %v2215
        %v2217 = vpop.f32.mrb[0].mxu0
        %v2218 = vpop.f32.mrb[0].mxu0
        %v2219 = vadd.f32 0.0, %v2218
        %v2220 = vpop.f32.mrb[0].mxu0
        %2221 = vmatprep.mubr.bf16.mxu0 0
        %2222 = vmatmul.mubr.bf16.gmra.mrb[0].mxu0 %v2037
        %v2223 = vpop.f32.mrb[0].mxu0
        %v2224 = vadd.f32 0.0, %v2223
        %v2225 = vpop.f32.mrb[0].mxu0
        %v2226 = vpop.f32.mrb[0].mxu0
        %v2227 = vadd.f32 0.0, %v2226
        %v2228 = vpop.f32.mrb[0].mxu0
        %2229 = vmatprep.mubr.bf16.mxu0 0
        %2230 = vmatmul.mubr.bf16.gmra.mrb[0].mxu0 %v2040
        %v2231 = vpop.f32.mrb[0].mxu0
        %v2232 = vadd.f32 0.0, %v2231
        %v2233 = vpop.f32.mrb[0].mxu0
        %v2234 = vpop.f32.mrb[0].mxu0
        %v2235 = vadd.f32 0.0, %v2234
        %v2236 = vpop.f32.mrb[0].mxu0
        %2237 = vdwg.mxu0
        %v2238 = vadd.f32 %v1880, %v2080
        %v2239 = vadd.f32 %v1881, %v2083
        %v2240 = vadd.f32 %v1882, %v2088
        %v2241 = vadd.f32 %v1883, %v2091
        %v2242 = vadd.f32 %v1884, %v2096
        %v2243 = vadd.f32 %v1885, %v2099
        %v2244 = vadd.f32 %v1886, %v2104
        %v2245 = vadd.f32 %v1887, %v2107
        %v2246 = vadd.f32 %v1888, %v2112
        %v2247 = vadd.f32 %v1889, %v2115
        %v2248 = vadd.f32 %v1890, %v2120
        %v2249 = vadd.f32 %v1891, %v2123
        %v2250 = vadd.f32 %v1892, %v2128
        %v2251 = vadd.f32 %v1893, %v2131
        %v2252 = vadd.f32 %v1894, %v2136
        %v2253 = vadd.f32 %v1895, %v2139
        %v2254 = vadd.f32 %v1896, %v2144
        %v2255 = vadd.f32 %v1897, %v2147
        %v2256 = vadd.f32 %v1898, %v2152
        %v2257 = vadd.f32 %v1899, %v2155
        %v2258 = vadd.f32 %v1900, %v2160
        %v2259 = vadd.f32 %v1901, %v2163
        %v2260 = vadd.f32 %v1902, %v2168
        %v2261 = vadd.f32 %v1903, %v2171
        %v2262 = vadd.f32 %v1904, %v2176
        %v2263 = vadd.f32 %v1905, %v2179
        %v2264 = vadd.f32 %v1906, %v2184
        %v2265 = vadd.f32 %v1907, %v2187
        %v2266 = vadd.f32 %v1908, %v2192
        %v2267 = vadd.f32 %v1909, %v2195
        %v2268 = vadd.f32 %v1910, %v2200
        %v2269 = vadd.f32 %v1911, %v2203
        %v2270 = vadd.f32 %v1912, %v2208
        %v2271 = vadd.f32 %v1913, %v2211
        %v2272 = vadd.f32 %v1914, %v2216
        %v2273 = vadd.f32 %v1915, %v2219
        %v2274 = vadd.f32 %v1916, %v2224
        %v2275 = vadd.f32 %v1917, %v2227
        %v2276 = vadd.f32 %v1918, %v2232
        %v2277 = vadd.f32 %v1919, %v2235
        %v2278 = vld [vmem:[%s206 + $0x28] sm:$0xff]
        %v2279 = vld [vmem:[%s206 + $0x30] sm:$0xff]
        %v2280 = vld [vmem:[%s206 + $0x38] sm:$0xff]
        %v2281 = vld [vmem:[%s206 + $0x40] sm:$0xff]
        %v2282 = vld [vmem:[%s206 + $0x48] sm:$0xff]
        %v2283 = vld [vmem:[%s206 + $0x50] sm:$0xff]
        %v2284 = vld [vmem:[%s206 + $0x58] sm:$0xff]
        %v2285 = vld [vmem:[%s206 + $0x60] sm:$0xff]
        %v2286 = vld [vmem:[%s206 + $0x68] sm:$0xff]
        %v2287 = vld [vmem:[%s206 + $0x70] sm:$0xff]
        %v2288 = vld [vmem:[%s206 + $0x78] sm:$0xff]
        %v2289 = vld [vmem:[%s206 + $0x80] sm:$0xff]
        %v2290 = vld [vmem:[%s206 + $0x88] sm:$0xff]
        %v2291 = vld [vmem:[%s206 + $0x90] sm:$0xff]
        %v2292 = vld [vmem:[%s206 + $0x98] sm:$0xff]
        %v2293 = vld [vmem:[%s206 + $0xa0] sm:$0xff]
        %v2294 = vld [vmem:[%s206 + $0xa8] sm:$0xff]
        %v2295 = vld [vmem:[%s206 + $0xb0] sm:$0xff]
        %v2296 = vld [vmem:[%s206 + $0xb8] sm:$0xff]
        %v2297 = vld [vmem:[%s206 + $0xc0] sm:$0xff]
        %v2298 = vld [vmem:[%s206 + $0xc8] sm:$0xff]
        %v2299 = vld [vmem:[%s206 + $0xd0] sm:$0xff]
        %v2300 = vld [vmem:[%s206 + $0xd8] sm:$0xff]
        %v2301 = vld [vmem:[%s206 + $0xe0] sm:$0xff]
        %v2302 = vld [vmem:[%s206 + $0xe8] sm:$0xff]
        %v2303 = vld [vmem:[%s206 + $0xf0] sm:$0xff]
        %v2304 = vld [vmem:[%s206 + $0xf8] sm:$0xff]
        %v2305 = vld [vmem:[%s206 + $0x100] sm:$0xff]
        %v2306 = vld [vmem:[%s206 + $0x108] sm:$0xff]
        %v2307 = vld [vmem:[%s206 + $0x110] sm:$0xff]
        %v2308 = vld [vmem:[%s206 + $0x118] sm:$0xff]
        %v2309 = vld [vmem:[%s206 + $0x120] sm:$0xff]
        %v2310 = vld [vmem:[%s206 + $0x128] sm:$0xff]
        %v2311 = vld [vmem:[%s206 + $0x130] sm:$0xff]
        %v2312 = vld [vmem:[%s206 + $0x138] sm:$0xff]
        %v2313 = vld [vmem:[%s206 + $0x140] sm:$0xff]
        %v2314 = vld [vmem:[%s206 + $0x148] sm:$0xff]
        %v2315 = vld [vmem:[%s206 + $0x150] sm:$0xff]
        %v2316 = vld [vmem:[%s206 + $0x158] sm:$0xff]
        %v2317 = vld [vmem:[%s206 + $0x160] sm:$0xff]
        %v2318 = vpack.c.bf16 %v2279, %v2278
        %v2319 = vpack.c.bf16 %v2281, %v2280
        %v2320 = vpack.c.bf16 %v2283, %v2282
        %v2321 = vpack.c.bf16 %v2285, %v2284
        %v2322 = vpack.c.bf16 %v2287, %v2286
        %v2323 = vpack.c.bf16 %v2289, %v2288
        %v2324 = vpack.c.bf16 %v2291, %v2290
        %v2325 = vpack.c.bf16 %v2293, %v2292
        %v2326 = vpack.c.bf16 %v2295, %v2294
        %v2327 = vpack.c.bf16 %v2297, %v2296
        %v2328 = vpack.c.bf16 %v2299, %v2298
        %v2329 = vpack.c.bf16 %v2301, %v2300
        %v2330 = vpack.c.bf16 %v2303, %v2302
        %v2331 = vpack.c.bf16 %v2305, %v2304
        %v2332 = vpack.c.bf16 %v2307, %v2306
        %v2333 = vpack.c.bf16 %v2309, %v2308
        %v2334 = vpack.c.bf16 %v2311, %v2310
        %v2335 = vpack.c.bf16 %v2313, %v2312
        %v2336 = vpack.c.bf16 %v2315, %v2314
        %v2337 = vpack.c.bf16 %v2317, %v2316
        %s2338 = scalar_lea.vmem %s1, 12
        %v2339 = vld [vmem:[%s2338] sm:$0x3]
        %v2341 = vsel %vm332, %v2318, 0
        %v2344 = vsel %vm332, %v2319, 0
        %v2347 = vsel %vm332, %v2320, 0
        %v2350 = vsel %vm332, %v2321, 0
        %v2353 = vsel %vm332, %v2322, 0
        %v2356 = vsel %vm332, %v2323, 0
        %v2359 = vsel %vm332, %v2324, 0
        %v2362 = vsel %vm332, %v2325, 0
        %v2365 = vsel %vm332, %v2326, 0
        %v2368 = vsel %vm332, %v2327, 0
        %v2371 = vsel %vm332, %v2328, 0
        %v2374 = vsel %vm332, %v2329, 0
        %v2377 = vsel %vm332, %v2330, 0
        %v2380 = vsel %vm332, %v2331, 0
        %v2383 = vsel %vm332, %v2332, 0
        %v2386 = vsel %vm332, %v2333, 0
        %v2389 = vsel %vm332, %v2334, 0
        %v2392 = vsel %vm332, %v2335, 0
        %v2395 = vsel %vm332, %v2336, 0
        %v2398 = vsel %vm332, %v2337, 0
        %v2401 = vsel %vm393, %v2339, 0
        %2403 = vmatprep.subr.bf16.mxu0 0
        %2404 = vmatpush1.bf16.msra.mxu0 %v2401
        %2405 = vmatprep.subr.bf16.mxu0 0
        %2406 = vmatpush1.bf16.msra.mxu0 0
        %2407 = vmatprep.subr.bf16.mxu0 0
        %2408 = vmatpush1.bf16.msra.mxu0 0
        %2409 = vmatprep.subr.bf16.mxu0 0
        %2410 = vmatpush1.bf16.msra.mxu0 0
        %2411 = vmatprep.subr.bf16.mxu0 0
        %2412 = vmatpush1.bf16.msra.mxu0 0
        %2413 = vmatprep.subr.bf16.mxu0 0
        %2414 = vmatpush1.bf16.msra.mxu0 0
        %2415 = vmatprep.subr.bf16.mxu0 0
        %2416 = vmatpush1.bf16.msra.mxu0 0
        %2417 = vmatprep.subr.bf16.mxu0 0
        %2418 = vmatpush1.bf16.msra.mxu0 0
        %2419 = vmatprep.subr.bf16.mxu0 0
        %2420 = vmatpush1.bf16.msra.mxu0 0
        %2421 = vmatprep.subr.bf16.mxu0 0
        %2422 = vmatpush1.bf16.msra.mxu0 0
        %2423 = vmatprep.subr.bf16.mxu0 0
        %2424 = vmatpush1.bf16.msra.mxu0 0
        %2425 = vmatprep.subr.bf16.mxu0 0
        %2426 = vmatpush1.bf16.msra.mxu0 0
        %2427 = vmatprep.subr.bf16.mxu0 0
        %2428 = vmatpush1.bf16.msra.mxu0 0
        %2429 = vmatprep.subr.bf16.mxu0 0
        %2430 = vmatpush1.bf16.msra.mxu0 0
        %2431 = vmatprep.subr.bf16.mxu0 0
        %2432 = vmatpush1.bf16.msra.mxu0 0
        %2433 = vmatprep.subr.bf16.mxu0 0
        %2434 = vmatpush1.bf16.msra.mxu0 0
        %2435 = vmatprep.mubr.bf16.mxu0 0
        %2436 = vmatmul.mubr.bf16.gmra.mrb[0].mxu0 %v2341
        %v2437 = vpop.f32.mrb[0].mxu0
        %v2438 = vadd.f32 0.0, %v2437
        %v2439 = vpop.f32.mrb[0].mxu0
        %v2440 = vpop.f32.mrb[0].mxu0
        %v2441 = vadd.f32 0.0, %v2440
        %v2442 = vpop.f32.mrb[0].mxu0
        %2443 = vmatprep.mubr.bf16.mxu0 0
        %2444 = vmatmul.mubr.bf16.gmra.mrb[0].mxu0 %v2344
        %v2445 = vpop.f32.mrb[0].mxu0
        %v2446 = vadd.f32 0.0, %v2445
        %v2447 = vpop.f32.mrb[0].mxu0
        %v2448 = vpop.f32.mrb[0].mxu0
        %v2449 = vadd.f32 0.0, %v2448
        %v2450 = vpop.f32.mrb[0].mxu0
        %2451 = vmatprep.mubr.bf16.mxu0 0
        %2452 = vmatmul.mubr.bf16.gmra.mrb[0].mxu0 %v2347
        %v2453 = vpop.f32.mrb[0].mxu0
        %v2454 = vadd.f32 0.0, %v2453
        %v2455 = vpop.f32.mrb[0].mxu0
        %v2456 = vpop.f32.mrb[0].mxu0
        %v2457 = vadd.f32 0.0, %v2456
        %v2458 = vpop.f32.mrb[0].mxu0
        %2459 = vmatprep.mubr.bf16.mxu0 0
        %2460 = vmatmul.mubr.bf16.gmra.mrb[0].mxu0 %v2350
        %v2461 = vpop.f32.mrb[0].mxu0
        %v2462 = vadd.f32 0.0, %v2461
        %v2463 = vpop.f32.mrb[0].mxu0
        %v2464 = vpop.f32.mrb[0].mxu0
        %v2465 = vadd.f32 0.0, %v2464
        %v2466 = vpop.f32.mrb[0].mxu0
        %2467 = vmatprep.mubr.bf16.mxu0 0
        %2468 = vmatmul.mubr.bf16.gmra.mrb[0].mxu0 %v2353
        %v2469 = vpop.f32.mrb[0].mxu0
        %v2470 = vadd.f32 0.0, %v2469
        %v2471 = vpop.f32.mrb[0].mxu0
        %v2472 = vpop.f32.mrb[0].mxu0
        %v2473 = vadd.f32 0.0, %v2472
        %v2474 = vpop.f32.mrb[0].mxu0
        %2475 = vmatprep.mubr.bf16.mxu0 0
        %2476 = vmatmul.mubr.bf16.gmra.mrb[0].mxu0 %v2356
        %v2477 = vpop.f32.mrb[0].mxu0
        %v2478 = vadd.f32 0.0, %v2477
        %v2479 = vpop.f32.mrb[0].mxu0
        %v2480 = vpop.f32.mrb[0].mxu0
        %v2481 = vadd.f32 0.0, %v2480
        %v2482 = vpop.f32.mrb[0].mxu0
        %2483 = vmatprep.mubr.bf16.mxu0 0
        %2484 = vmatmul.mubr.bf16.gmra.mrb[0].mxu0 %v2359
        %v2485 = vpop.f32.mrb[0].mxu0
        %v2486 = vadd.f32 0.0, %v2485
        %v2487 = vpop.f32.mrb[0].mxu0
        %v2488 = vpop.f32.mrb[0].mxu0
        %v2489 = vadd.f32 0.0, %v2488
        %v2490 = vpop.f32.mrb[0].mxu0
        %2491 = vmatprep.mubr.bf16.mxu0 0
        %2492 = vmatmul.mubr.bf16.gmra.mrb[0].mxu0 %v2362
        %v2493 = vpop.f32.mrb[0].mxu0
        %v2494 = vadd.f32 0.0, %v2493
        %v2495 = vpop.f32.mrb[0].mxu0
        %v2496 = vpop.f32.mrb[0].mxu0
        %v2497 = vadd.f32 0.0, %v2496
        %v2498 = vpop.f32.mrb[0].mxu0
        %2499 = vmatprep.mubr.bf16.mxu0 0
        %2500 = vmatmul.mubr.bf16.gmra.mrb[0].mxu0 %v2365
        %v2501 = vpop.f32.mrb[0].mxu0
        %v2502 = vadd.f32 0.0, %v2501
        %v2503 = vpop.f32.mrb[0].mxu0
        %v2504 = vpop.f32.mrb[0].mxu0
        %v2505 = vadd.f32 0.0, %v2504
        %v2506 = vpop.f32.mrb[0].mxu0
        %2507 = vmatprep.mubr.bf16.mxu0 0
        %2508 = vmatmul.mubr.bf16.gmra.mrb[0].mxu0 %v2368
        %v2509 = vpop.f32.mrb[0].mxu0
        %v2510 = vadd.f32 0.0, %v2509
        %v2511 = vpop.f32.mrb[0].mxu0
        %v2512 = vpop.f32.mrb[0].mxu0
        %v2513 = vadd.f32 0.0, %v2512
        %v2514 = vpop.f32.mrb[0].mxu0
        %2515 = vmatprep.mubr.bf16.mxu0 0
        %2516 = vmatmul.mubr.bf16.gmra.mrb[0].mxu0 %v2371
        %v2517 = vpop.f32.mrb[0].mxu0
        %v2518 = vadd.f32 0.0, %v2517
        %v2519 = vpop.f32.mrb[0].mxu0
        %v2520 = vpop.f32.mrb[0].mxu0
        %v2521 = vadd.f32 0.0, %v2520
        %v2522 = vpop.f32.mrb[0].mxu0
        %2523 = vmatprep.mubr.bf16.mxu0 0
        %2524 = vmatmul.mubr.bf16.gmra.mrb[0].mxu0 %v2374
        %v2525 = vpop.f32.mrb[0].mxu0
        %v2526 = vadd.f32 0.0, %v2525
        %v2527 = vpop.f32.mrb[0].mxu0
        %v2528 = vpop.f32.mrb[0].mxu0
        %v2529 = vadd.f32 0.0, %v2528
        %v2530 = vpop.f32.mrb[0].mxu0
        %2531 = vmatprep.mubr.bf16.mxu0 0
        %2532 = vmatmul.mubr.bf16.gmra.mrb[0].mxu0 %v2377
        %v2533 = vpop.f32.mrb[0].mxu0
        %v2534 = vadd.f32 0.0, %v2533
        %v2535 = vpop.f32.mrb[0].mxu0
        %v2536 = vpop.f32.mrb[0].mxu0
        %v2537 = vadd.f32 0.0, %v2536
        %v2538 = vpop.f32.mrb[0].mxu0
        %2539 = vmatprep.mubr.bf16.mxu0 0
        %2540 = vmatmul.mubr.bf16.gmra.mrb[0].mxu0 %v2380
        %v2541 = vpop.f32.mrb[0].mxu0
        %v2542 = vadd.f32 0.0, %v2541
        %v2543 = vpop.f32.mrb[0].mxu0
        %v2544 = vpop.f32.mrb[0].mxu0
        %v2545 = vadd.f32 0.0, %v2544
        %v2546 = vpop.f32.mrb[0].mxu0
        %2547 = vmatprep.mubr.bf16.mxu0 0
        %2548 = vmatmul.mubr.bf16.gmra.mrb[0].mxu0 %v2383
        %v2549 = vpop.f32.mrb[0].mxu0
        %v2550 = vadd.f32 0.0, %v2549
        %v2551 = vpop.f32.mrb[0].mxu0
        %v2552 = vpop.f32.mrb[0].mxu0
        %v2553 = vadd.f32 0.0, %v2552
        %v2554 = vpop.f32.mrb[0].mxu0
        %2555 = vmatprep.mubr.bf16.mxu0 0
        %2556 = vmatmul.mubr.bf16.gmra.mrb[0].mxu0 %v2386
        %v2557 = vpop.f32.mrb[0].mxu0
        %v2558 = vadd.f32 0.0, %v2557
        %v2559 = vpop.f32.mrb[0].mxu0
        %v2560 = vpop.f32.mrb[0].mxu0
        %v2561 = vadd.f32 0.0, %v2560
        %v2562 = vpop.f32.mrb[0].mxu0
        %2563 = vmatprep.mubr.bf16.mxu0 0
        %2564 = vmatmul.mubr.bf16.gmra.mrb[0].mxu0 %v2389
        %v2565 = vpop.f32.mrb[0].mxu0
        %v2566 = vadd.f32 0.0, %v2565
        %v2567 = vpop.f32.mrb[0].mxu0
        %v2568 = vpop.f32.mrb[0].mxu0
        %v2569 = vadd.f32 0.0, %v2568
        %v2570 = vpop.f32.mrb[0].mxu0
        %2571 = vmatprep.mubr.bf16.mxu0 0
        %2572 = vmatmul.mubr.bf16.gmra.mrb[0].mxu0 %v2392
        %v2573 = vpop.f32.mrb[0].mxu0
        %v2574 = vadd.f32 0.0, %v2573
        %v2575 = vpop.f32.mrb[0].mxu0
        %v2576 = vpop.f32.mrb[0].mxu0
        %v2577 = vadd.f32 0.0, %v2576
        %v2578 = vpop.f32.mrb[0].mxu0
        %2579 = vmatprep.mubr.bf16.mxu0 0
        %2580 = vmatmul.mubr.bf16.gmra.mrb[0].mxu0 %v2395
        %v2581 = vpop.f32.mrb[0].mxu0
        %v2582 = vadd.f32 0.0, %v2581
        %v2583 = vpop.f32.mrb[0].mxu0
        %v2584 = vpop.f32.mrb[0].mxu0
        %v2585 = vadd.f32 0.0, %v2584
        %v2586 = vpop.f32.mrb[0].mxu0
        %2587 = vmatprep.mubr.bf16.mxu0 0
        %2588 = vmatmul.mubr.bf16.gmra.mrb[0].mxu0 %v2398
        %v2589 = vpop.f32.mrb[0].mxu0
        %v2590 = vadd.f32 0.0, %v2589
        %v2591 = vpop.f32.mrb[0].mxu0
        %v2592 = vpop.f32.mrb[0].mxu0
        %v2593 = vadd.f32 0.0, %v2592
        %v2594 = vpop.f32.mrb[0].mxu0
        %2595 = vdwg.mxu0
        %v2596 = vadd.f32 %v2238, %v2438
        %v2597 = vadd.f32 %v2239, %v2441
        %v2598 = vadd.f32 %v2240, %v2446
        %v2599 = vadd.f32 %v2241, %v2449
        %v2600 = vadd.f32 %v2242, %v2454
        %v2601 = vadd.f32 %v2243, %v2457
        %v2602 = vadd.f32 %v2244, %v2462
        %v2603 = vadd.f32 %v2245, %v2465
        %v2604 = vadd.f32 %v2246, %v2470
        %v2605 = vadd.f32 %v2247, %v2473
        %v2606 = vadd.f32 %v2248, %v2478
        %v2607 = vadd.f32 %v2249, %v2481
        %v2608 = vadd.f32 %v2250, %v2486
        %v2609 = vadd.f32 %v2251, %v2489
        %v2610 = vadd.f32 %v2252, %v2494
        %v2611 = vadd.f32 %v2253, %v2497
        %v2612 = vadd.f32 %v2254, %v2502
        %v2613 = vadd.f32 %v2255, %v2505
        %v2614 = vadd.f32 %v2256, %v2510
        %v2615 = vadd.f32 %v2257, %v2513
        %v2616 = vadd.f32 %v2258, %v2518
        %v2617 = vadd.f32 %v2259, %v2521
        %v2618 = vadd.f32 %v2260, %v2526
        %v2619 = vadd.f32 %v2261, %v2529
        %v2620 = vadd.f32 %v2262, %v2534
        %v2621 = vadd.f32 %v2263, %v2537
        %v2622 = vadd.f32 %v2264, %v2542
        %v2623 = vadd.f32 %v2265, %v2545
        %v2624 = vadd.f32 %v2266, %v2550
        %v2625 = vadd.f32 %v2267, %v2553
        %v2626 = vadd.f32 %v2268, %v2558
        %v2627 = vadd.f32 %v2269, %v2561
        %v2628 = vadd.f32 %v2270, %v2566
        %v2629 = vadd.f32 %v2271, %v2569
        %v2630 = vadd.f32 %v2272, %v2574
        %v2631 = vadd.f32 %v2273, %v2577
        %v2632 = vadd.f32 %v2274, %v2582
        %v2633 = vadd.f32 %v2275, %v2585
        %v2634 = vadd.f32 %v2276, %v2590
        %v2635 = vadd.f32 %v2277, %v2593
        %v2636 = vld [vmem:[%s206 + $0x29] sm:$0xff]
        %v2637 = vld [vmem:[%s206 + $0x31] sm:$0xff]
        %v2638 = vld [vmem:[%s206 + $0x39] sm:$0xff]
        %v2639 = vld [vmem:[%s206 + $0x41] sm:$0xff]
        %v2640 = vld [vmem:[%s206 + $0x49] sm:$0xff]
        %v2641 = vld [vmem:[%s206 + $0x51] sm:$0xff]
        %v2642 = vld [vmem:[%s206 + $0x59] sm:$0xff]
        %v2643 = vld [vmem:[%s206 + $0x61] sm:$0xff]
        %v2644 = vld [vmem:[%s206 + $0x69] sm:$0xff]
        %v2645 = vld [vmem:[%s206 + $0x71] sm:$0xff]
        %v2646 = vld [vmem:[%s206 + $0x79] sm:$0xff]
        %v2647 = vld [vmem:[%s206 + $0x81] sm:$0xff]
        %v2648 = vld [vmem:[%s206 + $0x89] sm:$0xff]
        %v2649 = vld [vmem:[%s206 + $0x91] sm:$0xff]
        %v2650 = vld [vmem:[%s206 + $0x99] sm:$0xff]
        %v2651 = vld [vmem:[%s206 + $0xa1] sm:$0xff]
        %v2652 = vld [vmem:[%s206 + $0xa9] sm:$0xff]
        %v2653 = vld [vmem:[%s206 + $0xb1] sm:$0xff]
        %v2654 = vld [vmem:[%s206 + $0xb9] sm:$0xff]
        %v2655 = vld [vmem:[%s206 + $0xc1] sm:$0xff]
        %v2656 = vld [vmem:[%s206 + $0xc9] sm:$0xff]
        %v2657 = vld [vmem:[%s206 + $0xd1] sm:$0xff]
        %v2658 = vld [vmem:[%s206 + $0xd9] sm:$0xff]
        %v2659 = vld [vmem:[%s206 + $0xe1] sm:$0xff]
        %v2660 = vld [vmem:[%s206 + $0xe9] sm:$0xff]
        %v2661 = vld [vmem:[%s206 + $0xf1] sm:$0xff]
        %v2662 = vld [vmem:[%s206 + $0xf9] sm:$0xff]
        %v2663 = vld [vmem:[%s206 + $0x101] sm:$0xff]
        %v2664 = vld [vmem:[%s206 + $0x109] sm:$0xff]
        %v2665 = vld [vmem:[%s206 + $0x111] sm:$0xff]
        %v2666 = vld [vmem:[%s206 + $0x119] sm:$0xff]
        %v2667 = vld [vmem:[%s206 + $0x121] sm:$0xff]
        %v2668 = vld [vmem:[%s206 + $0x129] sm:$0xff]
        %v2669 = vld [vmem:[%s206 + $0x131] sm:$0xff]
        %v2670 = vld [vmem:[%s206 + $0x139] sm:$0xff]
        %v2671 = vld [vmem:[%s206 + $0x141] sm:$0xff]
        %v2672 = vld [vmem:[%s206 + $0x149] sm:$0xff]
        %v2673 = vld [vmem:[%s206 + $0x151] sm:$0xff]
        %v2674 = vld [vmem:[%s206 + $0x159] sm:$0xff]
        %v2675 = vld [vmem:[%s206 + $0x161] sm:$0xff]
        %v2676 = vpack.c.bf16 %v2637, %v2636
        %v2677 = vpack.c.bf16 %v2639, %v2638
        %v2678 = vpack.c.bf16 %v2641, %v2640
        %v2679 = vpack.c.bf16 %v2643, %v2642
        %v2680 = vpack.c.bf16 %v2645, %v2644
        %v2681 = vpack.c.bf16 %v2647, %v2646
        %v2682 = vpack.c.bf16 %v2649, %v2648
        %v2683 = vpack.c.bf16 %v2651, %v2650
        %v2684 = vpack.c.bf16 %v2653, %v2652
        %v2685 = vpack.c.bf16 %v2655, %v2654
        %v2686 = vpack.c.bf16 %v2657, %v2656
        %v2687 = vpack.c.bf16 %v2659, %v2658
        %v2688 = vpack.c.bf16 %v2661, %v2660
        %v2689 = vpack.c.bf16 %v2663, %v2662
        %v2690 = vpack.c.bf16 %v2665, %v2664
        %v2691 = vpack.c.bf16 %v2667, %v2666
        %v2692 = vpack.c.bf16 %v2669, %v2668
        %v2693 = vpack.c.bf16 %v2671, %v2670
        %v2694 = vpack.c.bf16 %v2673, %v2672
        %v2695 = vpack.c.bf16 %v2675, %v2674
        %s2696 = scalar_lea.vmem %s1, 14
        %v2697 = vld [vmem:[%s2696] sm:$0x3]
        %v2699 = vsel %vm332, %v2676, 0
        %v2702 = vsel %vm332, %v2677, 0
        %v2705 = vsel %vm332, %v2678, 0
        %v2708 = vsel %vm332, %v2679, 0
        %v2711 = vsel %vm332, %v2680, 0
        %v2714 = vsel %vm332, %v2681, 0
        %v2717 = vsel %vm332, %v2682, 0
        %v2720 = vsel %vm332, %v2683, 0
        %v2723 = vsel %vm332, %v2684, 0
        %v2726 = vsel %vm332, %v2685, 0
        %v2729 = vsel %vm332, %v2686, 0
        %v2732 = vsel %vm332, %v2687, 0
        %v2735 = vsel %vm332, %v2688, 0
        %v2738 = vsel %vm332, %v2689, 0
        %v2741 = vsel %vm332, %v2690, 0
        %v2744 = vsel %vm332, %v2691, 0
        %v2747 = vsel %vm332, %v2692, 0
        %v2750 = vsel %vm332, %v2693, 0
        %v2753 = vsel %vm332, %v2694, 0
        %v2756 = vsel %vm332, %v2695, 0
        %v2759 = vsel %vm393, %v2697, 0
        %2761 = vmatprep.subr.bf16.mxu0 0
        %2762 = vmatpush1.bf16.msra.mxu0 %v2759
        %2763 = vmatprep.subr.bf16.mxu0 0
        %2764 = vmatpush1.bf16.msra.mxu0 0
        %2765 = vmatprep.subr.bf16.mxu0 0
        %2766 = vmatpush1.bf16.msra.mxu0 0
        %2767 = vmatprep.subr.bf16.mxu0 0
        %2768 = vmatpush1.bf16.msra.mxu0 0
        %2769 = vmatprep.subr.bf16.mxu0 0
        %2770 = vmatpush1.bf16.msra.mxu0 0
        %2771 = vmatprep.subr.bf16.mxu0 0
        %2772 = vmatpush1.bf16.msra.mxu0 0
        %2773 = vmatprep.subr.bf16.mxu0 0
        %2774 = vmatpush1.bf16.msra.mxu0 0
        %2775 = vmatprep.subr.bf16.mxu0 0
        %2776 = vmatpush1.bf16.msra.mxu0 0
        %2777 = vmatprep.subr.bf16.mxu0 0
        %2778 = vmatpush1.bf16.msra.mxu0 0
        %2779 = vmatprep.subr.bf16.mxu0 0
        %2780 = vmatpush1.bf16.msra.mxu0 0
        %2781 = vmatprep.subr.bf16.mxu0 0
        %2782 = vmatpush1.bf16.msra.mxu0 0
        %2783 = vmatprep.subr.bf16.mxu0 0
        %2784 = vmatpush1.bf16.msra.mxu0 0
        %2785 = vmatprep.subr.bf16.mxu0 0
        %2786 = vmatpush1.bf16.msra.mxu0 0
        %2787 = vmatprep.subr.bf16.mxu0 0
        %2788 = vmatpush1.bf16.msra.mxu0 0
        %2789 = vmatprep.subr.bf16.mxu0 0
        %2790 = vmatpush1.bf16.msra.mxu0 0
        %2791 = vmatprep.subr.bf16.mxu0 0
        %2792 = vmatpush1.bf16.msra.mxu0 0
        %2793 = vmatprep.mubr.bf16.mxu0 0
        %2794 = vmatmul.mubr.bf16.gmra.mrb[0].mxu0 %v2699
        %v2795 = vpop.f32.mrb[0].mxu0
        %v2796 = vadd.f32 0.0, %v2795
        %v2797 = vpop.f32.mrb[0].mxu0
        %v2798 = vpop.f32.mrb[0].mxu0
        %v2799 = vadd.f32 0.0, %v2798
        %v2800 = vpop.f32.mrb[0].mxu0
        %2801 = vmatprep.mubr.bf16.mxu0 0
        %2802 = vmatmul.mubr.bf16.gmra.mrb[0].mxu0 %v2702
        %v2803 = vpop.f32.mrb[0].mxu0
        %v2804 = vadd.f32 0.0, %v2803
        %v2805 = vpop.f32.mrb[0].mxu0
        %v2806 = vpop.f32.mrb[0].mxu0
        %v2807 = vadd.f32 0.0, %v2806
        %v2808 = vpop.f32.mrb[0].mxu0
        %2809 = vmatprep.mubr.bf16.mxu0 0
        %2810 = vmatmul.mubr.bf16.gmra.mrb[0].mxu0 %v2705
        %v2811 = vpop.f32.mrb[0].mxu0
        %v2812 = vadd.f32 0.0, %v2811
        %v2813 = vpop.f32.mrb[0].mxu0
        %v2814 = vpop.f32.mrb[0].mxu0
        %v2815 = vadd.f32 0.0, %v2814
        %v2816 = vpop.f32.mrb[0].mxu0
        %2817 = vmatprep.mubr.bf16.mxu0 0
        %2818 = vmatmul.mubr.bf16.gmra.mrb[0].mxu0 %v2708
        %v2819 = vpop.f32.mrb[0].mxu0
        %v2820 = vadd.f32 0.0, %v2819
        %v2821 = vpop.f32.mrb[0].mxu0
        %v2822 = vpop.f32.mrb[0].mxu0
        %v2823 = vadd.f32 0.0, %v2822
        %v2824 = vpop.f32.mrb[0].mxu0
        %2825 = vmatprep.mubr.bf16.mxu0 0
        %2826 = vmatmul.mubr.bf16.gmra.mrb[0].mxu0 %v2711
        %v2827 = vpop.f32.mrb[0].mxu0
        %v2828 = vadd.f32 0.0, %v2827
        %v2829 = vpop.f32.mrb[0].mxu0
        %v2830 = vpop.f32.mrb[0].mxu0
        %v2831 = vadd.f32 0.0, %v2830
        %v2832 = vpop.f32.mrb[0].mxu0
        %2833 = vmatprep.mubr.bf16.mxu0 0
        %2834 = vmatmul.mubr.bf16.gmra.mrb[0].mxu0 %v2714
        %v2835 = vpop.f32.mrb[0].mxu0
        %v2836 = vadd.f32 0.0, %v2835
        %v2837 = vpop.f32.mrb[0].mxu0
        %v2838 = vpop.f32.mrb[0].mxu0
        %v2839 = vadd.f32 0.0, %v2838
        %v2840 = vpop.f32.mrb[0].mxu0
        %2841 = vmatprep.mubr.bf16.mxu0 0
        %2842 = vmatmul.mubr.bf16.gmra.mrb[0].mxu0 %v2717
        %v2843 = vpop.f32.mrb[0].mxu0
        %v2844 = vadd.f32 0.0, %v2843
        %v2845 = vpop.f32.mrb[0].mxu0
        %v2846 = vpop.f32.mrb[0].mxu0
        %v2847 = vadd.f32 0.0, %v2846
        %v2848 = vpop.f32.mrb[0].mxu0
        %2849 = vmatprep.mubr.bf16.mxu0 0
        %2850 = vmatmul.mubr.bf16.gmra.mrb[0].mxu0 %v2720
        %v2851 = vpop.f32.mrb[0].mxu0
        %v2852 = vadd.f32 0.0, %v2851
        %v2853 = vpop.f32.mrb[0].mxu0
        %v2854 = vpop.f32.mrb[0].mxu0
        %v2855 = vadd.f32 0.0, %v2854
        %v2856 = vpop.f32.mrb[0].mxu0
        %2857 = vmatprep.mubr.bf16.mxu0 0
        %2858 = vmatmul.mubr.bf16.gmra.mrb[0].mxu0 %v2723
        %v2859 = vpop.f32.mrb[0].mxu0
        %v2860 = vadd.f32 0.0, %v2859
        %v2861 = vpop.f32.mrb[0].mxu0
        %v2862 = vpop.f32.mrb[0].mxu0
        %v2863 = vadd.f32 0.0, %v2862
        %v2864 = vpop.f32.mrb[0].mxu0
        %2865 = vmatprep.mubr.bf16.mxu0 0
        %2866 = vmatmul.mubr.bf16.gmra.mrb[0].mxu0 %v2726
        %v2867 = vpop.f32.mrb[0].mxu0
        %v2868 = vadd.f32 0.0, %v2867
        %v2869 = vpop.f32.mrb[0].mxu0
        %v2870 = vpop.f32.mrb[0].mxu0
        %v2871 = vadd.f32 0.0, %v2870
        %v2872 = vpop.f32.mrb[0].mxu0
        %2873 = vmatprep.mubr.bf16.mxu0 0
        %2874 = vmatmul.mubr.bf16.gmra.mrb[0].mxu0 %v2729
        %v2875 = vpop.f32.mrb[0].mxu0
        %v2876 = vadd.f32 0.0, %v2875
        %v2877 = vpop.f32.mrb[0].mxu0
        %v2878 = vpop.f32.mrb[0].mxu0
        %v2879 = vadd.f32 0.0, %v2878
        %v2880 = vpop.f32.mrb[0].mxu0
        %2881 = vmatprep.mubr.bf16.mxu0 0
        %2882 = vmatmul.mubr.bf16.gmra.mrb[0].mxu0 %v2732
        %v2883 = vpop.f32.mrb[0].mxu0
        %v2884 = vadd.f32 0.0, %v2883
        %v2885 = vpop.f32.mrb[0].mxu0
        %v2886 = vpop.f32.mrb[0].mxu0
        %v2887 = vadd.f32 0.0, %v2886
        %v2888 = vpop.f32.mrb[0].mxu0
        %2889 = vmatprep.mubr.bf16.mxu0 0
        %2890 = vmatmul.mubr.bf16.gmra.mrb[0].mxu0 %v2735
        %v2891 = vpop.f32.mrb[0].mxu0
        %v2892 = vadd.f32 0.0, %v2891
        %v2893 = vpop.f32.mrb[0].mxu0
        %v2894 = vpop.f32.mrb[0].mxu0
        %v2895 = vadd.f32 0.0, %v2894
        %v2896 = vpop.f32.mrb[0].mxu0
        %2897 = vmatprep.mubr.bf16.mxu0 0
        %2898 = vmatmul.mubr.bf16.gmra.mrb[0].mxu0 %v2738
        %v2899 = vpop.f32.mrb[0].mxu0
        %v2900 = vadd.f32 0.0, %v2899
        %v2901 = vpop.f32.mrb[0].mxu0
        %v2902 = vpop.f32.mrb[0].mxu0
        %v2903 = vadd.f32 0.0, %v2902
        %v2904 = vpop.f32.mrb[0].mxu0
        %2905 = vmatprep.mubr.bf16.mxu0 0
        %2906 = vmatmul.mubr.bf16.gmra.mrb[0].mxu0 %v2741
        %v2907 = vpop.f32.mrb[0].mxu0
        %v2908 = vadd.f32 0.0, %v2907
        %v2909 = vpop.f32.mrb[0].mxu0
        %v2910 = vpop.f32.mrb[0].mxu0
        %v2911 = vadd.f32 0.0, %v2910
        %v2912 = vpop.f32.mrb[0].mxu0
        %2913 = vmatprep.mubr.bf16.mxu0 0
        %2914 = vmatmul.mubr.bf16.gmra.mrb[0].mxu0 %v2744
        %v2915 = vpop.f32.mrb[0].mxu0
        %v2916 = vadd.f32 0.0, %v2915
        %v2917 = vpop.f32.mrb[0].mxu0
        %v2918 = vpop.f32.mrb[0].mxu0
        %v2919 = vadd.f32 0.0, %v2918
        %v2920 = vpop.f32.mrb[0].mxu0
        %2921 = vmatprep.mubr.bf16.mxu0 0
        %2922 = vmatmul.mubr.bf16.gmra.mrb[0].mxu0 %v2747
        %v2923 = vpop.f32.mrb[0].mxu0
        %v2924 = vadd.f32 0.0, %v2923
        %v2925 = vpop.f32.mrb[0].mxu0
        %v2926 = vpop.f32.mrb[0].mxu0
        %v2927 = vadd.f32 0.0, %v2926
        %v2928 = vpop.f32.mrb[0].mxu0
        %2929 = vmatprep.mubr.bf16.mxu0 0
        %2930 = vmatmul.mubr.bf16.gmra.mrb[0].mxu0 %v2750
        %v2931 = vpop.f32.mrb[0].mxu0
        %v2932 = vadd.f32 0.0, %v2931
        %v2933 = vpop.f32.mrb[0].mxu0
        %v2934 = vpop.f32.mrb[0].mxu0
        %v2935 = vadd.f32 0.0, %v2934
        %v2936 = vpop.f32.mrb[0].mxu0
        %2937 = vmatprep.mubr.bf16.mxu0 0
        %2938 = vmatmul.mubr.bf16.gmra.mrb[0].mxu0 %v2753
        %v2939 = vpop.f32.mrb[0].mxu0
        %v2940 = vadd.f32 0.0, %v2939
        %v2941 = vpop.f32.mrb[0].mxu0
        %v2942 = vpop.f32.mrb[0].mxu0
        %v2943 = vadd.f32 0.0, %v2942
        %v2944 = vpop.f32.mrb[0].mxu0
        %2945 = vmatprep.mubr.bf16.mxu0 0
        %2946 = vmatmul.mubr.bf16.gmra.mrb[0].mxu0 %v2756
        %v2947 = vpop.f32.mrb[0].mxu0
        %v2948 = vadd.f32 0.0, %v2947
        %v2949 = vpop.f32.mrb[0].mxu0
        %v2950 = vpop.f32.mrb[0].mxu0
        %v2951 = vadd.f32 0.0, %v2950
        %v2952 = vpop.f32.mrb[0].mxu0
        %2953 = vdwg.mxu0
        %v2954 = vadd.f32 %v2596, %v2796
        %v2955 = vadd.f32 %v2597, %v2799
        %v2956 = vadd.f32 %v2598, %v2804
        %v2957 = vadd.f32 %v2599, %v2807
        %v2958 = vadd.f32 %v2600, %v2812
        %v2959 = vadd.f32 %v2601, %v2815
        %v2960 = vadd.f32 %v2602, %v2820
        %v2961 = vadd.f32 %v2603, %v2823
        %v2962 = vadd.f32 %v2604, %v2828
        %v2963 = vadd.f32 %v2605, %v2831
        %v2964 = vadd.f32 %v2606, %v2836
        %v2965 = vadd.f32 %v2607, %v2839
        %v2966 = vadd.f32 %v2608, %v2844
        %v2967 = vadd.f32 %v2609, %v2847
        %v2968 = vadd.f32 %v2610, %v2852
        %v2969 = vadd.f32 %v2611, %v2855
        %v2970 = vadd.f32 %v2612, %v2860
        %v2971 = vadd.f32 %v2613, %v2863
        %v2972 = vadd.f32 %v2614, %v2868
        %v2973 = vadd.f32 %v2615, %v2871
        %v2974 = vadd.f32 %v2616, %v2876
        %v2975 = vadd.f32 %v2617, %v2879
        %v2976 = vadd.f32 %v2618, %v2884
        %v2977 = vadd.f32 %v2619, %v2887
        %v2978 = vadd.f32 %v2620, %v2892
        %v2979 = vadd.f32 %v2621, %v2895
        %v2980 = vadd.f32 %v2622, %v2900
        %v2981 = vadd.f32 %v2623, %v2903
        %v2982 = vadd.f32 %v2624, %v2908
        %v2983 = vadd.f32 %v2625, %v2911
        %v2984 = vadd.f32 %v2626, %v2916
        %v2985 = vadd.f32 %v2627, %v2919
        %v2986 = vadd.f32 %v2628, %v2924
        %v2987 = vadd.f32 %v2629, %v2927
        %v2988 = vadd.f32 %v2630, %v2932
        %v2989 = vadd.f32 %v2631, %v2935
        %v2990 = vadd.f32 %v2632, %v2940
        %v2991 = vadd.f32 %v2633, %v2943
        %v2992 = vadd.f32 %v2634, %v2948
        %v2993 = vadd.f32 %v2635, %v2951
        %v2994 = vld [vmem:[%s206 + $0x2a] sm:$0xff]
        %v2995 = vld [vmem:[%s206 + $0x32] sm:$0xff]
        %v2996 = vld [vmem:[%s206 + $0x3a] sm:$0xff]
        %v2997 = vld [vmem:[%s206 + $0x42] sm:$0xff]
        %v2998 = vld [vmem:[%s206 + $0x4a] sm:$0xff]
        %v2999 = vld [vmem:[%s206 + $0x52] sm:$0xff]
        %v3000 = vld [vmem:[%s206 + $0x5a] sm:$0xff]
        %v3001 = vld [vmem:[%s206 + $0x62] sm:$0xff]
        %v3002 = vld [vmem:[%s206 + $0x6a] sm:$0xff]
        %v3003 = vld [vmem:[%s206 + $0x72] sm:$0xff]
        %v3004 = vld [vmem:[%s206 + $0x7a] sm:$0xff]
        %v3005 = vld [vmem:[%s206 + $0x82] sm:$0xff]
        %v3006 = vld [vmem:[%s206 + $0x8a] sm:$0xff]
        %v3007 = vld [vmem:[%s206 + $0x92] sm:$0xff]
        %v3008 = vld [vmem:[%s206 + $0x9a] sm:$0xff]
        %v3009 = vld [vmem:[%s206 + $0xa2] sm:$0xff]
        %v3010 = vld [vmem:[%s206 + $0xaa] sm:$0xff]
        %v3011 = vld [vmem:[%s206 + $0xb2] sm:$0xff]
        %v3012 = vld [vmem:[%s206 + $0xba] sm:$0xff]
        %v3013 = vld [vmem:[%s206 + $0xc2] sm:$0xff]
        %v3014 = vld [vmem:[%s206 + $0xca] sm:$0xff]
        %v3015 = vld [vmem:[%s206 + $0xd2] sm:$0xff]
        %v3016 = vld [vmem:[%s206 + $0xda] sm:$0xff]
        %v3017 = vld [vmem:[%s206 + $0xe2] sm:$0xff]
        %v3018 = vld [vmem:[%s206 + $0xea] sm:$0xff]
        %v3019 = vld [vmem:[%s206 + $0xf2] sm:$0xff]
        %v3020 = vld [vmem:[%s206 + $0xfa] sm:$0xff]
        %v3021 = vld [vmem:[%s206 + $0x102] sm:$0xff]
        %v3022 = vld [vmem:[%s206 + $0x10a] sm:$0xff]
        %v3023 = vld [vmem:[%s206 + $0x112] sm:$0xff]
        %v3024 = vld [vmem:[%s206 + $0x11a] sm:$0xff]
        %v3025 = vld [vmem:[%s206 + $0x122] sm:$0xff]
        %v3026 = vld [vmem:[%s206 + $0x12a] sm:$0xff]
        %v3027 = vld [vmem:[%s206 + $0x132] sm:$0xff]
        %v3028 = vld [vmem:[%s206 + $0x13a] sm:$0xff]
        %v3029 = vld [vmem:[%s206 + $0x142] sm:$0xff]
        %v3030 = vld [vmem:[%s206 + $0x14a] sm:$0xff]
        %v3031 = vld [vmem:[%s206 + $0x152] sm:$0xff]
        %v3032 = vld [vmem:[%s206 + $0x15a] sm:$0xff]
        %v3033 = vld [vmem:[%s206 + $0x162] sm:$0xff]
        %v3034 = vpack.c.bf16 %v2995, %v2994
        %v3035 = vpack.c.bf16 %v2997, %v2996
        %v3036 = vpack.c.bf16 %v2999, %v2998
        %v3037 = vpack.c.bf16 %v3001, %v3000
        %v3038 = vpack.c.bf16 %v3003, %v3002
        %v3039 = vpack.c.bf16 %v3005, %v3004
        %v3040 = vpack.c.bf16 %v3007, %v3006
        %v3041 = vpack.c.bf16 %v3009, %v3008
        %v3042 = vpack.c.bf16 %v3011, %v3010
        %v3043 = vpack.c.bf16 %v3013, %v3012
        %v3044 = vpack.c.bf16 %v3015, %v3014
        %v3045 = vpack.c.bf16 %v3017, %v3016
        %v3046 = vpack.c.bf16 %v3019, %v3018
        %v3047 = vpack.c.bf16 %v3021, %v3020
        %v3048 = vpack.c.bf16 %v3023, %v3022
        %v3049 = vpack.c.bf16 %v3025, %v3024
        %v3050 = vpack.c.bf16 %v3027, %v3026
        %v3051 = vpack.c.bf16 %v3029, %v3028
        %v3052 = vpack.c.bf16 %v3031, %v3030
        %v3053 = vpack.c.bf16 %v3033, %v3032
        %s3054 = scalar_lea.vmem %s1, 16
        %v3055 = vld [vmem:[%s3054] sm:$0x3]
        %v3057 = vsel %vm332, %v3034, 0
        %v3060 = vsel %vm332, %v3035, 0
        %v3063 = vsel %vm332, %v3036, 0
        %v3066 = vsel %vm332, %v3037, 0
        %v3069 = vsel %vm332, %v3038, 0
        %v3072 = vsel %vm332, %v3039, 0
        %v3075 = vsel %vm332, %v3040, 0
        %v3078 = vsel %vm332, %v3041, 0
        %v3081 = vsel %vm332, %v3042, 0
        %v3084 = vsel %vm332, %v3043, 0
        %v3087 = vsel %vm332, %v3044, 0
        %v3090 = vsel %vm332, %v3045, 0
        %v3093 = vsel %vm332, %v3046, 0
        %v3096 = vsel %vm332, %v3047, 0
        %v3099 = vsel %vm332, %v3048, 0
        %v3102 = vsel %vm332, %v3049, 0
        %v3105 = vsel %vm332, %v3050, 0
        %v3108 = vsel %vm332, %v3051, 0
        %v3111 = vsel %vm332, %v3052, 0
        %v3114 = vsel %vm332, %v3053, 0
        %v3117 = vsel %vm393, %v3055, 0
        %3119 = vmatprep.subr.bf16.mxu0 0
        %3120 = vmatpush1.bf16.msra.mxu0 %v3117
        %3121 = vmatprep.subr.bf16.mxu0 0
        %3122 = vmatpush1.bf16.msra.mxu0 0
        %3123 = vmatprep.subr.bf16.mxu0 0
        %3124 = vmatpush1.bf16.msra.mxu0 0
        %3125 = vmatprep.subr.bf16.mxu0 0
        %3126 = vmatpush1.bf16.msra.mxu0 0
        %3127 = vmatprep.subr.bf16.mxu0 0
        %3128 = vmatpush1.bf16.msra.mxu0 0
        %3129 = vmatprep.subr.bf16.mxu0 0
        %3130 = vmatpush1.bf16.msra.mxu0 0
        %3131 = vmatprep.subr.bf16.mxu0 0
        %3132 = vmatpush1.bf16.msra.mxu0 0
        %3133 = vmatprep.subr.bf16.mxu0 0
        %3134 = vmatpush1.bf16.msra.mxu0 0
        %3135 = vmatprep.subr.bf16.mxu0 0
        %3136 = vmatpush1.bf16.msra.mxu0 0
        %3137 = vmatprep.subr.bf16.mxu0 0
        %3138 = vmatpush1.bf16.msra.mxu0 0
        %3139 = vmatprep.subr.bf16.mxu0 0
        %3140 = vmatpush1.bf16.msra.mxu0 0
        %3141 = vmatprep.subr.bf16.mxu0 0
        %3142 = vmatpush1.bf16.msra.mxu0 0
        %3143 = vmatprep.subr.bf16.mxu0 0
        %3144 = vmatpush1.bf16.msra.mxu0 0
        %3145 = vmatprep.subr.bf16.mxu0 0
        %3146 = vmatpush1.bf16.msra.mxu0 0
        %3147 = vmatprep.subr.bf16.mxu0 0
        %3148 = vmatpush1.bf16.msra.mxu0 0
        %3149 = vmatprep.subr.bf16.mxu0 0
        %3150 = vmatpush1.bf16.msra.mxu0 0
        %3151 = vmatprep.mubr.bf16.mxu0 0
        %3152 = vmatmul.mubr.bf16.gmra.mrb[0].mxu0 %v3057
        %v3153 = vpop.f32.mrb[0].mxu0
        %v3154 = vadd.f32 0.0, %v3153
        %v3155 = vpop.f32.mrb[0].mxu0
        %v3156 = vpop.f32.mrb[0].mxu0
        %v3157 = vadd.f32 0.0, %v3156
        %v3158 = vpop.f32.mrb[0].mxu0
        %3159 = vmatprep.mubr.bf16.mxu0 0
        %3160 = vmatmul.mubr.bf16.gmra.mrb[0].mxu0 %v3060
        %v3161 = vpop.f32.mrb[0].mxu0
        %v3162 = vadd.f32 0.0, %v3161
        %v3163 = vpop.f32.mrb[0].mxu0
        %v3164 = vpop.f32.mrb[0].mxu0
        %v3165 = vadd.f32 0.0, %v3164
        %v3166 = vpop.f32.mrb[0].mxu0
        %3167 = vmatprep.mubr.bf16.mxu0 0
        %3168 = vmatmul.mubr.bf16.gmra.mrb[0].mxu0 %v3063
        %v3169 = vpop.f32.mrb[0].mxu0
        %v3170 = vadd.f32 0.0, %v3169
        %v3171 = vpop.f32.mrb[0].mxu0
        %v3172 = vpop.f32.mrb[0].mxu0
        %v3173 = vadd.f32 0.0, %v3172
        %v3174 = vpop.f32.mrb[0].mxu0
        %3175 = vmatprep.mubr.bf16.mxu0 0
        %3176 = vmatmul.mubr.bf16.gmra.mrb[0].mxu0 %v3066
        %v3177 = vpop.f32.mrb[0].mxu0
        %v3178 = vadd.f32 0.0, %v3177
        %v3179 = vpop.f32.mrb[0].mxu0
        %v3180 = vpop.f32.mrb[0].mxu0
        %v3181 = vadd.f32 0.0, %v3180
        %v3182 = vpop.f32.mrb[0].mxu0
        %3183 = vmatprep.mubr.bf16.mxu0 0
        %3184 = vmatmul.mubr.bf16.gmra.mrb[0].mxu0 %v3069
        %v3185 = vpop.f32.mrb[0].mxu0
        %v3186 = vadd.f32 0.0, %v3185
        %v3187 = vpop.f32.mrb[0].mxu0
        %v3188 = vpop.f32.mrb[0].mxu0
        %v3189 = vadd.f32 0.0, %v3188
        %v3190 = vpop.f32.mrb[0].mxu0
        %3191 = vmatprep.mubr.bf16.mxu0 0
        %3192 = vmatmul.mubr.bf16.gmra.mrb[0].mxu0 %v3072
        %v3193 = vpop.f32.mrb[0].mxu0
        %v3194 = vadd.f32 0.0, %v3193
        %v3195 = vpop.f32.mrb[0].mxu0
        %v3196 = vpop.f32.mrb[0].mxu0
        %v3197 = vadd.f32 0.0, %v3196
        %v3198 = vpop.f32.mrb[0].mxu0
        %3199 = vmatprep.mubr.bf16.mxu0 0
        %3200 = vmatmul.mubr.bf16.gmra.mrb[0].mxu0 %v3075
        %v3201 = vpop.f32.mrb[0].mxu0
        %v3202 = vadd.f32 0.0, %v3201
        %v3203 = vpop.f32.mrb[0].mxu0
        %v3204 = vpop.f32.mrb[0].mxu0
        %v3205 = vadd.f32 0.0, %v3204
        %v3206 = vpop.f32.mrb[0].mxu0
        %3207 = vmatprep.mubr.bf16.mxu0 0
        %3208 = vmatmul.mubr.bf16.gmra.mrb[0].mxu0 %v3078
        %v3209 = vpop.f32.mrb[0].mxu0
        %v3210 = vadd.f32 0.0, %v3209
        %v3211 = vpop.f32.mrb[0].mxu0
        %v3212 = vpop.f32.mrb[0].mxu0
        %v3213 = vadd.f32 0.0, %v3212
        %v3214 = vpop.f32.mrb[0].mxu0
        %3215 = vmatprep.mubr.bf16.mxu0 0
        %3216 = vmatmul.mubr.bf16.gmra.mrb[0].mxu0 %v3081
        %v3217 = vpop.f32.mrb[0].mxu0
        %v3218 = vadd.f32 0.0, %v3217
        %v3219 = vpop.f32.mrb[0].mxu0
        %v3220 = vpop.f32.mrb[0].mxu0
        %v3221 = vadd.f32 0.0, %v3220
        %v3222 = vpop.f32.mrb[0].mxu0
        %3223 = vmatprep.mubr.bf16.mxu0 0
        %3224 = vmatmul.mubr.bf16.gmra.mrb[0].mxu0 %v3084
        %v3225 = vpop.f32.mrb[0].mxu0
        %v3226 = vadd.f32 0.0, %v3225
        %v3227 = vpop.f32.mrb[0].mxu0
        %v3228 = vpop.f32.mrb[0].mxu0
        %v3229 = vadd.f32 0.0, %v3228
        %v3230 = vpop.f32.mrb[0].mxu0
        %3231 = vmatprep.mubr.bf16.mxu0 0
        %3232 = vmatmul.mubr.bf16.gmra.mrb[0].mxu0 %v3087
        %v3233 = vpop.f32.mrb[0].mxu0
        %v3234 = vadd.f32 0.0, %v3233
        %v3235 = vpop.f32.mrb[0].mxu0
        %v3236 = vpop.f32.mrb[0].mxu0
        %v3237 = vadd.f32 0.0, %v3236
        %v3238 = vpop.f32.mrb[0].mxu0
        %3239 = vmatprep.mubr.bf16.mxu0 0
        %3240 = vmatmul.mubr.bf16.gmra.mrb[0].mxu0 %v3090
        %v3241 = vpop.f32.mrb[0].mxu0
        %v3242 = vadd.f32 0.0, %v3241
        %v3243 = vpop.f32.mrb[0].mxu0
        %v3244 = vpop.f32.mrb[0].mxu0
        %v3245 = vadd.f32 0.0, %v3244
        %v3246 = vpop.f32.mrb[0].mxu0
        %3247 = vmatprep.mubr.bf16.mxu0 0
        %3248 = vmatmul.mubr.bf16.gmra.mrb[0].mxu0 %v3093
        %v3249 = vpop.f32.mrb[0].mxu0
        %v3250 = vadd.f32 0.0, %v3249
        %v3251 = vpop.f32.mrb[0].mxu0
        %v3252 = vpop.f32.mrb[0].mxu0
        %v3253 = vadd.f32 0.0, %v3252
        %v3254 = vpop.f32.mrb[0].mxu0
        %3255 = vmatprep.mubr.bf16.mxu0 0
        %3256 = vmatmul.mubr.bf16.gmra.mrb[0].mxu0 %v3096
        %v3257 = vpop.f32.mrb[0].mxu0
        %v3258 = vadd.f32 0.0, %v3257
        %v3259 = vpop.f32.mrb[0].mxu0
        %v3260 = vpop.f32.mrb[0].mxu0
        %v3261 = vadd.f32 0.0, %v3260
        %v3262 = vpop.f32.mrb[0].mxu0
        %3263 = vmatprep.mubr.bf16.mxu0 0
        %3264 = vmatmul.mubr.bf16.gmra.mrb[0].mxu0 %v3099
        %v3265 = vpop.f32.mrb[0].mxu0
        %v3266 = vadd.f32 0.0, %v3265
        %v3267 = vpop.f32.mrb[0].mxu0
        %v3268 = vpop.f32.mrb[0].mxu0
        %v3269 = vadd.f32 0.0, %v3268
        %v3270 = vpop.f32.mrb[0].mxu0
        %3271 = vmatprep.mubr.bf16.mxu0 0
        %3272 = vmatmul.mubr.bf16.gmra.mrb[0].mxu0 %v3102
        %v3273 = vpop.f32.mrb[0].mxu0
        %v3274 = vadd.f32 0.0, %v3273
        %v3275 = vpop.f32.mrb[0].mxu0
        %v3276 = vpop.f32.mrb[0].mxu0
        %v3277 = vadd.f32 0.0, %v3276
        %v3278 = vpop.f32.mrb[0].mxu0
        %3279 = vmatprep.mubr.bf16.mxu0 0
        %3280 = vmatmul.mubr.bf16.gmra.mrb[0].mxu0 %v3105
        %v3281 = vpop.f32.mrb[0].mxu0
        %v3282 = vadd.f32 0.0, %v3281
        %v3283 = vpop.f32.mrb[0].mxu0
        %v3284 = vpop.f32.mrb[0].mxu0
        %v3285 = vadd.f32 0.0, %v3284
        %v3286 = vpop.f32.mrb[0].mxu0
        %3287 = vmatprep.mubr.bf16.mxu0 0
        %3288 = vmatmul.mubr.bf16.gmra.mrb[0].mxu0 %v3108
        %v3289 = vpop.f32.mrb[0].mxu0
        %v3290 = vadd.f32 0.0, %v3289
        %v3291 = vpop.f32.mrb[0].mxu0
        %v3292 = vpop.f32.mrb[0].mxu0
        %v3293 = vadd.f32 0.0, %v3292
        %v3294 = vpop.f32.mrb[0].mxu0
        %3295 = vmatprep.mubr.bf16.mxu0 0
        %3296 = vmatmul.mubr.bf16.gmra.mrb[0].mxu0 %v3111
        %v3297 = vpop.f32.mrb[0].mxu0
        %v3298 = vadd.f32 0.0, %v3297
        %v3299 = vpop.f32.mrb[0].mxu0
        %v3300 = vpop.f32.mrb[0].mxu0
        %v3301 = vadd.f32 0.0, %v3300
        %v3302 = vpop.f32.mrb[0].mxu0
        %3303 = vmatprep.mubr.bf16.mxu0 0
        %3304 = vmatmul.mubr.bf16.gmra.mrb[0].mxu0 %v3114
        %v3305 = vpop.f32.mrb[0].mxu0
        %v3306 = vadd.f32 0.0, %v3305
        %v3307 = vpop.f32.mrb[0].mxu0
        %v3308 = vpop.f32.mrb[0].mxu0
        %v3309 = vadd.f32 0.0, %v3308
        %v3310 = vpop.f32.mrb[0].mxu0
        %3311 = vdwg.mxu0
        %v3312 = vadd.f32 %v2954, %v3154
        %v3313 = vadd.f32 %v2955, %v3157
        %v3314 = vadd.f32 %v2956, %v3162
        %v3315 = vadd.f32 %v2957, %v3165
        %v3316 = vadd.f32 %v2958, %v3170
        %v3317 = vadd.f32 %v2959, %v3173
        %v3318 = vadd.f32 %v2960, %v3178
        %v3319 = vadd.f32 %v2961, %v3181
        %v3320 = vadd.f32 %v2962, %v3186
        %v3321 = vadd.f32 %v2963, %v3189
        %v3322 = vadd.f32 %v2964, %v3194
        %v3323 = vadd.f32 %v2965, %v3197
        %v3324 = vadd.f32 %v2966, %v3202
        %v3325 = vadd.f32 %v2967, %v3205
        %v3326 = vadd.f32 %v2968, %v3210
        %v3327 = vadd.f32 %v2969, %v3213
        %v3328 = vadd.f32 %v2970, %v3218
        %v3329 = vadd.f32 %v2971, %v3221
        %v3330 = vadd.f32 %v2972, %v3226
        %v3331 = vadd.f32 %v2973, %v3229
        %v3332 = vadd.f32 %v2974, %v3234
        %v3333 = vadd.f32 %v2975, %v3237
        %v3334 = vadd.f32 %v2976, %v3242
        %v3335 = vadd.f32 %v2977, %v3245
        %v3336 = vadd.f32 %v2978, %v3250
        %v3337 = vadd.f32 %v2979, %v3253
        %v3338 = vadd.f32 %v2980, %v3258
        %v3339 = vadd.f32 %v2981, %v3261
        %v3340 = vadd.f32 %v2982, %v3266
        %v3341 = vadd.f32 %v2983, %v3269
        %v3342 = vadd.f32 %v2984, %v3274
        %v3343 = vadd.f32 %v2985, %v3277
        %v3344 = vadd.f32 %v2986, %v3282
        %v3345 = vadd.f32 %v2987, %v3285
        %v3346 = vadd.f32 %v2988, %v3290
        %v3347 = vadd.f32 %v2989, %v3293
        %v3348 = vadd.f32 %v2990, %v3298
        %v3349 = vadd.f32 %v2991, %v3301
        %v3350 = vadd.f32 %v2992, %v3306
        %v3351 = vadd.f32 %v2993, %v3309
        %3352 = vst [vmem:[%s194] sm:$0xff] %v3312
        %3353 = vst [vmem:[%s194 + $0x8] sm:$0xff] %v3313
        %3354 = vst [vmem:[%s194 + $0x10] sm:$0xff] %v3314
        %3355 = vst [vmem:[%s194 + $0x18] sm:$0xff] %v3315
        %3356 = vst [vmem:[%s194 + $0x20] sm:$0xff] %v3316
        %3357 = vst [vmem:[%s194 + $0x28] sm:$0xff] %v3317
        %3358 = vst [vmem:[%s194 + $0x30] sm:$0xff] %v3318
        %3359 = vst [vmem:[%s194 + $0x38] sm:$0xff] %v3319
        %3360 = vst [vmem:[%s194 + $0x40] sm:$0xff] %v3320
        %3361 = vst [vmem:[%s194 + $0x48] sm:$0xff] %v3321
        %3362 = vst [vmem:[%s194 + $0x50] sm:$0xff] %v3322
        %3363 = vst [vmem:[%s194 + $0x58] sm:$0xff] %v3323
        %3364 = vst [vmem:[%s194 + $0x60] sm:$0xff] %v3324
        %3365 = vst [vmem:[%s194 + $0x68] sm:$0xff] %v3325
        %3366 = vst [vmem:[%s194 + $0x70] sm:$0xff] %v3326
        %3367 = vst [vmem:[%s194 + $0x78] sm:$0xff] %v3327
        %3368 = vst [vmem:[%s194 + $0x80] sm:$0xff] %v3328
        %3369 = vst [vmem:[%s194 + $0x88] sm:$0xff] %v3329
        %3370 = vst [vmem:[%s194 + $0x90] sm:$0xff] %v3330
        %3371 = vst [vmem:[%s194 + $0x98] sm:$0xff] %v3331
        %3372 = vst [vmem:[%s194 + $0xa0] sm:$0xff] %v3332
        %3373 = vst [vmem:[%s194 + $0xa8] sm:$0xff] %v3333
        %3374 = vst [vmem:[%s194 + $0xb0] sm:$0xff] %v3334
        %3375 = vst [vmem:[%s194 + $0xb8] sm:$0xff] %v3335
        %3376 = vst [vmem:[%s194 + $0xc0] sm:$0xff] %v3336
        %3377 = vst [vmem:[%s194 + $0xc8] sm:$0xff] %v3337
        %3378 = vst [vmem:[%s194 + $0xd0] sm:$0xff] %v3338
        %3379 = vst [vmem:[%s194 + $0xd8] sm:$0xff] %v3339
        %3380 = vst [vmem:[%s194 + $0xe0] sm:$0xff] %v3340
        %3381 = vst [vmem:[%s194 + $0xe8] sm:$0xff] %v3341
        %3382 = vst [vmem:[%s194 + $0xf0] sm:$0xff] %v3342
        %3383 = vst [vmem:[%s194 + $0xf8] sm:$0xff] %v3343
        %3384 = vst [vmem:[%s194 + $0x100] sm:$0xff] %v3344
        %3385 = vst [vmem:[%s194 + $0x108] sm:$0xff] %v3345
        %3386 = vst [vmem:[%s194 + $0x110] sm:$0xff] %v3346
        %3387 = vst [vmem:[%s194 + $0x118] sm:$0xff] %v3347
        %3388 = vst [vmem:[%s194 + $0x120] sm:$0xff] %v3348
        %3389 = vst [vmem:[%s194 + $0x128] sm:$0xff] %v3349
        %3390 = vst [vmem:[%s194 + $0x130] sm:$0xff] %v3350
        %3391 = vst [vmem:[%s194 + $0x138] sm:$0xff] %v3351
        %v3392 = vld [vmem:[%s2] sm:$0xff]
        %v3393 = vld [vmem:[%s2 + $0x8] sm:$0xff]
        %v3394 = vld [vmem:[%s2 + $0x10] sm:$0xff]
        %v3395 = vld [vmem:[%s2 + $0x18] sm:$0xff]
        %v3396 = vld [vmem:[%s2 + $0x20] sm:$0xff]
        %v3397 = vld [vmem:[%s2 + $0x28] sm:$0xff]
        %v3398 = vld [vmem:[%s2 + $0x30] sm:$0xff]
        %v3399 = vld [vmem:[%s2 + $0x38] sm:$0xff]
        %v3400 = vld [vmem:[%s2 + $0x40] sm:$0xff]
        %v3401 = vld [vmem:[%s2 + $0x48] sm:$0xff]
        %v3402 = vld [vmem:[%s2 + $0x50] sm:$0xff]
        %v3403 = vld [vmem:[%s2 + $0x58] sm:$0xff]
        %v3404 = vld [vmem:[%s2 + $0x60] sm:$0xff]
        %v3405 = vld [vmem:[%s2 + $0x68] sm:$0xff]
        %v3406 = vld [vmem:[%s2 + $0x70] sm:$0xff]
        %v3407 = vld [vmem:[%s2 + $0x78] sm:$0xff]
        %v3408 = vld [vmem:[%s2 + $0x80] sm:$0xff]
        %v3409 = vld [vmem:[%s2 + $0x88] sm:$0xff]
        %v3410 = vld [vmem:[%s2 + $0x90] sm:$0xff]
        %v3411 = vld [vmem:[%s2 + $0x98] sm:$0xff]
        %v3412 = vld [vmem:[%s2 + $0xa0] sm:$0xff]
        %v3413 = vld [vmem:[%s2 + $0xa8] sm:$0xff]
        %v3414 = vld [vmem:[%s2 + $0xb0] sm:$0xff]
        %v3415 = vld [vmem:[%s2 + $0xb8] sm:$0xff]
        %v3416 = vld [vmem:[%s2 + $0xc0] sm:$0xff]
        %v3417 = vld [vmem:[%s2 + $0xc8] sm:$0xff]
        %v3418 = vld [vmem:[%s2 + $0xd0] sm:$0xff]
        %v3419 = vld [vmem:[%s2 + $0xd8] sm:$0xff]
        %v3420 = vld [vmem:[%s2 + $0xe0] sm:$0xff]
        %v3421 = vld [vmem:[%s2 + $0xe8] sm:$0xff]
        %v3422 = vld [vmem:[%s2 + $0xf0] sm:$0xff]
        %v3423 = vld [vmem:[%s2 + $0xf8] sm:$0xff]
        %v3424 = vld [vmem:[%s2 + $0x100] sm:$0xff]
        %v3425 = vld [vmem:[%s2 + $0x108] sm:$0xff]
        %v3426 = vld [vmem:[%s2 + $0x110] sm:$0xff]
        %v3427 = vld [vmem:[%s2 + $0x118] sm:$0xff]
        %v3428 = vld [vmem:[%s2 + $0x120] sm:$0xff]
        %v3429 = vld [vmem:[%s2 + $0x128] sm:$0xff]
        %v3430 = vld [vmem:[%s2 + $0x130] sm:$0xff]
        %v3431 = vld [vmem:[%s2 + $0x138] sm:$0xff]
        %3433 = vset.pattern.permute.xlu0 0
        %3434 = vperm.xlu0 %3433, %v3392
        %v3435 = vpop.permute.xlu0 %3434
        %3438 = vset.pattern.permute.xlu0 0
        %3439 = vperm.xlu0 %3438, %v3393
        %v3440 = vpop.permute.xlu0 %3439
        %3443 = vset.pattern.permute.xlu0 0
        %3444 = vperm.xlu0 %3443, %v3394
        %v3445 = vpop.permute.xlu0 %3444
        %3448 = vset.pattern.permute.xlu0 0
        %3449 = vperm.xlu0 %3448, %v3395
        %v3450 = vpop.permute.xlu0 %3449
        %3453 = vset.pattern.permute.xlu0 0
        %3454 = vperm.xlu0 %3453, %v3396
        %v3455 = vpop.permute.xlu0 %3454
        %3458 = vset.pattern.permute.xlu0 0
        %3459 = vperm.xlu0 %3458, %v3397
        %v3460 = vpop.permute.xlu0 %3459
        %3463 = vset.pattern.permute.xlu0 0
        %3464 = vperm.xlu0 %3463, %v3398
        %v3465 = vpop.permute.xlu0 %3464
        %3468 = vset.pattern.permute.xlu0 0
        %3469 = vperm.xlu0 %3468, %v3399
        %v3470 = vpop.permute.xlu0 %3469
        %3473 = vset.pattern.permute.xlu0 0
        %3474 = vperm.xlu0 %3473, %v3400
        %v3475 = vpop.permute.xlu0 %3474
        %3478 = vset.pattern.permute.xlu0 0
        %3479 = vperm.xlu0 %3478, %v3401
        %v3480 = vpop.permute.xlu0 %3479
        %3483 = vset.pattern.permute.xlu0 0
        %3484 = vperm.xlu0 %3483, %v3402
        %v3485 = vpop.permute.xlu0 %3484
        %3488 = vset.pattern.permute.xlu0 0
        %3489 = vperm.xlu0 %3488, %v3403
        %v3490 = vpop.permute.xlu0 %3489
        %3493 = vset.pattern.permute.xlu0 0
        %3494 = vperm.xlu0 %3493, %v3404
        %v3495 = vpop.permute.xlu0 %3494
        %3498 = vset.pattern.permute.xlu0 0
        %3499 = vperm.xlu0 %3498, %v3405
        %v3500 = vpop.permute.xlu0 %3499
        %3503 = vset.pattern.permute.xlu0 0
        %3504 = vperm.xlu0 %3503, %v3406
        %v3505 = vpop.permute.xlu0 %3504
        %3508 = vset.pattern.permute.xlu0 0
        %3509 = vperm.xlu0 %3508, %v3407
        %v3510 = vpop.permute.xlu0 %3509
        %3513 = vset.pattern.permute.xlu0 0
        %3514 = vperm.xlu0 %3513, %v3408
        %v3515 = vpop.permute.xlu0 %3514
        %3518 = vset.pattern.permute.xlu0 0
        %3519 = vperm.xlu0 %3518, %v3409
        %v3520 = vpop.permute.xlu0 %3519
        %3523 = vset.pattern.permute.xlu0 0
        %3524 = vperm.xlu0 %3523, %v3410
        %v3525 = vpop.permute.xlu0 %3524
        %3528 = vset.pattern.permute.xlu0 0
        %3529 = vperm.xlu0 %3528, %v3411
        %v3530 = vpop.permute.xlu0 %3529
        %3533 = vset.pattern.permute.xlu0 0
        %3534 = vperm.xlu0 %3533, %v3412
        %v3535 = vpop.permute.xlu0 %3534
        %3538 = vset.pattern.permute.xlu0 0
        %3539 = vperm.xlu0 %3538, %v3413
        %v3540 = vpop.permute.xlu0 %3539
        %3543 = vset.pattern.permute.xlu0 0
        %3544 = vperm.xlu0 %3543, %v3414
        %v3545 = vpop.permute.xlu0 %3544
        %3548 = vset.pattern.permute.xlu0 0
        %3549 = vperm.xlu0 %3548, %v3415
        %v3550 = vpop.permute.xlu0 %3549
        %3553 = vset.pattern.permute.xlu0 0
        %3554 = vperm.xlu0 %3553, %v3416
        %v3555 = vpop.permute.xlu0 %3554
        %3558 = vset.pattern.permute.xlu0 0
        %3559 = vperm.xlu0 %3558, %v3417
        %v3560 = vpop.permute.xlu0 %3559
        %3563 = vset.pattern.permute.xlu0 0
        %3564 = vperm.xlu0 %3563, %v3418
        %v3565 = vpop.permute.xlu0 %3564
        %3568 = vset.pattern.permute.xlu0 0
        %3569 = vperm.xlu0 %3568, %v3419
        %v3570 = vpop.permute.xlu0 %3569
        %3573 = vset.pattern.permute.xlu0 0
        %3574 = vperm.xlu0 %3573, %v3420
        %v3575 = vpop.permute.xlu0 %3574
        %3578 = vset.pattern.permute.xlu0 0
        %3579 = vperm.xlu0 %3578, %v3421
        %v3580 = vpop.permute.xlu0 %3579
        %3583 = vset.pattern.permute.xlu0 0
        %3584 = vperm.xlu0 %3583, %v3422
        %v3585 = vpop.permute.xlu0 %3584
        %3588 = vset.pattern.permute.xlu0 0
        %3589 = vperm.xlu0 %3588, %v3423
        %v3590 = vpop.permute.xlu0 %3589
        %3593 = vset.pattern.permute.xlu0 0
        %3594 = vperm.xlu0 %3593, %v3424
        %v3595 = vpop.permute.xlu0 %3594
        %3598 = vset.pattern.permute.xlu0 0
        %3599 = vperm.xlu0 %3598, %v3425
        %v3600 = vpop.permute.xlu0 %3599
        %3603 = vset.pattern.permute.xlu0 0
        %3604 = vperm.xlu0 %3603, %v3426
        %v3605 = vpop.permute.xlu0 %3604
        %3608 = vset.pattern.permute.xlu0 0
        %3609 = vperm.xlu0 %3608, %v3427
        %v3610 = vpop.permute.xlu0 %3609
        %3613 = vset.pattern.permute.xlu0 0
        %3614 = vperm.xlu0 %3613, %v3428
        %v3615 = vpop.permute.xlu0 %3614
        %3618 = vset.pattern.permute.xlu0 0
        %3619 = vperm.xlu0 %3618, %v3429
        %v3620 = vpop.permute.xlu0 %3619
        %3623 = vset.pattern.permute.xlu0 0
        %3624 = vperm.xlu0 %3623, %v3430
        %v3625 = vpop.permute.xlu0 %3624
        %3628 = vset.pattern.permute.xlu0 0
        %3629 = vperm.xlu0 %3628, %v3431
        %v3630 = vpop.permute.xlu0 %3629
        %v3632 = vmul.f32 %v3312, %v3435
        %v3633 = vmul.f32 %v3313, %v3440
        %v3634 = vmul.f32 %v3314, %v3445
        %v3635 = vmul.f32 %v3315, %v3450
        %v3636 = vmul.f32 %v3316, %v3455
        %v3637 = vmul.f32 %v3317, %v3460
        %v3638 = vmul.f32 %v3318, %v3465
        %v3639 = vmul.f32 %v3319, %v3470
        %v3640 = vmul.f32 %v3320, %v3475
        %v3641 = vmul.f32 %v3321, %v3480
        %v3642 = vmul.f32 %v3322, %v3485
        %v3643 = vmul.f32 %v3323, %v3490
        %v3644 = vmul.f32 %v3324, %v3495
        %v3645 = vmul.f32 %v3325, %v3500
        %v3646 = vmul.f32 %v3326, %v3505
        %v3647 = vmul.f32 %v3327, %v3510
        %v3648 = vmul.f32 %v3328, %v3515
        %v3649 = vmul.f32 %v3329, %v3520
        %v3650 = vmul.f32 %v3330, %v3525
        %v3651 = vmul.f32 %v3331, %v3530
        %v3652 = vmul.f32 %v3332, %v3535
        %v3653 = vmul.f32 %v3333, %v3540
        %v3654 = vmul.f32 %v3334, %v3545
        %v3655 = vmul.f32 %v3335, %v3550
        %v3656 = vmul.f32 %v3336, %v3555
        %v3657 = vmul.f32 %v3337, %v3560
        %v3658 = vmul.f32 %v3338, %v3565
        %v3659 = vmul.f32 %v3339, %v3570
        %v3660 = vmul.f32 %v3340, %v3575
        %v3661 = vmul.f32 %v3341, %v3580
        %v3662 = vmul.f32 %v3342, %v3585
        %v3663 = vmul.f32 %v3343, %v3590
        %v3664 = vmul.f32 %v3344, %v3595
        %v3665 = vmul.f32 %v3345, %v3600
        %v3666 = vmul.f32 %v3346, %v3605
        %v3667 = vmul.f32 %v3347, %v3610
        %v3668 = vmul.f32 %v3348, %v3615
        %v3669 = vmul.f32 %v3349, %v3620
        %v3670 = vmul.f32 %v3350, %v3625
        %v3671 = vmul.f32 %v3351, %v3630
        %v3672 = vadd.f32 %v3632, %v3633
        %v3673 = vadd.f32 %v3672, %v3634
        %v3674 = vadd.f32 %v3673, %v3635
        %v3675 = vadd.f32 %v3674, %v3636
        %v3676 = vadd.f32 %v3675, %v3637
        %v3677 = vadd.f32 %v3676, %v3638
        %v3678 = vadd.f32 %v3677, %v3639
        %v3679 = vadd.f32 %v3678, %v3640
        %v3680 = vadd.f32 %v3679, %v3641
        %v3681 = vadd.f32 %v3680, %v3642
        %v3682 = vadd.f32 %v3681, %v3643
        %v3683 = vadd.f32 %v3682, %v3644
        %v3684 = vadd.f32 %v3683, %v3645
        %v3685 = vadd.f32 %v3684, %v3646
        %v3686 = vadd.f32 %v3685, %v3647
        %v3687 = vadd.f32 %v3686, %v3648
        %v3688 = vadd.f32 %v3687, %v3649
        %v3689 = vadd.f32 %v3688, %v3650
        %v3690 = vadd.f32 %v3689, %v3651
        %v3691 = vadd.f32 %v3690, %v3652
        %v3692 = vadd.f32 %v3691, %v3653
        %v3693 = vadd.f32 %v3692, %v3654
        %v3694 = vadd.f32 %v3693, %v3655
        %v3695 = vadd.f32 %v3694, %v3656
        %v3696 = vadd.f32 %v3695, %v3657
        %v3697 = vadd.f32 %v3696, %v3658
        %v3698 = vadd.f32 %v3697, %v3659
        %v3699 = vadd.f32 %v3698, %v3660
        %v3700 = vadd.f32 %v3699, %v3661
        %v3701 = vadd.f32 %v3700, %v3662
        %v3702 = vadd.f32 %v3701, %v3663
        %v3703 = vadd.f32 %v3702, %v3664
        %v3704 = vadd.f32 %v3703, %v3665
        %v3705 = vadd.f32 %v3704, %v3666
        %v3706 = vadd.f32 %v3705, %v3667
        %v3707 = vadd.f32 %v3706, %v3668
        %v3708 = vadd.f32 %v3707, %v3669
        %v3709 = vadd.f32 %v3708, %v3670
        %v3710 = vadd.f32 %v3709, %v3671
        %v3711 = vrot.slane %v3710, 4
        %v3712 = vadd.f32 %v3710, %v3711
        %v3713 = vrot.slane %v3712, 2
        %v3714 = vadd.f32 %v3712, %v3713
        %v3715 = vrot.slane %v3714, 1
        %v3716 = vadd.f32 %v3714, %v3715
        %3717 = vst [vmem:[%s201] sm:$0x1] %v3716
        %v3718 = vmul.f32 %v3632, %v3632
        %v3719 = vmul.f32 %v3633, %v3633
        %v3720 = vmul.f32 %v3634, %v3634
        %v3721 = vmul.f32 %v3635, %v3635
        %v3722 = vmul.f32 %v3636, %v3636
        %v3723 = vmul.f32 %v3637, %v3637
        %v3724 = vmul.f32 %v3638, %v3638
        %v3725 = vmul.f32 %v3639, %v3639
        %v3726 = vmul.f32 %v3640, %v3640
        %v3727 = vmul.f32 %v3641, %v3641
        %v3728 = vmul.f32 %v3642, %v3642
        %v3729 = vmul.f32 %v3643, %v3643
        %v3730 = vmul.f32 %v3644, %v3644
        %v3731 = vmul.f32 %v3645, %v3645
        %v3732 = vmul.f32 %v3646, %v3646
        %v3733 = vmul.f32 %v3647, %v3647
        %v3734 = vmul.f32 %v3648, %v3648
        %v3735 = vmul.f32 %v3649, %v3649
        %v3736 = vmul.f32 %v3650, %v3650
        %v3737 = vmul.f32 %v3651, %v3651
        %v3738 = vmul.f32 %v3652, %v3652
        %v3739 = vmul.f32 %v3653, %v3653
        %v3740 = vmul.f32 %v3654, %v3654
        %v3741 = vmul.f32 %v3655, %v3655
        %v3742 = vmul.f32 %v3656, %v3656
        %v3743 = vmul.f32 %v3657, %v3657
        %v3744 = vmul.f32 %v3658, %v3658
        %v3745 = vmul.f32 %v3659, %v3659
        %v3746 = vmul.f32 %v3660, %v3660
        %v3747 = vmul.f32 %v3661, %v3661
        %v3748 = vmul.f32 %v3662, %v3662
        %v3749 = vmul.f32 %v3663, %v3663
        %v3750 = vmul.f32 %v3664, %v3664
        %v3751 = vmul.f32 %v3665, %v3665
        %v3752 = vmul.f32 %v3666, %v3666
        %v3753 = vmul.f32 %v3667, %v3667
        %v3754 = vmul.f32 %v3668, %v3668
        %v3755 = vmul.f32 %v3669, %v3669
        %v3756 = vmul.f32 %v3670, %v3670
        %v3757 = vmul.f32 %v3671, %v3671
        %v3758 = vadd.f32 %v3718, %v3719
        %v3759 = vadd.f32 %v3758, %v3720
        %v3760 = vadd.f32 %v3759, %v3721
        %v3761 = vadd.f32 %v3760, %v3722
        %v3762 = vadd.f32 %v3761, %v3723
        %v3763 = vadd.f32 %v3762, %v3724
        %v3764 = vadd.f32 %v3763, %v3725
        %v3765 = vadd.f32 %v3764, %v3726
        %v3766 = vadd.f32 %v3765, %v3727
        %v3767 = vadd.f32 %v3766, %v3728
        %v3768 = vadd.f32 %v3767, %v3729
        %v3769 = vadd.f32 %v3768, %v3730
        %v3770 = vadd.f32 %v3769, %v3731
        %v3771 = vadd.f32 %v3770, %v3732
        %v3772 = vadd.f32 %v3771, %v3733
        %v3773 = vadd.f32 %v3772, %v3734
        %v3774 = vadd.f32 %v3773, %v3735
        %v3775 = vadd.f32 %v3774, %v3736
        %v3776 = vadd.f32 %v3775, %v3737
        %v3777 = vadd.f32 %v3776, %v3738
        %v3778 = vadd.f32 %v3777, %v3739
        %v3779 = vadd.f32 %v3778, %v3740
        %v3780 = vadd.f32 %v3779, %v3741
        %v3781 = vadd.f32 %v3780, %v3742
        %v3782 = vadd.f32 %v3781, %v3743
        %v3783 = vadd.f32 %v3782, %v3744
        %v3784 = vadd.f32 %v3783, %v3745
        %v3785 = vadd.f32 %v3784, %v3746
        %v3786 = vadd.f32 %v3785, %v3747
        %v3787 = vadd.f32 %v3786, %v3748
        %v3788 = vadd.f32 %v3787, %v3749
        %v3789 = vadd.f32 %v3788, %v3750
        %v3790 = vadd.f32 %v3789, %v3751
        %v3791 = vadd.f32 %v3790, %v3752
        %v3792 = vadd.f32 %v3791, %v3753
        %v3793 = vadd.f32 %v3792, %v3754
        %v3794 = vadd.f32 %v3793, %v3755
        %v3795 = vadd.f32 %v3794, %v3756
        %v3796 = vadd.f32 %v3795, %v3757
        %v3797 = vrot.slane %v3796, 4
        %v3798 = vadd.f32 %v3796, %v3797
        %v3799 = vrot.slane %v3798, 2
        %v3800 = vadd.f32 %v3798, %v3799
        %v3801 = vrot.slane %v3800, 1
        %v3802 = vadd.f32 %v3800, %v3801
        %3803 = vst [vmem:[%s201 + $0x1] sm:$0x1] %v3802
        %s3804 = sand.u32 %s98, 1
        %s3805 = scalar_lea.sflag [#allocation3], %s3804
        %s3806 = sand.u32 %s98, 1
        %s3807 = smul.addr %s3806, 320
        %s3808 = scalar_lea.vmem [#allocation2], %s3807
        %s3809 = sand.u32 %s124, 1
        %s3810 = scalar_lea.sflag [#allocation5], %s3809
        %s3811 = sand.u32 %s124, 1
        %s3812 = smul.addr %s3811, 2
        %s3813 = scalar_lea.vmem [#allocation4], %s3812
        // Predicated region
        $region33: #{tpu_custom_call.1} parent=31 // pred_check
          %p3814 = pneg %p108
        $region34: #{tpu_custom_call.1} parent=31 // pred_check_branch
          %3816 = sbr.rel (%p3814) target = $region36
        $region35: #{tpu_custom_call.1} parent=31 // pred_region
          %s3817 = smul.u32 40, %s22
          %s3819 = ssub.s32 5120, 5120
          %3820 = vsyncadd %s3805, %s3819
          %s3821 = smul.addr %s3817, 128
          %s3822 = scalar_lea.hbm %s3, %s3821
          %s3823 = sshll.u32 %s3808, 4
          %s3824 = int_to_ptr.vmem [resolvable:$true] %s3823
          %3829 = dma.vmem_to_hbm [thread:$0]  %s3824, 5120, %s3822, %s3805, 128, 128, 8
        $region36: #{tpu_custom_call.1} parent=31 // pred_fallthru
          _
        // Predicated region
        $region37: #{tpu_custom_call.1} parent=31 // pred_check
          %p3830 = pneg %p134
        $region38: #{tpu_custom_call.1} parent=31 // pred_check_branch
          %3832 = sbr.rel (%p3830) target = $region40
        $region39: #{tpu_custom_call.1} parent=31 // pred_region
          %s3834 = ssub.s32 32, 32
          %3835 = vsyncadd %s3810, %s3834
          %s3836 = smul.addr %s22, 32
          %s3837 = scalar_lea.hbm %s4, %s3836
          %s3839 = sshll.u32 %s3813, 4
          %s3840 = int_to_ptr.vmem [resolvable:$true] %s3839
          %3842 = dma.vmem_to_hbm [thread:$0]  %s3840, 32, %s3837, %s3810
        $region40: #{tpu_custom_call.1} parent=31 // pred_fallthru
          _
      $region32: #{tpu_custom_call.1} parent=5 // pred_fallthru
        _
      %p3843 = scmp.le.s32.totalorder 2, %s17
      // Predicated region
      $region41: #{tpu_custom_call.1} parent=5 // pred_check
        %p3844 = pneg %p3843
      $region42: #{tpu_custom_call.1} parent=5 // pred_check_branch
        %3846 = sbr.rel (%p3844) target = $region44
      $region43: #{tpu_custom_call.1} parent=5 // pred_region
        %s3847 = ssub.s32 %s17, 2
        // Predicated region
        $region45: #{tpu_custom_call.1} parent=43 // pred_check
          %p3848 = pneg %p114
        $region46: #{tpu_custom_call.1} parent=43 // pred_check_branch
          %3850 = sbr.rel (%p3848) target = $region48
        $region47: #{tpu_custom_call.1} parent=43 // pred_region
          %s3851 = sand.u32 %s99, 1
          %s3852 = scalar_lea.sflag [#allocation3], %s3851
          %s3853 = sand.u32 %s99, 1
          %s3854 = smul.addr %s3853, 320
          %s3855 = scalar_lea.vmem [#allocation2], %s3854
          %3856 = dma.done %s3852, 5120
        $region48: #{tpu_custom_call.1} parent=43 // pred_fallthru
          _
        // Predicated region
        $region49: #{tpu_custom_call.1} parent=43 // pred_check
          %p3857 = pneg %p140
        $region50: #{tpu_custom_call.1} parent=43 // pred_check_branch
          %3859 = sbr.rel (%p3857) target = $region52
        $region51: #{tpu_custom_call.1} parent=43 // pred_region
          %s3860 = sand.u32 %s125, 1
          %s3861 = scalar_lea.sflag [#allocation5], %s3860
          %s3862 = sand.u32 %s125, 1
          %s3863 = smul.addr %s3862, 2
          %s3864 = scalar_lea.vmem [#allocation4], %s3863
          %3865 = dma.done %s3861, 32
        $region52: #{tpu_custom_call.1} parent=43 // pred_fallthru
          _
      $region44: #{tpu_custom_call.1} parent=5 // pred_fallthru
        _
    $region6: #{tpu_custom_call.1} parent=1 // loop_footer
      %s21 = sadd.s32 1, %s17
    $region7: #{tpu_custom_call.1} parent=1 // loop_footer_branch
      %16 = sbr.rel target = $region3
    $region8: #{tpu_custom_call.1} parent=1 // loop_exit
      _
    %3866 = vsyncpa [#allocation3], 1
    %s3867 = scalar_lea.sflag [#allocation3], 1
    %3868 = vsyncpa %s3867, 1
    %3869 = vsyncpa [#allocation5], 1
    %s3870 = scalar_lea.sflag [#allocation5], 1
    %3871 = vsyncpa %s3870, 1

</llo_original>
